<compile_context>
chip_gen: v6e
topology: v6e:2x2x1
jax: 0.10.0
libtpu: 0.0.40
codegen_flags: <defaults>
</compile_context>

<pallas_src>
import functools

import jax
import jax.numpy as jnp
from jax.experimental import pallas as pl
from jax.experimental.pallas import tpu as pltpu


MATMUL_DTYPE = jnp.bfloat16   # MXU-input dtype (accumulation stays f32)

_BN_EPS = 1e-5
_KMAX = 11                    # unified branch tap frame (covers k = 3, 7, 9, 11)
_BPAD = (_KMAX - 1) // 2      # 5
_KF = 9                       # fusion conv taps
_FPAD = (_KF - 1) // 2        # 4
_XPAD_L = _BPAD + _FPAD       # 9: left zero-halo of the padded input

# 48 MiB scoped VMEM: far above this kernel's needs, safely under v7x's 64 MiB.
_COMPILER_PARAMS = pltpu.CompilerParams(
    dimension_semantics=("parallel", "parallel"),
    vmem_limit_bytes=48 * 1024 * 1024,
)


def _round_up(v, m):
    return ((v + m - 1) // m) * m


# ----------------------------------------------------------------------------
# In-kernel helpers
# ----------------------------------------------------------------------------
def _build_branch_slab(xa, xb, slab_ref):
    """im2col for the unified 11-tap branch conv on the extended tile window.

    xa, xb: (Cin, TL) values -- consecutive L-blocks of the zero-padded input.
    slab layout: row k*Cin + c, col p  ==  x_big[c, i*TL + p + k].
    Every element is written exactly once (no slab zero-init); the conv halo
    zeros come from the padded input itself.
    """
    cin, tl = xa.shape
    rows, text = slab_ref.shape
    kmax = rows // cin
    for k in range(kmax):                      # static (11): fully unrolled
        r0 = k * cin
        wa = tl - k                            # columns sourced from xa
        slab_ref[r0:r0 + cin, 0:wa] = xa[:, k:tl]
        slab_ref[r0:r0 + cin, wa:text] = xb[:, 0:text - wa]


def _branch_conv_ext(xa_ref, xb_ref, w1_ref, slab_ref):
    """Raw (pre-BN) stacked branch conv on the extended window.

    Returns (C1p, TL+8) f32; column p corresponds to sequence index
    i*TL - 4 + p (the +-4 halo feeds the 9-tap fusion conv downstream).
    """
    _build_branch_slab(xa_ref[0], xb_ref[0], slab_ref)
    return jnp.dot(w1_ref[...], slab_ref[...],
                   preferred_element_type=jnp.float32)


def _tile_stats(y, valid):
    """Per-channel masked sum / sum-of-squares over the lane axis -> (C, 2)."""
    ym = jnp.where(valid, y, 0.0)
    s = jnp.sum(ym, axis=1, keepdims=True)
    sq = jnp.sum(ym * ym, axis=1, keepdims=True)
    return jnp.concatenate([s, sq], axis=1)


# ----------------------------------------------------------------------------
# Kernel bodies (closures over the static tile configuration)
# ----------------------------------------------------------------------------
def _make_branch_stats_kernel(seq_len, tile_l):
    """Pass 1: stacked branch conv -> per-tile BN partial statistics."""
    def kernel(xa_ref, xb_ref, w1_ref, stats_ref, slab_ref):
        i = pl.program_id(1)
        y1 = _branch_conv_ext(xa_ref, xb_ref, w1_ref, slab_ref)
        core = y1[:, _FPAD:_FPAD + tile_l]            # this tile's own columns
        pos = i * tile_l + jax.lax.broadcasted_iota(jnp.int32, (1, tile_l), 1)
        stats_ref[0, 0] = _tile_stats(core, pos < seq_len)
    return kernel


def _make_fused_kernel(seq_len, tile_l, c_hi, final, c_fusion=None, c_low=None):
    """Pass 2 (final=False): recompute branches, normalise, fusion conv ->
    fusion BN partial statistics.
    Pass 3 (final=True): same, plus fusion BN+ReLU and the final
    cat([fused, x3], dim=1) tile written straight to the output."""
    def kernel(*refs):
        if final:
            (xa_ref, xb_ref, w1_ref, sc1_ref, sh1_ref, wf_ref, scf_ref, shf_ref,
             out_ref, slab_b_ref, slab_f_ref) = refs
        else:
            (xa_ref, xb_ref, w1_ref, sc1_ref, sh1_ref, wf_ref,
             out_ref, slab_b_ref, slab_f_ref) = refs

        i = pl.program_id(1)
        text = tile_l + 2 * _FPAD

        # Branch convs (+-4 halo), then folded BN (scale/shift) + ReLU, in f32.
        y1 = _branch_conv_ext(xa_ref, xb_ref, w1_ref, slab_b_ref)
        y1n = jnp.maximum(y1 * sc1_ref[...] + sh1_ref[...], 0.0)

        # hi = cat([x7, x9, x11]); zero it outside [0, L) so the fusion conv
        # sees exactly the PyTorch zero padding (the recomputed halo values at
        # j < 0 or j >= L are not real sequence positions).
        jpos = (i * tile_l - _FPAD
                + jax.lax.broadcasted_iota(jnp.int32, (1, text), 1))
        hi = jnp.where((jpos >= 0) & (jpos < seq_len), y1n[:c_hi, :], 0.0)
        hi = hi.astype(slab_f_ref.dtype)

        # im2col for the 9-tap fusion conv (every element written exactly once).
        for kf in range(_KF):
            slab_f_ref[kf * c_hi:(kf + 1) * c_hi, :] = hi[:, kf:kf + tile_l]
        z = jnp.dot(wf_ref[...], slab_f_ref[...],
                    preferred_element_type=jnp.float32)        # (Cfp, TL)

        if final:
            zf = jnp.maximum(z * scf_ref[...] + shf_ref[...], 0.0)
            x3 = y1n[c_hi:c_hi + c_low, _FPAD:_FPAD + tile_l]
            out_ref[0, 0:c_fusion, :] = zf[0:c_fusion, :].astype(out_ref.dtype)
            out_ref[0, c_fusion:, :] = x3.astype(out_ref.dtype)
        else:
            pos = i * tile_l + jax.lax.broadcasted_iota(jnp.int32, (1, tile_l), 1)
            out_ref[0, 0] = _tile_stats(z, pos < seq_len)
    return kernel


# ----------------------------------------------------------------------------
# Parameter handling
# ----------------------------------------------------------------------------
def _embed_taps(w, kmax):
    """PyTorch Conv1d weight (Cout, Cin, K) -> (Cout, kmax*Cin) matmul matrix,
    centred in a kmax-tap frame (zero taps outside the kernel support)."""
    cout, cin, k = w.shape
    off = (kmax - k) // 2
    w_t = jnp.transpose(w, (0, 2, 1))                           # (Cout, K, Cin)
    w_full = jnp.pad(w_t, ((0, 0), (off, kmax - k - off), (0, 0)))
    return w_full.reshape(cout, kmax * cin)


def _fold_bn(stats, gamma, beta, count):
    """Per-channel partials -> folded BN scale/shift (training-mode stats)."""
    tot = jnp.sum(stats, axis=(0, 1))                           # (C, 2)
    mean = tot[:, 0] / count
    var = jnp.maximum(tot[:, 1] / count - mean * mean, 0.0)
    inv = gamma * jax.lax.rsqrt(var + _BN_EPS)
    return inv.reshape(-1, 1), (beta - mean * inv).reshape(-1, 1)


def _init_branch(key, k_size, c_in, c_out):
    """Deterministic params for one Conv1d+BN branch (PyTorch weight layout).
    Conv bias omitted: training-mode BN cancels it exactly."""
    fan_in = c_in * k_size
    w = jax.random.normal(key, (c_out, c_in, k_size), jnp.float32) / jnp.sqrt(fan_in)
    gamma = 1.0 + 0.1 * jnp.arange(c_out, dtype=jnp.float32)
    beta = 0.01 * jnp.arange(c_out, dtype=jnp.float32)
    return dict(w=w, gamma=gamma, beta=beta)


def init_imsf_params(key, in_channels, low_level_channel, high_level_channel,
                     fusion_channel):
    ks = jax.random.split(key, 5)
    return {
        "conv3x3":   _init_branch(ks[0], 3,  in_channels,            low_level_channel),
        "conv7x7":   _init_branch(ks[1], 7,  in_channels,            high_level_channel),
        "conv9x9":   _init_branch(ks[2], 9,  in_channels,            high_level_channel),
        "conv11x11": _init_branch(ks[3], 11, in_channels,            high_level_channel),
        "fusion":    _init_branch(ks[4], 9,  3 * high_level_channel, fusion_channel),
    }


# ----------------------------------------------------------------------------
# Forward
# ----------------------------------------------------------------------------
@functools.partial(jax.jit, static_argnames=("block_l",))
def imsf_block_forward(params, x, *, block_l=512):
    """Mirrors IMSF_Block.forward.  x: (B, C_in, L) -> (B, fusion+low, L)."""
    B, cin, L = x.shape
    high = params["conv7x7"]["w"].shape[0]
    low = params["conv3x3"]["w"].shape[0]
    cf = params["fusion"]["w"].shape[0]
    c_hi = 3 * high
    c1 = c_hi + low
    c1p = _round_up(c1, 8)          # stacked branch Cout, sublane aligned
    cfp = _round_up(cf, 8)
    c_out = cf + low

    tile_l = _round_up(min(block_l, _round_up(max(L, 1), 128)), 128)
    n_l = pl.cdiv(L, tile_l)
    l_round = n_l * tile_l
    l_tot = (n_l + 1) * tile_l      # +1 block: right view of the last tile
    text = tile_l + 2 * _FPAD

    # --- parameter prep (tiny wrapper-side ops) ------------------------------
    order = ("conv7x7", "conv9x9", "conv11x11", "conv3x3")
    w1 = jnp.concatenate([_embed_taps(params[n]["w"], _KMAX) for n in order], 0)
    w1 = jnp.pad(w1, ((0, c1p - c1), (0, 0))).astype(MATMUL_DTYPE)
    g1 = jnp.pad(jnp.concatenate([params[n]["gamma"] for n in order]), (0, c1p - c1))
    b1 = jnp.pad(jnp.concatenate([params[n]["beta"] for n in order]), (0, c1p - c1))
    wf = jnp.pad(_embed_taps(params["fusion"]["w"], _KF),
                 ((0, cfp - cf), (0, 0))).astype(MATMUL_DTYPE)
    gf = jnp.pad(params["fusion"]["gamma"], (0, cfp - cf))
    bf = jnp.pad(params["fusion"]["beta"], (0, cfp - cf))

    # x padded once (left halo = 9 = branch 5 + fusion 4) and pre-cast to the
    # MXU input dtype: the in-kernel halo handling then needs no zeroing at all.
    x_big = jnp.pad(x.astype(MATMUL_DTYPE),
                    ((0, 0), (0, 0), (_XPAD_L, l_tot - L - _XPAD_L)))

    grid = (B, n_l)
    x_specs = [pl.BlockSpec((1, cin, tile_l), lambda b, i: (b, 0, i)),
               pl.BlockSpec((1, cin, tile_l), lambda b, i: (b, 0, i + 1))]

    def _full_spec(shape):
        nd = len(shape)
        return pl.BlockSpec(shape, lambda b, i: (0,) * nd)

    w1_spec = _full_spec((c1p, _KMAX * cin))
    wf_spec = _full_spec((cfp, _KF * c_hi))
    vec_spec1 = _full_spec((c1p, 1))
    vec_specf = _full_spec((cfp, 1))
    slab_b = pltpu.VMEM((_KMAX * cin, text), MATMUL_DTYPE)
    slab_f = pltpu.VMEM((_KF * c_hi, tile_l), MATMUL_DTYPE)

    # --- pass 1: branch convs -> BN statistics -------------------------------
    stats1 = pl.pallas_call(
        _make_branch_stats_kernel(L, tile_l),
        grid=grid,
        in_specs=[*x_specs, w1_spec],
        out_specs=pl.BlockSpec((1, 1, c1p, 2), lambda b, i: (b, i, 0, 0)),
        out_shape=jax.ShapeDtypeStruct((B, n_l, c1p, 2), jnp.float32),
        scratch_shapes=[slab_b],
        compiler_params=_COMPILER_PARAMS,
    )(x_big, x_big, w1)
    sc1, sh1 = _fold_bn(stats1, g1, b1, B * L)

    # --- pass 2: fusion conv -> BN statistics (hi never touches HBM) ---------
    stats2 = pl.pallas_call(
        _make_fused_kernel(L, tile_l, c_hi, final=False),
        grid=grid,
        in_specs=[*x_specs, w1_spec, vec_spec1, vec_spec1, wf_spec],
        out_specs=pl.BlockSpec((1, 1, cfp, 2), lambda b, i: (b, i, 0, 0)),
        out_shape=jax.ShapeDtypeStruct((B, n_l, cfp, 2), jnp.float32),
        scratch_shapes=[slab_b, slab_f],
        compiler_params=_COMPILER_PARAMS,
    )(x_big, x_big, w1, sc1, sh1, wf)
    scf, shf = _fold_bn(stats2, gf, bf, B * L)

    # --- pass 3: final output tiles = cat([fused, x3], dim=1) ----------------
    out = pl.pallas_call(
        _make_fused_kernel(L, tile_l, c_hi, final=True, c_fusion=cf, c_low=low),
        grid=grid,
        in_specs=[*x_specs, w1_spec, vec_spec1, vec_spec1, wf_spec,
                  vec_specf, vec_specf],
        out_specs=pl.BlockSpec((1, c_out, tile_l), lambda b, i: (b, 0, i)),
        out_shape=jax.ShapeDtypeStruct((B, c_out, l_round), x.dtype),
        scratch_shapes=[slab_b, slab_f],
        compiler_params=_COMPILER_PARAMS,
    )(x_big, x_big, w1, sc1, sh1, wf, scf, shf)

    return out if l_round == L else out[:, :, :L]


# ----------------------------------------------------------------------------
# Pure-JAX reference (same bf16 rounding points) for the correctness self-check
# ----------------------------------------------------------------------------
def _ref_conv_bn_relu(x, w, gamma, beta):
    k = w.shape[-1]
    pad = (k - 1) // 2
    y = jax.lax.conv_general_dilated(
        x.astype(MATMUL_DTYPE), w.astype(MATMUL_DTYPE),
        window_strides=(1,), padding=[(pad, pad)],
        dimension_numbers=("NCH", "OIH", "NCH"),
        preferred_element_type=jnp.float32)
    mean = jnp.mean(y, axis=(0, 2), keepdims=True)
    var = jnp.maximum(jnp.mean(y * y, axis=(0, 2), keepdims=True) - mean * mean, 0.0)
    y = (y - mean) * jax.lax.rsqrt(var + _BN_EPS)
    y = y * gamma[None, :, None] + beta[None, :, None]
    return jnp.maximum(y, 0.0)


@jax.jit
def imsf_reference(params, x):
    def run(name, inp):
        p = params[name]
        return _ref_conv_bn_relu(inp, p["w"], p["gamma"], p["beta"])
    x3 = run("conv3x3", x)
    x7 = run("conv7x7", x)
    x9 = run("conv9x9", x)
    x11 = run("conv11x11", x)
    cat = jnp.concatenate([x7, x9, x11], axis=1)
    fused = run("fusion", cat)
    return jnp.concatenate([fused, x3], axis=1)


if __name__ == "__main__":
    B, C_IN, L = 2, 4, 16
    LOW, HIGH, FUSION = 4, 8, 8

    key = jax.random.PRNGKey(0)
    k_params, k_x = jax.random.split(key)
    params = init_imsf_params(k_params, C_IN, LOW, HIGH, FUSION)
    x = jax.random.normal(k_x, (B, C_IN, L), jnp.float32)

    out = imsf_block_forward(params, x)
    jax.block_until_ready(out)
    assert out.shape == (B, FUSION + LOW, L), out.shape

    ref = imsf_reference(params, x)
    err = float(jnp.max(jnp.abs(out - ref)))
    assert err < 1e-2, f"max abs err vs reference: {err}"

    print("KERNEL_OK")
</pallas_src>

<mosaic_0001>
module attributes {stable_mosaic.version = 11 : i64} {
  func.func @kernel(%arg0: i32, %arg1: i32, %arg2: memref<1x4x128xbf16, #tpu.memory_space<vmem>>, %arg3: memref<1x4x128xbf16, #tpu.memory_space<vmem>>, %arg4: memref<32x44xbf16, #tpu.memory_space<vmem>>, %arg5: memref<1x1x32x2xf32, #tpu.memory_space<vmem>>, %arg6: memref<44x136xbf16, #tpu.memory_space<vmem>>) attributes {dimension_semantics = [#tpu.dimension_semantics<parallel>, #tpu.dimension_semantics<parallel>], iteration_bounds = array<i64: 2, 1>, scalar_prefetch = 0 : i64, scratch_operands = 1 : i64, tpu.core_type = #tpu.core_type<tc>, window_params = [{transform_indices = @transform_0, window_bounds = array<i64: 1, 4, 128>}, {transform_indices = @transform_1, window_bounds = array<i64: 1, 4, 128>}, {pipeline_mode = #tpu.pipeline_mode<synchronous>, transform_indices = @transform_2, window_bounds = array<i64: 32, 44>}, {transform_indices = @transform_3, window_bounds = array<i64: 1, 1, 32, 2>}]} {
    %c0 = arith.constant 0 : index
    %c0_0 = arith.constant 0 : index
    %c0_1 = arith.constant 0 : index
    %0 = vector.load %arg2[%c0, %c0_0, %c0_1] : memref<1x4x128xbf16, #tpu.memory_space<vmem>>, vector<1x4x128xbf16>
    %1 = vector.shape_cast %0 : vector<1x4x128xbf16> to vector<4x128xbf16>
    %c0_2 = arith.constant 0 : index
    %c0_3 = arith.constant 0 : index
    %c0_4 = arith.constant 0 : index
    %2 = vector.load %arg3[%c0_2, %c0_3, %c0_4] : memref<1x4x128xbf16, #tpu.memory_space<vmem>>, vector<1x4x128xbf16>
    %3 = vector.shape_cast %2 : vector<1x4x128xbf16> to vector<4x128xbf16>
    %c0_5 = arith.constant 0 : index
    %c0_6 = arith.constant 0 : index
    %4 = vector.load %arg6[%c0_5, %c0_6] : memref<44x136xbf16, #tpu.memory_space<vmem>>, vector<4x128xbf16>
    tpu.vector_store %arg6[%c0_5, %c0_6], %1 {strides = array<i32>} : memref<44x136xbf16, #tpu.memory_space<vmem>>, vector<4x128xbf16>,
    %5 = vector.extract_strided_slice %3 {offsets = [0, 0], sizes = [4, 8], strides = [1, 1]} : vector<4x128xbf16> to vector<4x8xbf16>
    %c0_7 = arith.constant 0 : index
    %c128 = arith.constant 128 : index
    %6 = vector.load %arg6[%c0_7, %c128] : memref<44x136xbf16, #tpu.memory_space<vmem>>, vector<4x8xbf16>
    tpu.vector_store %arg6[%c0_7, %c128], %5 {strides = array<i32>} : memref<44x136xbf16, #tpu.memory_space<vmem>>, vector<4x8xbf16>,
    %7 = vector.extract_strided_slice %1 {offsets = [0, 1], sizes = [4, 127], strides = [1, 1]} : vector<4x128xbf16> to vector<4x127xbf16>
    %c4 = arith.constant 4 : index
    %c0_8 = arith.constant 0 : index
    %8 = vector.load %arg6[%c4, %c0_8] : memref<44x136xbf16, #tpu.memory_space<vmem>>, vector<4x127xbf16>
    tpu.vector_store %arg6[%c4, %c0_8], %7 {strides = array<i32>} : memref<44x136xbf16, #tpu.memory_space<vmem>>, vector<4x127xbf16>,
    %9 = vector.extract_strided_slice %3 {offsets = [0, 0], sizes = [4, 9], strides = [1, 1]} : vector<4x128xbf16> to vector<4x9xbf16>
    %c4_9 = arith.constant 4 : index
    %c127 = arith.constant 127 : index
    %10 = vector.load %arg6[%c4_9, %c127] : memref<44x136xbf16, #tpu.memory_space<vmem>>, vector<4x9xbf16>
    tpu.vector_store %arg6[%c4_9, %c127], %9 {strides = array<i32>} : memref<44x136xbf16, #tpu.memory_space<vmem>>, vector<4x9xbf16>,
    %11 = vector.extract_strided_slice %1 {offsets = [0, 2], sizes = [4, 126], strides = [1, 1]} : vector<4x128xbf16> to vector<4x126xbf16>
    %c8 = arith.constant 8 : index
    %c0_10 = arith.constant 0 : index
    %12 = vector.load %arg6[%c8, %c0_10] : memref<44x136xbf16, #tpu.memory_space<vmem>>, vector<4x126xbf16>
    tpu.vector_store %arg6[%c8, %c0_10], %11 {strides = array<i32>} : memref<44x136xbf16, #tpu.memory_space<vmem>>, vector<4x126xbf16>,
    %13 = vector.extract_strided_slice %3 {offsets = [0, 0], sizes = [4, 10], strides = [1, 1]} : vector<4x128xbf16> to vector<4x10xbf16>
    %c8_11 = arith.constant 8 : index
    %c126 = arith.constant 126 : index
    %14 = vector.load %arg6[%c8_11, %c126] : memref<44x136xbf16, #tpu.memory_space<vmem>>, vector<4x10xbf16>
    tpu.vector_store %arg6[%c8_11, %c126], %13 {strides = array<i32>} : memref<44x136xbf16, #tpu.memory_space<vmem>>, vector<4x10xbf16>,
    %15 = vector.extract_strided_slice %1 {offsets = [0, 3], sizes = [4, 125], strides = [1, 1]} : vector<4x128xbf16> to vector<4x125xbf16>
    %c12 = arith.constant 12 : index
    %c0_12 = arith.constant 0 : index
    %16 = vector.load %arg6[%c12, %c0_12] : memref<44x136xbf16, #tpu.memory_space<vmem>>, vector<4x125xbf16>
    tpu.vector_store %arg6[%c12, %c0_12], %15 {strides = array<i32>} : memref<44x136xbf16, #tpu.memory_space<vmem>>, vector<4x125xbf16>,
    %17 = vector.extract_strided_slice %3 {offsets = [0, 0], sizes = [4, 11], strides = [1, 1]} : vector<4x128xbf16> to vector<4x11xbf16>
    %c12_13 = arith.constant 12 : index
    %c125 = arith.constant 125 : index
    %18 = vector.load %arg6[%c12_13, %c125] : memref<44x136xbf16, #tpu.memory_space<vmem>>, vector<4x11xbf16>
    tpu.vector_store %arg6[%c12_13, %c125], %17 {strides = array<i32>} : memref<44x136xbf16, #tpu.memory_space<vmem>>, vector<4x11xbf16>,
    %19 = vector.extract_strided_slice %1 {offsets = [0, 4], sizes = [4, 124], strides = [1, 1]} : vector<4x128xbf16> to vector<4x124xbf16>
    %c16 = arith.constant 16 : index
    %c0_14 = arith.constant 0 : index
    %20 = vector.load %arg6[%c16, %c0_14] : memref<44x136xbf16, #tpu.memory_space<vmem>>, vector<4x124xbf16>
    tpu.vector_store %arg6[%c16, %c0_14], %19 {strides = array<i32>} : memref<44x136xbf16, #tpu.memory_space<vmem>>, vector<4x124xbf16>,
    %21 = vector.extract_strided_slice %3 {offsets = [0, 0], sizes = [4, 12], strides = [1, 1]} : vector<4x128xbf16> to vector<4x12xbf16>
    %c16_15 = arith.constant 16 : index
    %c124 = arith.constant 124 : index
    %22 = vector.load %arg6[%c16_15, %c124] : memref<44x136xbf16, #tpu.memory_space<vmem>>, vector<4x12xbf16>
    tpu.vector_store %arg6[%c16_15, %c124], %21 {strides = array<i32>} : memref<44x136xbf16, #tpu.memory_space<vmem>>, vector<4x12xbf16>,
    %23 = vector.extract_strided_slice %1 {offsets = [0, 5], sizes = [4, 123], strides = [1, 1]} : vector<4x128xbf16> to vector<4x123xbf16>
    %c20 = arith.constant 20 : index
    %c0_16 = arith.constant 0 : index
    %24 = vector.load %arg6[%c20, %c0_16] : memref<44x136xbf16, #tpu.memory_space<vmem>>, vector<4x123xbf16>
    tpu.vector_store %arg6[%c20, %c0_16], %23 {strides = array<i32>} : memref<44x136xbf16, #tpu.memory_space<vmem>>, vector<4x123xbf16>,
    %25 = vector.extract_strided_slice %3 {offsets = [0, 0], sizes = [4, 13], strides = [1, 1]} : vector<4x128xbf16> to vector<4x13xbf16>
    %c20_17 = arith.constant 20 : index
    %c123 = arith.constant 123 : index
    %26 = vector.load %arg6[%c20_17, %c123] : memref<44x136xbf16, #tpu.memory_space<vmem>>, vector<4x13xbf16>
    tpu.vector_store %arg6[%c20_17, %c123], %25 {strides = array<i32>} : memref<44x136xbf16, #tpu.memory_space<vmem>>, vector<4x13xbf16>,
    %27 = vector.extract_strided_slice %1 {offsets = [0, 6], sizes = [4, 122], strides = [1, 1]} : vector<4x128xbf16> to vector<4x122xbf16>
    %c24 = arith.constant 24 : index
    %c0_18 = arith.constant 0 : index
    %28 = vector.load %arg6[%c24, %c0_18] : memref<44x136xbf16, #tpu.memory_space<vmem>>, vector<4x122xbf16>
    tpu.vector_store %arg6[%c24, %c0_18], %27 {strides = array<i32>} : memref<44x136xbf16, #tpu.memory_space<vmem>>, vector<4x122xbf16>,
    %29 = vector.extract_strided_slice %3 {offsets = [0, 0], sizes = [4, 14], strides = [1, 1]} : vector<4x128xbf16> to vector<4x14xbf16>
    %c24_19 = arith.constant 24 : index
    %c122 = arith.constant 122 : index
    %30 = vector.load %arg6[%c24_19, %c122] : memref<44x136xbf16, #tpu.memory_space<vmem>>, vector<4x14xbf16>
    tpu.vector_store %arg6[%c24_19, %c122], %29 {strides = array<i32>} : memref<44x136xbf16, #tpu.memory_space<vmem>>, vector<4x14xbf16>,
    %31 = vector.extract_strided_slice %1 {offsets = [0, 7], sizes = [4, 121], strides = [1, 1]} : vector<4x128xbf16> to vector<4x121xbf16>
    %c28 = arith.constant 28 : index
    %c0_20 = arith.constant 0 : index
    %32 = vector.load %arg6[%c28, %c0_20] : memref<44x136xbf16, #tpu.memory_space<vmem>>, vector<4x121xbf16>
    tpu.vector_store %arg6[%c28, %c0_20], %31 {strides = array<i32>} : memref<44x136xbf16, #tpu.memory_space<vmem>>, vector<4x121xbf16>,
    %33 = vector.extract_strided_slice %3 {offsets = [0, 0], sizes = [4, 15], strides = [1, 1]} : vector<4x128xbf16> to vector<4x15xbf16>
    %c28_21 = arith.constant 28 : index
    %c121 = arith.constant 121 : index
    %34 = vector.load %arg6[%c28_21, %c121] : memref<44x136xbf16, #tpu.memory_space<vmem>>, vector<4x15xbf16>
    tpu.vector_store %arg6[%c28_21, %c121], %33 {strides = array<i32>} : memref<44x136xbf16, #tpu.memory_space<vmem>>, vector<4x15xbf16>,
    %35 = vector.extract_strided_slice %1 {offsets = [0, 8], sizes = [4, 120], strides = [1, 1]} : vector<4x128xbf16> to vector<4x120xbf16>
    %c32 = arith.constant 32 : index
    %c0_22 = arith.constant 0 : index
    %36 = vector.load %arg6[%c32, %c0_22] : memref<44x136xbf16, #tpu.memory_space<vmem>>, vector<4x120xbf16>
    tpu.vector_store %arg6[%c32, %c0_22], %35 {strides = array<i32>} : memref<44x136xbf16, #tpu.memory_space<vmem>>, vector<4x120xbf16>,
    %37 = vector.extract_strided_slice %3 {offsets = [0, 0], sizes = [4, 16], strides = [1, 1]} : vector<4x128xbf16> to vector<4x16xbf16>
    %c32_23 = arith.constant 32 : index
    %c120 = arith.constant 120 : index
    %38 = vector.load %arg6[%c32_23, %c120] : memref<44x136xbf16, #tpu.memory_space<vmem>>, vector<4x16xbf16>
    tpu.vector_store %arg6[%c32_23, %c120], %37 {strides = array<i32>} : memref<44x136xbf16, #tpu.memory_space<vmem>>, vector<4x16xbf16>,
    %39 = vector.extract_strided_slice %1 {offsets = [0, 9], sizes = [4, 119], strides = [1, 1]} : vector<4x128xbf16> to vector<4x119xbf16>
    %c36 = arith.constant 36 : index
    %c0_24 = arith.constant 0 : index
    %40 = vector.load %arg6[%c36, %c0_24] : memref<44x136xbf16, #tpu.memory_space<vmem>>, vector<4x119xbf16>
    tpu.vector_store %arg6[%c36, %c0_24], %39 {strides = array<i32>} : memref<44x136xbf16, #tpu.memory_space<vmem>>, vector<4x119xbf16>,
    %41 = vector.extract_strided_slice %3 {offsets = [0, 0], sizes = [4, 17], strides = [1, 1]} : vector<4x128xbf16> to vector<4x17xbf16>
    %c36_25 = arith.constant 36 : index
    %c119 = arith.constant 119 : index
    %42 = vector.load %arg6[%c36_25, %c119] : memref<44x136xbf16, #tpu.memory_space<vmem>>, vector<4x17xbf16>
    tpu.vector_store %arg6[%c36_25, %c119], %41 {strides = array<i32>} : memref<44x136xbf16, #tpu.memory_space<vmem>>, vector<4x17xbf16>,
    %43 = vector.extract_strided_slice %1 {offsets = [0, 10], sizes = [4, 118], strides = [1, 1]} : vector<4x128xbf16> to vector<4x118xbf16>
    %c40 = arith.constant 40 : index
    %c0_26 = arith.constant 0 : index
    %44 = vector.load %arg6[%c40, %c0_26] : memref<44x136xbf16, #tpu.memory_space<vmem>>, vector<4x118xbf16>
    tpu.vector_store %arg6[%c40, %c0_26], %43 {strides = array<i32>} : memref<44x136xbf16, #tpu.memory_space<vmem>>, vector<4x118xbf16>,
    %45 = vector.extract_strided_slice %3 {offsets = [0, 0], sizes = [4, 18], strides = [1, 1]} : vector<4x128xbf16> to vector<4x18xbf16>
    %c40_27 = arith.constant 40 : index
    %c118 = arith.constant 118 : index
    %46 = vector.load %arg6[%c40_27, %c118] : memref<44x136xbf16, #tpu.memory_space<vmem>>, vector<4x18xbf16>
    tpu.vector_store %arg6[%c40_27, %c118], %45 {strides = array<i32>} : memref<44x136xbf16, #tpu.memory_space<vmem>>, vector<4x18xbf16>,
    %c0_28 = arith.constant 0 : index
    %c0_29 = arith.constant 0 : index
    %47 = vector.load %arg4[%c0_28, %c0_29] : memref<32x44xbf16, #tpu.memory_space<vmem>>, vector<32x44xbf16>
    %c0_30 = arith.constant 0 : index
    %c0_31 = arith.constant 0 : index
    %48 = vector.load %arg6[%c0_30, %c0_31] : memref<44x136xbf16, #tpu.memory_space<vmem>>, vector<44x136xbf16>
    %cst = arith.constant dense<0.000000e+00> : vector<32x136xf32>
    %49 = tpu.matmul %47, %48, %cst {dimension_numbers = #tpu.dot_dimension_numbers<[1], [0], [0], [1], [0, 0, 1, 1], [], []>} : vector<32x44xbf16>, vector<44x136xbf16>, vector<32x136xf32> -> vector<32x136xf32>
    %50 = vector.extract_strided_slice %49 {offsets = [0, 4], sizes = [32, 128], strides = [1, 1]} : vector<32x136xf32> to vector<32x128xf32>
    %c128_i32 = arith.constant 128 : i32
    %51 = arith.muli %arg1, %c128_i32 : i32
    %52 = tpu.iota {dimensions = array<i32: 1>} : vector<1x128xi32>
    %53 = vector.broadcast %51 : i32 to vector<1x128xi32>
    %54 = arith.addi %53, %52 : vector<1x128xi32>
    %c16_i32 = arith.constant 16 : i32
    %55 = vector.broadcast %c16_i32 : i32 to vector<1x128xi32>
    %56 = arith.cmpi slt, %54, %55 : vector<1x128xi32>
    %cst_32 = arith.constant 0.000000e+00 : f32
    %57 = vector.shape_cast %56 : vector<1x128xi1> to vector<1x128xi1>
    %58 = vector.broadcast %57 : vector<1x128xi1> to vector<32x128xi1>
    %59 = vector.broadcast %cst_32 : f32 to vector<32x128xf32>
    %60 = arith.select %58, %50, %59 : vector<32x128xi1>, vector<32x128xf32>
    %cst_33 = arith.constant dense<0.000000e+00> : vector<32xf32>
    %61 = vector.multi_reduction <add>, %60, %cst_33 [1] : vector<32x128xf32> to vector<32xf32>
    %62 = vector.shape_cast %61 : vector<32xf32> to vector<32x1xf32>
    %63 = arith.mulf %60, %60 : vector<32x128xf32>
    %cst_34 = arith.constant dense<0.000000e+00> : vector<32xf32>
    %64 = vector.multi_reduction <add>, %63, %cst_34 [1] : vector<32x128xf32> to vector<32xf32>
    %65 = vector.shape_cast %64 : vector<32xf32> to vector<32x1xf32>
    %66 = tpu.concatenate %62, %65 in 1 : vector<32x1xf32>, vector<32x1xf32> -> vector<32x2xf32>
    %c0_35 = arith.constant 0 : index
    %c0_36 = arith.constant 0 : index
    %c0_37 = arith.constant 0 : index
    %c0_38 = arith.constant 0 : index
    %67 = vector.load %arg5[%c0_35, %c0_36, %c0_37, %c0_38] : memref<1x1x32x2xf32, #tpu.memory_space<vmem>>, vector<1x1x32x2xf32>
    %68 = vector.shape_cast %67 : vector<1x1x32x2xf32> to vector<32x2xf32>
    %69 = vector.shape_cast %66 : vector<32x2xf32> to vector<1x1x32x2xf32>
    tpu.vector_store %arg5[%c0_35, %c0_36, %c0_37, %c0_38], %69 {strides = array<i32>} : memref<1x1x32x2xf32, #tpu.memory_space<vmem>>, vector<1x1x32x2xf32>,
    return
  }
  func.func @transform_0(%arg0: i32, %arg1: i32) -> (i32, i32, i32) {
    %c0_i32 = arith.constant 0 : i32
    %c0_i32_0 = arith.constant 0 : i32
    return %arg0, %c0_i32, %arg1 : i32, i32, i32
  }
  func.func @transform_1(%arg0: i32, %arg1: i32) -> (i32, i32, i32) {
    %c1_i32 = arith.constant 1 : i32
    %0 = arith.addi %arg1, %c1_i32 : i32
    %c0_i32 = arith.constant 0 : i32
    %c0_i32_0 = arith.constant 0 : i32
    return %arg0, %c0_i32, %0 : i32, i32, i32
  }
  func.func @transform_2(%arg0: i32, %arg1: i32) -> (i32, i32) {
    %c0_i32 = arith.constant 0 : i32
    %c0_i32_0 = arith.constant 0 : i32
    %c0_i32_1 = arith.constant 0 : i32
    return %c0_i32, %c0_i32_0 : i32, i32
  }
  func.func @transform_3(%arg0: i32, %arg1: i32) -> (i32, i32, i32, i32) {
    %c0_i32 = arith.constant 0 : i32
    %c0_i32_0 = arith.constant 0 : i32
    %c0_i32_1 = arith.constant 0 : i32
    return %arg0, %arg1, %c0_i32, %c0_i32_0 : i32, i32, i32, i32
  }
}

module attributes {stable_mosaic.version = 11 : i64} {
  func.func @kernel(%arg0: i32, %arg1: i32, %arg2: memref<1x4x128xbf16, #tpu.memory_space<vmem>>, %arg3: memref<1x4x128xbf16, #tpu.memory_space<vmem>>, %arg4: memref<32x44xbf16, #tpu.memory_space<vmem>>, %arg5: memref<32x1xf32, #tpu.memory_space<vmem>>, %arg6: memref<32x1xf32, #tpu.memory_space<vmem>>, %arg7: memref<8x216xbf16, #tpu.memory_space<vmem>>, %arg8: memref<1x1x8x2xf32, #tpu.memory_space<vmem>>, %arg9: memref<44x136xbf16, #tpu.memory_space<vmem>>, %arg10: memref<216x128xbf16, #tpu.memory_space<vmem>>) attributes {dimension_semantics = [#tpu.dimension_semantics<parallel>, #tpu.dimension_semantics<parallel>], iteration_bounds = array<i64: 2, 1>, scalar_prefetch = 0 : i64, scratch_operands = 2 : i64, tpu.core_type = #tpu.core_type<tc>, window_params = [{transform_indices = @transform_0, window_bounds = array<i64: 1, 4, 128>}, {transform_indices = @transform_1, window_bounds = array<i64: 1, 4, 128>}, {pipeline_mode = #tpu.pipeline_mode<synchronous>, transform_indices = @transform_2, window_bounds = array<i64: 32, 44>}, {pipeline_mode = #tpu.pipeline_mode<synchronous>, transform_indices = @transform_3, window_bounds = array<i64: 32, 1>}, {pipeline_mode = #tpu.pipeline_mode<synchronous>, transform_indices = @transform_4, window_bounds = array<i64: 32, 1>}, {pipeline_mode = #tpu.pipeline_mode<synchronous>, transform_indices = @transform_5, window_bounds = array<i64: 8, 216>}, {transform_indices = @transform_6, window_bounds = array<i64: 1, 1, 8, 2>}]} {
    %c0 = arith.constant 0 : index
    %c0_0 = arith.constant 0 : index
    %c0_1 = arith.constant 0 : index
    %0 = vector.load %arg2[%c0, %c0_0, %c0_1] : memref<1x4x128xbf16, #tpu.memory_space<vmem>>, vector<1x4x128xbf16>
    %1 = vector.shape_cast %0 : vector<1x4x128xbf16> to vector<4x128xbf16>
    %c0_2 = arith.constant 0 : index
    %c0_3 = arith.constant 0 : index
    %c0_4 = arith.constant 0 : index
    %2 = vector.load %arg3[%c0_2, %c0_3, %c0_4] : memref<1x4x128xbf16, #tpu.memory_space<vmem>>, vector<1x4x128xbf16>
    %3 = vector.shape_cast %2 : vector<1x4x128xbf16> to vector<4x128xbf16>
    %c0_5 = arith.constant 0 : index
    %c0_6 = arith.constant 0 : index
    %4 = vector.load %arg9[%c0_5, %c0_6] : memref<44x136xbf16, #tpu.memory_space<vmem>>, vector<4x128xbf16>
    tpu.vector_store %arg9[%c0_5, %c0_6], %1 {strides = array<i32>} : memref<44x136xbf16, #tpu.memory_space<vmem>>, vector<4x128xbf16>,
    %5 = vector.extract_strided_slice %3 {offsets = [0, 0], sizes = [4, 8], strides = [1, 1]} : vector<4x128xbf16> to vector<4x8xbf16>
    %c0_7 = arith.constant 0 : index
    %c128 = arith.constant 128 : index
    %6 = vector.load %arg9[%c0_7, %c128] : memref<44x136xbf16, #tpu.memory_space<vmem>>, vector<4x8xbf16>
    tpu.vector_store %arg9[%c0_7, %c128], %5 {strides = array<i32>} : memref<44x136xbf16, #tpu.memory_space<vmem>>, vector<4x8xbf16>,
    %7 = vector.extract_strided_slice %1 {offsets = [0, 1], sizes = [4, 127], strides = [1, 1]} : vector<4x128xbf16> to vector<4x127xbf16>
    %c4 = arith.constant 4 : index
    %c0_8 = arith.constant 0 : index
    %8 = vector.load %arg9[%c4, %c0_8] : memref<44x136xbf16, #tpu.memory_space<vmem>>, vector<4x127xbf16>
    tpu.vector_store %arg9[%c4, %c0_8], %7 {strides = array<i32>} : memref<44x136xbf16, #tpu.memory_space<vmem>>, vector<4x127xbf16>,
    %9 = vector.extract_strided_slice %3 {offsets = [0, 0], sizes = [4, 9], strides = [1, 1]} : vector<4x128xbf16> to vector<4x9xbf16>
    %c4_9 = arith.constant 4 : index
    %c127 = arith.constant 127 : index
    %10 = vector.load %arg9[%c4_9, %c127] : memref<44x136xbf16, #tpu.memory_space<vmem>>, vector<4x9xbf16>
    tpu.vector_store %arg9[%c4_9, %c127], %9 {strides = array<i32>} : memref<44x136xbf16, #tpu.memory_space<vmem>>, vector<4x9xbf16>,
    %11 = vector.extract_strided_slice %1 {offsets = [0, 2], sizes = [4, 126], strides = [1, 1]} : vector<4x128xbf16> to vector<4x126xbf16>
    %c8 = arith.constant 8 : index
    %c0_10 = arith.constant 0 : index
    %12 = vector.load %arg9[%c8, %c0_10] : memref<44x136xbf16, #tpu.memory_space<vmem>>, vector<4x126xbf16>
    tpu.vector_store %arg9[%c8, %c0_10], %11 {strides = array<i32>} : memref<44x136xbf16, #tpu.memory_space<vmem>>, vector<4x126xbf16>,
    %13 = vector.extract_strided_slice %3 {offsets = [0, 0], sizes = [4, 10], strides = [1, 1]} : vector<4x128xbf16> to vector<4x10xbf16>
    %c8_11 = arith.constant 8 : index
    %c126 = arith.constant 126 : index
    %14 = vector.load %arg9[%c8_11, %c126] : memref<44x136xbf16, #tpu.memory_space<vmem>>, vector<4x10xbf16>
    tpu.vector_store %arg9[%c8_11, %c126], %13 {strides = array<i32>} : memref<44x136xbf16, #tpu.memory_space<vmem>>, vector<4x10xbf16>,
    %15 = vector.extract_strided_slice %1 {offsets = [0, 3], sizes = [4, 125], strides = [1, 1]} : vector<4x128xbf16> to vector<4x125xbf16>
    %c12 = arith.constant 12 : index
    %c0_12 = arith.constant 0 : index
    %16 = vector.load %arg9[%c12, %c0_12] : memref<44x136xbf16, #tpu.memory_space<vmem>>, vector<4x125xbf16>
    tpu.vector_store %arg9[%c12, %c0_12], %15 {strides = array<i32>} : memref<44x136xbf16, #tpu.memory_space<vmem>>, vector<4x125xbf16>,
    %17 = vector.extract_strided_slice %3 {offsets = [0, 0], sizes = [4, 11], strides = [1, 1]} : vector<4x128xbf16> to vector<4x11xbf16>
    %c12_13 = arith.constant 12 : index
    %c125 = arith.constant 125 : index
    %18 = vector.load %arg9[%c12_13, %c125] : memref<44x136xbf16, #tpu.memory_space<vmem>>, vector<4x11xbf16>
    tpu.vector_store %arg9[%c12_13, %c125], %17 {strides = array<i32>} : memref<44x136xbf16, #tpu.memory_space<vmem>>, vector<4x11xbf16>,
    %19 = vector.extract_strided_slice %1 {offsets = [0, 4], sizes = [4, 124], strides = [1, 1]} : vector<4x128xbf16> to vector<4x124xbf16>
    %c16 = arith.constant 16 : index
    %c0_14 = arith.constant 0 : index
    %20 = vector.load %arg9[%c16, %c0_14] : memref<44x136xbf16, #tpu.memory_space<vmem>>, vector<4x124xbf16>
    tpu.vector_store %arg9[%c16, %c0_14], %19 {strides = array<i32>} : memref<44x136xbf16, #tpu.memory_space<vmem>>, vector<4x124xbf16>,
    %21 = vector.extract_strided_slice %3 {offsets = [0, 0], sizes = [4, 12], strides = [1, 1]} : vector<4x128xbf16> to vector<4x12xbf16>
    %c16_15 = arith.constant 16 : index
    %c124 = arith.constant 124 : index
    %22 = vector.load %arg9[%c16_15, %c124] : memref<44x136xbf16, #tpu.memory_space<vmem>>, vector<4x12xbf16>
    tpu.vector_store %arg9[%c16_15, %c124], %21 {strides = array<i32>} : memref<44x136xbf16, #tpu.memory_space<vmem>>, vector<4x12xbf16>,
    %23 = vector.extract_strided_slice %1 {offsets = [0, 5], sizes = [4, 123], strides = [1, 1]} : vector<4x128xbf16> to vector<4x123xbf16>
    %c20 = arith.constant 20 : index
    %c0_16 = arith.constant 0 : index
    %24 = vector.load %arg9[%c20, %c0_16] : memref<44x136xbf16, #tpu.memory_space<vmem>>, vector<4x123xbf16>
    tpu.vector_store %arg9[%c20, %c0_16], %23 {strides = array<i32>} : memref<44x136xbf16, #tpu.memory_space<vmem>>, vector<4x123xbf16>,
    %25 = vector.extract_strided_slice %3 {offsets = [0, 0], sizes = [4, 13], strides = [1, 1]} : vector<4x128xbf16> to vector<4x13xbf16>
    %c20_17 = arith.constant 20 : index
    %c123 = arith.constant 123 : index
    %26 = vector.load %arg9[%c20_17, %c123] : memref<44x136xbf16, #tpu.memory_space<vmem>>, vector<4x13xbf16>
    tpu.vector_store %arg9[%c20_17, %c123], %25 {strides = array<i32>} : memref<44x136xbf16, #tpu.memory_space<vmem>>, vector<4x13xbf16>,
    %27 = vector.extract_strided_slice %1 {offsets = [0, 6], sizes = [4, 122], strides = [1, 1]} : vector<4x128xbf16> to vector<4x122xbf16>
    %c24 = arith.constant 24 : index
    %c0_18 = arith.constant 0 : index
    %28 = vector.load %arg9[%c24, %c0_18] : memref<44x136xbf16, #tpu.memory_space<vmem>>, vector<4x122xbf16>
    tpu.vector_store %arg9[%c24, %c0_18], %27 {strides = array<i32>} : memref<44x136xbf16, #tpu.memory_space<vmem>>, vector<4x122xbf16>,
    %29 = vector.extract_strided_slice %3 {offsets = [0, 0], sizes = [4, 14], strides = [1, 1]} : vector<4x128xbf16> to vector<4x14xbf16>
    %c24_19 = arith.constant 24 : index
    %c122 = arith.constant 122 : index
    %30 = vector.load %arg9[%c24_19, %c122] : memref<44x136xbf16, #tpu.memory_space<vmem>>, vector<4x14xbf16>
    tpu.vector_store %arg9[%c24_19, %c122], %29 {strides = array<i32>} : memref<44x136xbf16, #tpu.memory_space<vmem>>, vector<4x14xbf16>,
    %31 = vector.extract_strided_slice %1 {offsets = [0, 7], sizes = [4, 121], strides = [1, 1]} : vector<4x128xbf16> to vector<4x121xbf16>
    %c28 = arith.constant 28 : index
    %c0_20 = arith.constant 0 : index
    %32 = vector.load %arg9[%c28, %c0_20] : memref<44x136xbf16, #tpu.memory_space<vmem>>, vector<4x121xbf16>
    tpu.vector_store %arg9[%c28, %c0_20], %31 {strides = array<i32>} : memref<44x136xbf16, #tpu.memory_space<vmem>>, vector<4x121xbf16>,
    %33 = vector.extract_strided_slice %3 {offsets = [0, 0], sizes = [4, 15], strides = [1, 1]} : vector<4x128xbf16> to vector<4x15xbf16>
    %c28_21 = arith.constant 28 : index
    %c121 = arith.constant 121 : index
    %34 = vector.load %arg9[%c28_21, %c121] : memref<44x136xbf16, #tpu.memory_space<vmem>>, vector<4x15xbf16>
    tpu.vector_store %arg9[%c28_21, %c121], %33 {strides = array<i32>} : memref<44x136xbf16, #tpu.memory_space<vmem>>, vector<4x15xbf16>,
    %35 = vector.extract_strided_slice %1 {offsets = [0, 8], sizes = [4, 120], strides = [1, 1]} : vector<4x128xbf16> to vector<4x120xbf16>
    %c32 = arith.constant 32 : index
    %c0_22 = arith.constant 0 : index
    %36 = vector.load %arg9[%c32, %c0_22] : memref<44x136xbf16, #tpu.memory_space<vmem>>, vector<4x120xbf16>
    tpu.vector_store %arg9[%c32, %c0_22], %35 {strides = array<i32>} : memref<44x136xbf16, #tpu.memory_space<vmem>>, vector<4x120xbf16>,
    %37 = vector.extract_strided_slice %3 {offsets = [0, 0], sizes = [4, 16], strides = [1, 1]} : vector<4x128xbf16> to vector<4x16xbf16>
    %c32_23 = arith.constant 32 : index
    %c120 = arith.constant 120 : index
    %38 = vector.load %arg9[%c32_23, %c120] : memref<44x136xbf16, #tpu.memory_space<vmem>>, vector<4x16xbf16>
    tpu.vector_store %arg9[%c32_23, %c120], %37 {strides = array<i32>} : memref<44x136xbf16, #tpu.memory_space<vmem>>, vector<4x16xbf16>,
    %39 = vector.extract_strided_slice %1 {offsets = [0, 9], sizes = [4, 119], strides = [1, 1]} : vector<4x128xbf16> to vector<4x119xbf16>
    %c36 = arith.constant 36 : index
    %c0_24 = arith.constant 0 : index
    %40 = vector.load %arg9[%c36, %c0_24] : memref<44x136xbf16, #tpu.memory_space<vmem>>, vector<4x119xbf16>
    tpu.vector_store %arg9[%c36, %c0_24], %39 {strides = array<i32>} : memref<44x136xbf16, #tpu.memory_space<vmem>>, vector<4x119xbf16>,
    %41 = vector.extract_strided_slice %3 {offsets = [0, 0], sizes = [4, 17], strides = [1, 1]} : vector<4x128xbf16> to vector<4x17xbf16>
    %c36_25 = arith.constant 36 : index
    %c119 = arith.constant 119 : index
    %42 = vector.load %arg9[%c36_25, %c119] : memref<44x136xbf16, #tpu.memory_space<vmem>>, vector<4x17xbf16>
    tpu.vector_store %arg9[%c36_25, %c119], %41 {strides = array<i32>} : memref<44x136xbf16, #tpu.memory_space<vmem>>, vector<4x17xbf16>,
    %43 = vector.extract_strided_slice %1 {offsets = [0, 10], sizes = [4, 118], strides = [1, 1]} : vector<4x128xbf16> to vector<4x118xbf16>
    %c40 = arith.constant 40 : index
    %c0_26 = arith.constant 0 : index
    %44 = vector.load %arg9[%c40, %c0_26] : memref<44x136xbf16, #tpu.memory_space<vmem>>, vector<4x118xbf16>
    tpu.vector_store %arg9[%c40, %c0_26], %43 {strides = array<i32>} : memref<44x136xbf16, #tpu.memory_space<vmem>>, vector<4x118xbf16>,
    %45 = vector.extract_strided_slice %3 {offsets = [0, 0], sizes = [4, 18], strides = [1, 1]} : vector<4x128xbf16> to vector<4x18xbf16>
    %c40_27 = arith.constant 40 : index
    %c118 = arith.constant 118 : index
    %46 = vector.load %arg9[%c40_27, %c118] : memref<44x136xbf16, #tpu.memory_space<vmem>>, vector<4x18xbf16>
    tpu.vector_store %arg9[%c40_27, %c118], %45 {strides = array<i32>} : memref<44x136xbf16, #tpu.memory_space<vmem>>, vector<4x18xbf16>,
    %c0_28 = arith.constant 0 : index
    %c0_29 = arith.constant 0 : index
    %47 = vector.load %arg4[%c0_28, %c0_29] : memref<32x44xbf16, #tpu.memory_space<vmem>>, vector<32x44xbf16>
    %c0_30 = arith.constant 0 : index
    %c0_31 = arith.constant 0 : index
    %48 = vector.load %arg9[%c0_30, %c0_31] : memref<44x136xbf16, #tpu.memory_space<vmem>>, vector<44x136xbf16>
    %cst = arith.constant dense<0.000000e+00> : vector<32x136xf32>
    %49 = tpu.matmul %47, %48, %cst {dimension_numbers = #tpu.dot_dimension_numbers<[1], [0], [0], [1], [0, 0, 1, 1], [], []>} : vector<32x44xbf16>, vector<44x136xbf16>, vector<32x136xf32> -> vector<32x136xf32>
    %c0_32 = arith.constant 0 : index
    %c0_33 = arith.constant 0 : index
    %50 = vector.load %arg5[%c0_32, %c0_33] : memref<32x1xf32, #tpu.memory_space<vmem>>, vector<32x1xf32>
    %51 = vector.broadcast %50 : vector<32x1xf32> to vector<32x136xf32>
    %52 = arith.mulf %49, %51 : vector<32x136xf32>
    %c0_34 = arith.constant 0 : index
    %c0_35 = arith.constant 0 : index
    %53 = vector.load %arg6[%c0_34, %c0_35] : memref<32x1xf32, #tpu.memory_space<vmem>>, vector<32x1xf32>
    %54 = vector.broadcast %53 : vector<32x1xf32> to vector<32x136xf32>
    %55 = arith.addf %52, %54 : vector<32x136xf32>
    %cst_36 = arith.constant 0.000000e+00 : f32
    %56 = vector.broadcast %cst_36 : f32 to vector<32x136xf32>
    %57 = arith.maximumf %55, %56 : vector<32x136xf32>
    %c128_i32 = arith.constant 128 : i32
    %58 = arith.muli %arg1, %c128_i32 : i32
    %c4_i32 = arith.constant 4 : i32
    %59 = arith.subi %58, %c4_i32 : i32
    %60 = tpu.iota {dimensions = array<i32: 1>} : vector<1x136xi32>
    %61 = vector.broadcast %59 : i32 to vector<1x136xi32>
    %62 = arith.addi %61, %60 : vector<1x136xi32>
    %c0_i32 = arith.constant 0 : i32
    %63 = vector.broadcast %c0_i32 : i32 to vector<1x136xi32>
    %64 = arith.cmpi sge, %62, %63 : vector<1x136xi32>
    %c16_i32 = arith.constant 16 : i32
    %65 = vector.broadcast %c16_i32 : i32 to vector<1x136xi32>
    %66 = arith.cmpi slt, %62, %65 : vector<1x136xi32>
    %67 = arith.andi %64, %66 : vector<1x136xi1>
    %68 = vector.extract_strided_slice %57 {offsets = [0, 0], sizes = [24, 136], strides = [1, 1]} : vector<32x136xf32> to vector<24x136xf32>
    %cst_37 = arith.constant 0.000000e+00 : f32
    %69 = vector.shape_cast %67 : vector<1x136xi1> to vector<1x136xi1>
    %70 = vector.broadcast %69 : vector<1x136xi1> to vector<24x136xi1>
    %71 = vector.broadcast %cst_37 : f32 to vector<24x136xf32>
    %72 = arith.select %70, %68, %71 : vector<24x136xi1>, vector<24x136xf32>
    %73 = arith.truncf %72 : vector<24x136xf32> to vector<24x136xbf16>
    %74 = vector.extract_strided_slice %73 {offsets = [0, 0], sizes = [24, 128], strides = [1, 1]} : vector<24x136xbf16> to vector<24x128xbf16>
    %c0_38 = arith.constant 0 : index
    %c0_39 = arith.constant 0 : index
    %75 = vector.load %arg10[%c0_38, %c0_39] : memref<216x128xbf16, #tpu.memory_space<vmem>>, vector<24x128xbf16>
    tpu.vector_store %arg10[%c0_38, %c0_39], %74 {strides = array<i32>} : memref<216x128xbf16, #tpu.memory_space<vmem>>, vector<24x128xbf16>,
    %76 = vector.extract_strided_slice %73 {offsets = [0, 1], sizes = [24, 128], strides = [1, 1]} : vector<24x136xbf16> to vector<24x128xbf16>
    %c24_40 = arith.constant 24 : index
    %c0_41 = arith.constant 0 : index
    %77 = vector.load %arg10[%c24_40, %c0_41] : memref<216x128xbf16, #tpu.memory_space<vmem>>, vector<24x128xbf16>
    tpu.vector_store %arg10[%c24_40, %c0_41], %76 {strides = array<i32>} : memref<216x128xbf16, #tpu.memory_space<vmem>>, vector<24x128xbf16>,
    %78 = vector.extract_strided_slice %73 {offsets = [0, 2], sizes = [24, 128], strides = [1, 1]} : vector<24x136xbf16> to vector<24x128xbf16>
    %c48 = arith.constant 48 : index
    %c0_42 = arith.constant 0 : index
    %79 = vector.load %arg10[%c48, %c0_42] : memref<216x128xbf16, #tpu.memory_space<vmem>>, vector<24x128xbf16>
    tpu.vector_store %arg10[%c48, %c0_42], %78 {strides = array<i32>} : memref<216x128xbf16, #tpu.memory_space<vmem>>, vector<24x128xbf16>,
    %80 = vector.extract_strided_slice %73 {offsets = [0, 3], sizes = [24, 128], strides = [1, 1]} : vector<24x136xbf16> to vector<24x128xbf16>
    %c72 = arith.constant 72 : index
    %c0_43 = arith.constant 0 : index
    %81 = vector.load %arg10[%c72, %c0_43] : memref<216x128xbf16, #tpu.memory_space<vmem>>, vector<24x128xbf16>
    tpu.vector_store %arg10[%c72, %c0_43], %80 {strides = array<i32>} : memref<216x128xbf16, #tpu.memory_space<vmem>>, vector<24x128xbf16>,
    %82 = vector.extract_strided_slice %73 {offsets = [0, 4], sizes = [24, 128], strides = [1, 1]} : vector<24x136xbf16> to vector<24x128xbf16>
    %c96 = arith.constant 96 : index
    %c0_44 = arith.constant 0 : index
    %83 = vector.load %arg10[%c96, %c0_44] : memref<216x128xbf16, #tpu.memory_space<vmem>>, vector<24x128xbf16>
    tpu.vector_store %arg10[%c96, %c0_44], %82 {strides = array<i32>} : memref<216x128xbf16, #tpu.memory_space<vmem>>, vector<24x128xbf16>,
    %84 = vector.extract_strided_slice %73 {offsets = [0, 5], sizes = [24, 128], strides = [1, 1]} : vector<24x136xbf16> to vector<24x128xbf16>
    %c120_45 = arith.constant 120 : index
    %c0_46 = arith.constant 0 : index
    %85 = vector.load %arg10[%c120_45, %c0_46] : memref<216x128xbf16, #tpu.memory_space<vmem>>, vector<24x128xbf16>
    tpu.vector_store %arg10[%c120_45, %c0_46], %84 {strides = array<i32>} : memref<216x128xbf16, #tpu.memory_space<vmem>>, vector<24x128xbf16>,
    %86 = vector.extract_strided_slice %73 {offsets = [0, 6], sizes = [24, 128], strides = [1, 1]} : vector<24x136xbf16> to vector<24x128xbf16>
    %c144 = arith.constant 144 : index
    %c0_47 = arith.constant 0 : index
    %87 = vector.load %arg10[%c144, %c0_47] : memref<216x128xbf16, #tpu.memory_space<vmem>>, vector<24x128xbf16>
    tpu.vector_store %arg10[%c144, %c0_47], %86 {strides = array<i32>} : memref<216x128xbf16, #tpu.memory_space<vmem>>, vector<24x128xbf16>,
    %88 = vector.extract_strided_slice %73 {offsets = [0, 7], sizes = [24, 128], strides = [1, 1]} : vector<24x136xbf16> to vector<24x128xbf16>
    %c168 = arith.constant 168 : index
    %c0_48 = arith.constant 0 : index
    %89 = vector.load %arg10[%c168, %c0_48] : memref<216x128xbf16, #tpu.memory_space<vmem>>, vector<24x128xbf16>
    tpu.vector_store %arg10[%c168, %c0_48], %88 {strides = array<i32>} : memref<216x128xbf16, #tpu.memory_space<vmem>>, vector<24x128xbf16>,
    %90 = vector.extract_strided_slice %73 {offsets = [0, 8], sizes = [24, 128], strides = [1, 1]} : vector<24x136xbf16> to vector<24x128xbf16>
    %c192 = arith.constant 192 : index
    %c0_49 = arith.constant 0 : index
    %91 = vector.load %arg10[%c192, %c0_49] : memref<216x128xbf16, #tpu.memory_space<vmem>>, vector<24x128xbf16>
    tpu.vector_store %arg10[%c192, %c0_49], %90 {strides = array<i32>} : memref<216x128xbf16, #tpu.memory_space<vmem>>, vector<24x128xbf16>,
    %c0_50 = arith.constant 0 : index
    %c0_51 = arith.constant 0 : index
    %92 = vector.load %arg7[%c0_50, %c0_51] : memref<8x216xbf16, #tpu.memory_space<vmem>>, vector<8x216xbf16>
    %c0_52 = arith.constant 0 : index
    %c0_53 = arith.constant 0 : index
    %93 = vector.load %arg10[%c0_52, %c0_53] : memref<216x128xbf16, #tpu.memory_space<vmem>>, vector<216x128xbf16>
    %cst_54 = arith.constant dense<0.000000e+00> : vector<8x128xf32>
    %94 = tpu.matmul %92, %93, %cst_54 {dimension_numbers = #tpu.dot_dimension_numbers<[1], [0], [0], [1], [0, 0, 1, 1], [], []>} : vector<8x216xbf16>, vector<216x128xbf16>, vector<8x128xf32> -> vector<8x128xf32>
    %c128_i32_55 = arith.constant 128 : i32
    %95 = arith.muli %arg1, %c128_i32_55 : i32
    %96 = tpu.iota {dimensions = array<i32: 1>} : vector<1x128xi32>
    %97 = vector.broadcast %95 : i32 to vector<1x128xi32>
    %98 = arith.addi %97, %96 : vector<1x128xi32>
    %c16_i32_56 = arith.constant 16 : i32
    %99 = vector.broadcast %c16_i32_56 : i32 to vector<1x128xi32>
    %100 = arith.cmpi slt, %98, %99 : vector<1x128xi32>
    %cst_57 = arith.constant 0.000000e+00 : f32
    %101 = vector.shape_cast %100 : vector<1x128xi1> to vector<1x128xi1>
    %102 = vector.broadcast %101 : vector<1x128xi1> to vector<8x128xi1>
    %103 = vector.broadcast %cst_57 : f32 to vector<8x128xf32>
    %104 = arith.select %102, %94, %103 : vector<8x128xi1>, vector<8x128xf32>
    %cst_58 = arith.constant dense<0.000000e+00> : vector<8xf32>
    %105 = vector.multi_reduction <add>, %104, %cst_58 [1] : vector<8x128xf32> to vector<8xf32>
    %106 = vector.shape_cast %105 : vector<8xf32> to vector<8x1xf32>
    %107 = arith.mulf %104, %104 : vector<8x128xf32>
    %cst_59 = arith.constant dense<0.000000e+00> : vector<8xf32>
    %108 = vector.multi_reduction <add>, %107, %cst_59 [1] : vector<8x128xf32> to vector<8xf32>
    %109 = vector.shape_cast %108 : vector<8xf32> to vector<8x1xf32>
    %110 = tpu.concatenate %106, %109 in 1 : vector<8x1xf32>, vector<8x1xf32> -> vector<8x2xf32>
    %c0_60 = arith.constant 0 : index
    %c0_61 = arith.constant 0 : index
    %c0_62 = arith.constant 0 : index
    %c0_63 = arith.constant 0 : index
    %111 = vector.load %arg8[%c0_60, %c0_61, %c0_62, %c0_63] : memref<1x1x8x2xf32, #tpu.memory_space<vmem>>, vector<1x1x8x2xf32>
    %112 = vector.shape_cast %111 : vector<1x1x8x2xf32> to vector<8x2xf32>
    %113 = vector.shape_cast %110 : vector<8x2xf32> to vector<1x1x8x2xf32>
    tpu.vector_store %arg8[%c0_60, %c0_61, %c0_62, %c0_63], %113 {strides = array<i32>} : memref<1x1x8x2xf32, #tpu.memory_space<vmem>>, vector<1x1x8x2xf32>,
    return
  }
  func.func @transform_0(%arg0: i32, %arg1: i32) -> (i32, i32, i32) {
    %c0_i32 = arith.constant 0 : i32
    %c0_i32_0 = arith.constant 0 : i32
    return %arg0, %c0_i32, %arg1 : i32, i32, i32
  }
  func.func @transform_1(%arg0: i32, %arg1: i32) -> (i32, i32, i32) {
    %c1_i32 = arith.constant 1 : i32
    %0 = arith.addi %arg1, %c1_i32 : i32
    %c0_i32 = arith.constant 0 : i32
    %c0_i32_0 = arith.constant 0 : i32
    return %arg0, %c0_i32, %0 : i32, i32, i32
  }
  func.func @transform_2(%arg0: i32, %arg1: i32) -> (i32, i32) {
    %c0_i32 = arith.constant 0 : i32
    %c0_i32_0 = arith.constant 0 : i32
    %c0_i32_1 = arith.constant 0 : i32
    return %c0_i32, %c0_i32_0 : i32, i32
  }
  func.func @transform_3(%arg0: i32, %arg1: i32) -> (i32, i32) {
    %c0_i32 = arith.constant 0 : i32
    %c0_i32_0 = arith.constant 0 : i32
    %c0_i32_1 = arith.constant 0 : i32
    return %c0_i32, %c0_i32_0 : i32, i32
  }
  func.func @transform_4(%arg0: i32, %arg1: i32) -> (i32, i32) {
    %c0_i32 = arith.constant 0 : i32
    %c0_i32_0 = arith.constant 0 : i32
    %c0_i32_1 = arith.constant 0 : i32
    return %c0_i32, %c0_i32_0 : i32, i32
  }
  func.func @transform_5(%arg0: i32, %arg1: i32) -> (i32, i32) {
    %c0_i32 = arith.constant 0 : i32
    %c0_i32_0 = arith.constant 0 : i32
    %c0_i32_1 = arith.constant 0 : i32
    return %c0_i32, %c0_i32_0 : i32, i32
  }
  func.func @transform_6(%arg0: i32, %arg1: i32) -> (i32, i32, i32, i32) {
    %c0_i32 = arith.constant 0 : i32
    %c0_i32_0 = arith.constant 0 : i32
    %c0_i32_1 = arith.constant 0 : i32
    return %arg0, %arg1, %c0_i32, %c0_i32_0 : i32, i32, i32, i32
  }
}

module attributes {stable_mosaic.version = 11 : i64} {
  func.func @kernel(%arg0: i32, %arg1: i32, %arg2: memref<1x4x128xbf16, #tpu.memory_space<vmem>>, %arg3: memref<1x4x128xbf16, #tpu.memory_space<vmem>>, %arg4: memref<32x44xbf16, #tpu.memory_space<vmem>>, %arg5: memref<32x1xf32, #tpu.memory_space<vmem>>, %arg6: memref<32x1xf32, #tpu.memory_space<vmem>>, %arg7: memref<8x216xbf16, #tpu.memory_space<vmem>>, %arg8: memref<8x1xf32, #tpu.memory_space<vmem>>, %arg9: memref<8x1xf32, #tpu.memory_space<vmem>>, %arg10: memref<1x12x128xf32, #tpu.memory_space<vmem>>, %arg11: memref<44x136xbf16, #tpu.memory_space<vmem>>, %arg12: memref<216x128xbf16, #tpu.memory_space<vmem>>) attributes {dimension_semantics = [#tpu.dimension_semantics<parallel>, #tpu.dimension_semantics<parallel>], iteration_bounds = array<i64: 2, 1>, scalar_prefetch = 0 : i64, scratch_operands = 2 : i64, tpu.core_type = #tpu.core_type<tc>, window_params = [{transform_indices = @transform_0, window_bounds = array<i64: 1, 4, 128>}, {transform_indices = @transform_1, window_bounds = array<i64: 1, 4, 128>}, {pipeline_mode = #tpu.pipeline_mode<synchronous>, transform_indices = @transform_2, window_bounds = array<i64: 32, 44>}, {pipeline_mode = #tpu.pipeline_mode<synchronous>, transform_indices = @transform_3, window_bounds = array<i64: 32, 1>}, {pipeline_mode = #tpu.pipeline_mode<synchronous>, transform_indices = @transform_4, window_bounds = array<i64: 32, 1>}, {pipeline_mode = #tpu.pipeline_mode<synchronous>, transform_indices = @transform_5, window_bounds = array<i64: 8, 216>}, {pipeline_mode = #tpu.pipeline_mode<synchronous>, transform_indices = @transform_6, window_bounds = array<i64: 8, 1>}, {pipeline_mode = #tpu.pipeline_mode<synchronous>, transform_indices = @transform_7, window_bounds = array<i64: 8, 1>}, {transform_indices = @transform_8, window_bounds = array<i64: 1, 12, 128>}]} {
    %c0 = arith.constant 0 : index
    %c0_0 = arith.constant 0 : index
    %c0_1 = arith.constant 0 : index
    %0 = vector.load %arg2[%c0, %c0_0, %c0_1] : memref<1x4x128xbf16, #tpu.memory_space<vmem>>, vector<1x4x128xbf16>
    %1 = vector.shape_cast %0 : vector<1x4x128xbf16> to vector<4x128xbf16>
    %c0_2 = arith.constant 0 : index
    %c0_3 = arith.constant 0 : index
    %c0_4 = arith.constant 0 : index
    %2 = vector.load %arg3[%c0_2, %c0_3, %c0_4] : memref<1x4x128xbf16, #tpu.memory_space<vmem>>, vector<1x4x128xbf16>
    %3 = vector.shape_cast %2 : vector<1x4x128xbf16> to vector<4x128xbf16>
    %c0_5 = arith.constant 0 : index
    %c0_6 = arith.constant 0 : index
    %4 = vector.load %arg11[%c0_5, %c0_6] : memref<44x136xbf16, #tpu.memory_space<vmem>>, vector<4x128xbf16>
    tpu.vector_store %arg11[%c0_5, %c0_6], %1 {strides = array<i32>} : memref<44x136xbf16, #tpu.memory_space<vmem>>, vector<4x128xbf16>,
    %5 = vector.extract_strided_slice %3 {offsets = [0, 0], sizes = [4, 8], strides = [1, 1]} : vector<4x128xbf16> to vector<4x8xbf16>
    %c0_7 = arith.constant 0 : index
    %c128 = arith.constant 128 : index
    %6 = vector.load %arg11[%c0_7, %c128] : memref<44x136xbf16, #tpu.memory_space<vmem>>, vector<4x8xbf16>
    tpu.vector_store %arg11[%c0_7, %c128], %5 {strides = array<i32>} : memref<44x136xbf16, #tpu.memory_space<vmem>>, vector<4x8xbf16>,
    %7 = vector.extract_strided_slice %1 {offsets = [0, 1], sizes = [4, 127], strides = [1, 1]} : vector<4x128xbf16> to vector<4x127xbf16>
    %c4 = arith.constant 4 : index
    %c0_8 = arith.constant 0 : index
    %8 = vector.load %arg11[%c4, %c0_8] : memref<44x136xbf16, #tpu.memory_space<vmem>>, vector<4x127xbf16>
    tpu.vector_store %arg11[%c4, %c0_8], %7 {strides = array<i32>} : memref<44x136xbf16, #tpu.memory_space<vmem>>, vector<4x127xbf16>,
    %9 = vector.extract_strided_slice %3 {offsets = [0, 0], sizes = [4, 9], strides = [1, 1]} : vector<4x128xbf16> to vector<4x9xbf16>
    %c4_9 = arith.constant 4 : index
    %c127 = arith.constant 127 : index
    %10 = vector.load %arg11[%c4_9, %c127] : memref<44x136xbf16, #tpu.memory_space<vmem>>, vector<4x9xbf16>
    tpu.vector_store %arg11[%c4_9, %c127], %9 {strides = array<i32>} : memref<44x136xbf16, #tpu.memory_space<vmem>>, vector<4x9xbf16>,
    %11 = vector.extract_strided_slice %1 {offsets = [0, 2], sizes = [4, 126], strides = [1, 1]} : vector<4x128xbf16> to vector<4x126xbf16>
    %c8 = arith.constant 8 : index
    %c0_10 = arith.constant 0 : index
    %12 = vector.load %arg11[%c8, %c0_10] : memref<44x136xbf16, #tpu.memory_space<vmem>>, vector<4x126xbf16>
    tpu.vector_store %arg11[%c8, %c0_10], %11 {strides = array<i32>} : memref<44x136xbf16, #tpu.memory_space<vmem>>, vector<4x126xbf16>,
    %13 = vector.extract_strided_slice %3 {offsets = [0, 0], sizes = [4, 10], strides = [1, 1]} : vector<4x128xbf16> to vector<4x10xbf16>
    %c8_11 = arith.constant 8 : index
    %c126 = arith.constant 126 : index
    %14 = vector.load %arg11[%c8_11, %c126] : memref<44x136xbf16, #tpu.memory_space<vmem>>, vector<4x10xbf16>
    tpu.vector_store %arg11[%c8_11, %c126], %13 {strides = array<i32>} : memref<44x136xbf16, #tpu.memory_space<vmem>>, vector<4x10xbf16>,
    %15 = vector.extract_strided_slice %1 {offsets = [0, 3], sizes = [4, 125], strides = [1, 1]} : vector<4x128xbf16> to vector<4x125xbf16>
    %c12 = arith.constant 12 : index
    %c0_12 = arith.constant 0 : index
    %16 = vector.load %arg11[%c12, %c0_12] : memref<44x136xbf16, #tpu.memory_space<vmem>>, vector<4x125xbf16>
    tpu.vector_store %arg11[%c12, %c0_12], %15 {strides = array<i32>} : memref<44x136xbf16, #tpu.memory_space<vmem>>, vector<4x125xbf16>,
    %17 = vector.extract_strided_slice %3 {offsets = [0, 0], sizes = [4, 11], strides = [1, 1]} : vector<4x128xbf16> to vector<4x11xbf16>
    %c12_13 = arith.constant 12 : index
    %c125 = arith.constant 125 : index
    %18 = vector.load %arg11[%c12_13, %c125] : memref<44x136xbf16, #tpu.memory_space<vmem>>, vector<4x11xbf16>
    tpu.vector_store %arg11[%c12_13, %c125], %17 {strides = array<i32>} : memref<44x136xbf16, #tpu.memory_space<vmem>>, vector<4x11xbf16>,
    %19 = vector.extract_strided_slice %1 {offsets = [0, 4], sizes = [4, 124], strides = [1, 1]} : vector<4x128xbf16> to vector<4x124xbf16>
    %c16 = arith.constant 16 : index
    %c0_14 = arith.constant 0 : index
    %20 = vector.load %arg11[%c16, %c0_14] : memref<44x136xbf16, #tpu.memory_space<vmem>>, vector<4x124xbf16>
    tpu.vector_store %arg11[%c16, %c0_14], %19 {strides = array<i32>} : memref<44x136xbf16, #tpu.memory_space<vmem>>, vector<4x124xbf16>,
    %21 = vector.extract_strided_slice %3 {offsets = [0, 0], sizes = [4, 12], strides = [1, 1]} : vector<4x128xbf16> to vector<4x12xbf16>
    %c16_15 = arith.constant 16 : index
    %c124 = arith.constant 124 : index
    %22 = vector.load %arg11[%c16_15, %c124] : memref<44x136xbf16, #tpu.memory_space<vmem>>, vector<4x12xbf16>
    tpu.vector_store %arg11[%c16_15, %c124], %21 {strides = array<i32>} : memref<44x136xbf16, #tpu.memory_space<vmem>>, vector<4x12xbf16>,
    %23 = vector.extract_strided_slice %1 {offsets = [0, 5], sizes = [4, 123], strides = [1, 1]} : vector<4x128xbf16> to vector<4x123xbf16>
    %c20 = arith.constant 20 : index
    %c0_16 = arith.constant 0 : index
    %24 = vector.load %arg11[%c20, %c0_16] : memref<44x136xbf16, #tpu.memory_space<vmem>>, vector<4x123xbf16>
    tpu.vector_store %arg11[%c20, %c0_16], %23 {strides = array<i32>} : memref<44x136xbf16, #tpu.memory_space<vmem>>, vector<4x123xbf16>,
    %25 = vector.extract_strided_slice %3 {offsets = [0, 0], sizes = [4, 13], strides = [1, 1]} : vector<4x128xbf16> to vector<4x13xbf16>
    %c20_17 = arith.constant 20 : index
    %c123 = arith.constant 123 : index
    %26 = vector.load %arg11[%c20_17, %c123] : memref<44x136xbf16, #tpu.memory_space<vmem>>, vector<4x13xbf16>
    tpu.vector_store %arg11[%c20_17, %c123], %25 {strides = array<i32>} : memref<44x136xbf16, #tpu.memory_space<vmem>>, vector<4x13xbf16>,
    %27 = vector.extract_strided_slice %1 {offsets = [0, 6], sizes = [4, 122], strides = [1, 1]} : vector<4x128xbf16> to vector<4x122xbf16>
    %c24 = arith.constant 24 : index
    %c0_18 = arith.constant 0 : index
    %28 = vector.load %arg11[%c24, %c0_18] : memref<44x136xbf16, #tpu.memory_space<vmem>>, vector<4x122xbf16>
    tpu.vector_store %arg11[%c24, %c0_18], %27 {strides = array<i32>} : memref<44x136xbf16, #tpu.memory_space<vmem>>, vector<4x122xbf16>,
    %29 = vector.extract_strided_slice %3 {offsets = [0, 0], sizes = [4, 14], strides = [1, 1]} : vector<4x128xbf16> to vector<4x14xbf16>
    %c24_19 = arith.constant 24 : index
    %c122 = arith.constant 122 : index
    %30 = vector.load %arg11[%c24_19, %c122] : memref<44x136xbf16, #tpu.memory_space<vmem>>, vector<4x14xbf16>
    tpu.vector_store %arg11[%c24_19, %c122], %29 {strides = array<i32>} : memref<44x136xbf16, #tpu.memory_space<vmem>>, vector<4x14xbf16>,
    %31 = vector.extract_strided_slice %1 {offsets = [0, 7], sizes = [4, 121], strides = [1, 1]} : vector<4x128xbf16> to vector<4x121xbf16>
    %c28 = arith.constant 28 : index
    %c0_20 = arith.constant 0 : index
    %32 = vector.load %arg11[%c28, %c0_20] : memref<44x136xbf16, #tpu.memory_space<vmem>>, vector<4x121xbf16>
    tpu.vector_store %arg11[%c28, %c0_20], %31 {strides = array<i32>} : memref<44x136xbf16, #tpu.memory_space<vmem>>, vector<4x121xbf16>,
    %33 = vector.extract_strided_slice %3 {offsets = [0, 0], sizes = [4, 15], strides = [1, 1]} : vector<4x128xbf16> to vector<4x15xbf16>
    %c28_21 = arith.constant 28 : index
    %c121 = arith.constant 121 : index
    %34 = vector.load %arg11[%c28_21, %c121] : memref<44x136xbf16, #tpu.memory_space<vmem>>, vector<4x15xbf16>
    tpu.vector_store %arg11[%c28_21, %c121], %33 {strides = array<i32>} : memref<44x136xbf16, #tpu.memory_space<vmem>>, vector<4x15xbf16>,
    %35 = vector.extract_strided_slice %1 {offsets = [0, 8], sizes = [4, 120], strides = [1, 1]} : vector<4x128xbf16> to vector<4x120xbf16>
    %c32 = arith.constant 32 : index
    %c0_22 = arith.constant 0 : index
    %36 = vector.load %arg11[%c32, %c0_22] : memref<44x136xbf16, #tpu.memory_space<vmem>>, vector<4x120xbf16>
    tpu.vector_store %arg11[%c32, %c0_22], %35 {strides = array<i32>} : memref<44x136xbf16, #tpu.memory_space<vmem>>, vector<4x120xbf16>,
    %37 = vector.extract_strided_slice %3 {offsets = [0, 0], sizes = [4, 16], strides = [1, 1]} : vector<4x128xbf16> to vector<4x16xbf16>
    %c32_23 = arith.constant 32 : index
    %c120 = arith.constant 120 : index
    %38 = vector.load %arg11[%c32_23, %c120] : memref<44x136xbf16, #tpu.memory_space<vmem>>, vector<4x16xbf16>
    tpu.vector_store %arg11[%c32_23, %c120], %37 {strides = array<i32>} : memref<44x136xbf16, #tpu.memory_space<vmem>>, vector<4x16xbf16>,
    %39 = vector.extract_strided_slice %1 {offsets = [0, 9], sizes = [4, 119], strides = [1, 1]} : vector<4x128xbf16> to vector<4x119xbf16>
    %c36 = arith.constant 36 : index
    %c0_24 = arith.constant 0 : index
    %40 = vector.load %arg11[%c36, %c0_24] : memref<44x136xbf16, #tpu.memory_space<vmem>>, vector<4x119xbf16>
    tpu.vector_store %arg11[%c36, %c0_24], %39 {strides = array<i32>} : memref<44x136xbf16, #tpu.memory_space<vmem>>, vector<4x119xbf16>,
    %41 = vector.extract_strided_slice %3 {offsets = [0, 0], sizes = [4, 17], strides = [1, 1]} : vector<4x128xbf16> to vector<4x17xbf16>
    %c36_25 = arith.constant 36 : index
    %c119 = arith.constant 119 : index
    %42 = vector.load %arg11[%c36_25, %c119] : memref<44x136xbf16, #tpu.memory_space<vmem>>, vector<4x17xbf16>
    tpu.vector_store %arg11[%c36_25, %c119], %41 {strides = array<i32>} : memref<44x136xbf16, #tpu.memory_space<vmem>>, vector<4x17xbf16>,
    %43 = vector.extract_strided_slice %1 {offsets = [0, 10], sizes = [4, 118], strides = [1, 1]} : vector<4x128xbf16> to vector<4x118xbf16>
    %c40 = arith.constant 40 : index
    %c0_26 = arith.constant 0 : index
    %44 = vector.load %arg11[%c40, %c0_26] : memref<44x136xbf16, #tpu.memory_space<vmem>>, vector<4x118xbf16>
    tpu.vector_store %arg11[%c40, %c0_26], %43 {strides = array<i32>} : memref<44x136xbf16, #tpu.memory_space<vmem>>, vector<4x118xbf16>,
    %45 = vector.extract_strided_slice %3 {offsets = [0, 0], sizes = [4, 18], strides = [1, 1]} : vector<4x128xbf16> to vector<4x18xbf16>
    %c40_27 = arith.constant 40 : index
    %c118 = arith.constant 118 : index
    %46 = vector.load %arg11[%c40_27, %c118] : memref<44x136xbf16, #tpu.memory_space<vmem>>, vector<4x18xbf16>
    tpu.vector_store %arg11[%c40_27, %c118], %45 {strides = array<i32>} : memref<44x136xbf16, #tpu.memory_space<vmem>>, vector<4x18xbf16>,
    %c0_28 = arith.constant 0 : index
    %c0_29 = arith.constant 0 : index
    %47 = vector.load %arg4[%c0_28, %c0_29] : memref<32x44xbf16, #tpu.memory_space<vmem>>, vector<32x44xbf16>
    %c0_30 = arith.constant 0 : index
    %c0_31 = arith.constant 0 : index
    %48 = vector.load %arg11[%c0_30, %c0_31] : memref<44x136xbf16, #tpu.memory_space<vmem>>, vector<44x136xbf16>
    %cst = arith.constant dense<0.000000e+00> : vector<32x136xf32>
    %49 = tpu.matmul %47, %48, %cst {dimension_numbers = #tpu.dot_dimension_numbers<[1], [0], [0], [1], [0, 0, 1, 1], [], []>} : vector<32x44xbf16>, vector<44x136xbf16>, vector<32x136xf32> -> vector<32x136xf32>
    %c0_32 = arith.constant 0 : index
    %c0_33 = arith.constant 0 : index
    %50 = vector.load %arg5[%c0_32, %c0_33] : memref<32x1xf32, #tpu.memory_space<vmem>>, vector<32x1xf32>
    %51 = vector.broadcast %50 : vector<32x1xf32> to vector<32x136xf32>
    %52 = arith.mulf %49, %51 : vector<32x136xf32>
    %c0_34 = arith.constant 0 : index
    %c0_35 = arith.constant 0 : index
    %53 = vector.load %arg6[%c0_34, %c0_35] : memref<32x1xf32, #tpu.memory_space<vmem>>, vector<32x1xf32>
    %54 = vector.broadcast %53 : vector<32x1xf32> to vector<32x136xf32>
    %55 = arith.addf %52, %54 : vector<32x136xf32>
    %cst_36 = arith.constant 0.000000e+00 : f32
    %56 = vector.broadcast %cst_36 : f32 to vector<32x136xf32>
    %57 = arith.maximumf %55, %56 : vector<32x136xf32>
    %c128_i32 = arith.constant 128 : i32
    %58 = arith.muli %arg1, %c128_i32 : i32
    %c4_i32 = arith.constant 4 : i32
    %59 = arith.subi %58, %c4_i32 : i32
    %60 = tpu.iota {dimensions = array<i32: 1>} : vector<1x136xi32>
    %61 = vector.broadcast %59 : i32 to vector<1x136xi32>
    %62 = arith.addi %61, %60 : vector<1x136xi32>
    %c0_i32 = arith.constant 0 : i32
    %63 = vector.broadcast %c0_i32 : i32 to vector<1x136xi32>
    %64 = arith.cmpi sge, %62, %63 : vector<1x136xi32>
    %c16_i32 = arith.constant 16 : i32
    %65 = vector.broadcast %c16_i32 : i32 to vector<1x136xi32>
    %66 = arith.cmpi slt, %62, %65 : vector<1x136xi32>
    %67 = arith.andi %64, %66 : vector<1x136xi1>
    %68 = vector.extract_strided_slice %57 {offsets = [0, 0], sizes = [24, 136], strides = [1, 1]} : vector<32x136xf32> to vector<24x136xf32>
    %cst_37 = arith.constant 0.000000e+00 : f32
    %69 = vector.shape_cast %67 : vector<1x136xi1> to vector<1x136xi1>
    %70 = vector.broadcast %69 : vector<1x136xi1> to vector<24x136xi1>
    %71 = vector.broadcast %cst_37 : f32 to vector<24x136xf32>
    %72 = arith.select %70, %68, %71 : vector<24x136xi1>, vector<24x136xf32>
    %73 = arith.truncf %72 : vector<24x136xf32> to vector<24x136xbf16>
    %74 = vector.extract_strided_slice %73 {offsets = [0, 0], sizes = [24, 128], strides = [1, 1]} : vector<24x136xbf16> to vector<24x128xbf16>
    %c0_38 = arith.constant 0 : index
    %c0_39 = arith.constant 0 : index
    %75 = vector.load %arg12[%c0_38, %c0_39] : memref<216x128xbf16, #tpu.memory_space<vmem>>, vector<24x128xbf16>
    tpu.vector_store %arg12[%c0_38, %c0_39], %74 {strides = array<i32>} : memref<216x128xbf16, #tpu.memory_space<vmem>>, vector<24x128xbf16>,
    %76 = vector.extract_strided_slice %73 {offsets = [0, 1], sizes = [24, 128], strides = [1, 1]} : vector<24x136xbf16> to vector<24x128xbf16>
    %c24_40 = arith.constant 24 : index
    %c0_41 = arith.constant 0 : index
    %77 = vector.load %arg12[%c24_40, %c0_41] : memref<216x128xbf16, #tpu.memory_space<vmem>>, vector<24x128xbf16>
    tpu.vector_store %arg12[%c24_40, %c0_41], %76 {strides = array<i32>} : memref<216x128xbf16, #tpu.memory_space<vmem>>, vector<24x128xbf16>,
    %78 = vector.extract_strided_slice %73 {offsets = [0, 2], sizes = [24, 128], strides = [1, 1]} : vector<24x136xbf16> to vector<24x128xbf16>
    %c48 = arith.constant 48 : index
    %c0_42 = arith.constant 0 : index
    %79 = vector.load %arg12[%c48, %c0_42] : memref<216x128xbf16, #tpu.memory_space<vmem>>, vector<24x128xbf16>
    tpu.vector_store %arg12[%c48, %c0_42], %78 {strides = array<i32>} : memref<216x128xbf16, #tpu.memory_space<vmem>>, vector<24x128xbf16>,
    %80 = vector.extract_strided_slice %73 {offsets = [0, 3], sizes = [24, 128], strides = [1, 1]} : vector<24x136xbf16> to vector<24x128xbf16>
    %c72 = arith.constant 72 : index
    %c0_43 = arith.constant 0 : index
    %81 = vector.load %arg12[%c72, %c0_43] : memref<216x128xbf16, #tpu.memory_space<vmem>>, vector<24x128xbf16>
    tpu.vector_store %arg12[%c72, %c0_43], %80 {strides = array<i32>} : memref<216x128xbf16, #tpu.memory_space<vmem>>, vector<24x128xbf16>,
    %82 = vector.extract_strided_slice %73 {offsets = [0, 4], sizes = [24, 128], strides = [1, 1]} : vector<24x136xbf16> to vector<24x128xbf16>
    %c96 = arith.constant 96 : index
    %c0_44 = arith.constant 0 : index
    %83 = vector.load %arg12[%c96, %c0_44] : memref<216x128xbf16, #tpu.memory_space<vmem>>, vector<24x128xbf16>
    tpu.vector_store %arg12[%c96, %c0_44], %82 {strides = array<i32>} : memref<216x128xbf16, #tpu.memory_space<vmem>>, vector<24x128xbf16>,
    %84 = vector.extract_strided_slice %73 {offsets = [0, 5], sizes = [24, 128], strides = [1, 1]} : vector<24x136xbf16> to vector<24x128xbf16>
    %c120_45 = arith.constant 120 : index
    %c0_46 = arith.constant 0 : index
    %85 = vector.load %arg12[%c120_45, %c0_46] : memref<216x128xbf16, #tpu.memory_space<vmem>>, vector<24x128xbf16>
    tpu.vector_store %arg12[%c120_45, %c0_46], %84 {strides = array<i32>} : memref<216x128xbf16, #tpu.memory_space<vmem>>, vector<24x128xbf16>,
    %86 = vector.extract_strided_slice %73 {offsets = [0, 6], sizes = [24, 128], strides = [1, 1]} : vector<24x136xbf16> to vector<24x128xbf16>
    %c144 = arith.constant 144 : index
    %c0_47 = arith.constant 0 : index
    %87 = vector.load %arg12[%c144, %c0_47] : memref<216x128xbf16, #tpu.memory_space<vmem>>, vector<24x128xbf16>
    tpu.vector_store %arg12[%c144, %c0_47], %86 {strides = array<i32>} : memref<216x128xbf16, #tpu.memory_space<vmem>>, vector<24x128xbf16>,
    %88 = vector.extract_strided_slice %73 {offsets = [0, 7], sizes = [24, 128], strides = [1, 1]} : vector<24x136xbf16> to vector<24x128xbf16>
    %c168 = arith.constant 168 : index
    %c0_48 = arith.constant 0 : index
    %89 = vector.load %arg12[%c168, %c0_48] : memref<216x128xbf16, #tpu.memory_space<vmem>>, vector<24x128xbf16>
    tpu.vector_store %arg12[%c168, %c0_48], %88 {strides = array<i32>} : memref<216x128xbf16, #tpu.memory_space<vmem>>, vector<24x128xbf16>,
    %90 = vector.extract_strided_slice %73 {offsets = [0, 8], sizes = [24, 128], strides = [1, 1]} : vector<24x136xbf16> to vector<24x128xbf16>
    %c192 = arith.constant 192 : index
    %c0_49 = arith.constant 0 : index
    %91 = vector.load %arg12[%c192, %c0_49] : memref<216x128xbf16, #tpu.memory_space<vmem>>, vector<24x128xbf16>
    tpu.vector_store %arg12[%c192, %c0_49], %90 {strides = array<i32>} : memref<216x128xbf16, #tpu.memory_space<vmem>>, vector<24x128xbf16>,
    %c0_50 = arith.constant 0 : index
    %c0_51 = arith.constant 0 : index
    %92 = vector.load %arg7[%c0_50, %c0_51] : memref<8x216xbf16, #tpu.memory_space<vmem>>, vector<8x216xbf16>
    %c0_52 = arith.constant 0 : index
    %c0_53 = arith.constant 0 : index
    %93 = vector.load %arg12[%c0_52, %c0_53] : memref<216x128xbf16, #tpu.memory_space<vmem>>, vector<216x128xbf16>
    %cst_54 = arith.constant dense<0.000000e+00> : vector<8x128xf32>
    %94 = tpu.matmul %92, %93, %cst_54 {dimension_numbers = #tpu.dot_dimension_numbers<[1], [0], [0], [1], [0, 0, 1, 1], [], []>} : vector<8x216xbf16>, vector<216x128xbf16>, vector<8x128xf32> -> vector<8x128xf32>
    %c0_55 = arith.constant 0 : index
    %c0_56 = arith.constant 0 : index
    %95 = vector.load %arg8[%c0_55, %c0_56] : memref<8x1xf32, #tpu.memory_space<vmem>>, vector<8x1xf32>
    %96 = vector.broadcast %95 : vector<8x1xf32> to vector<8x128xf32>
    %97 = arith.mulf %94, %96 : vector<8x128xf32>
    %c0_57 = arith.constant 0 : index
    %c0_58 = arith.constant 0 : index
    %98 = vector.load %arg9[%c0_57, %c0_58] : memref<8x1xf32, #tpu.memory_space<vmem>>, vector<8x1xf32>
    %99 = vector.broadcast %98 : vector<8x1xf32> to vector<8x128xf32>
    %100 = arith.addf %97, %99 : vector<8x128xf32>
    %cst_59 = arith.constant 0.000000e+00 : f32
    %101 = vector.broadcast %cst_59 : f32 to vector<8x128xf32>
    %102 = arith.maximumf %100, %101 : vector<8x128xf32>
    %103 = vector.extract_strided_slice %57 {offsets = [24, 4], sizes = [4, 128], strides = [1, 1]} : vector<32x136xf32> to vector<4x128xf32>
    %c0_60 = arith.constant 0 : index
    %c0_61 = arith.constant 0 : index
    %c0_62 = arith.constant 0 : index
    %104 = vector.load %arg10[%c0_60, %c0_61, %c0_62] : memref<1x12x128xf32, #tpu.memory_space<vmem>>, vector<1x8x128xf32>
    %105 = vector.shape_cast %104 : vector<1x8x128xf32> to vector<8x128xf32>
    %106 = vector.shape_cast %102 : vector<8x128xf32> to vector<1x8x128xf32>
    tpu.vector_store %arg10[%c0_60, %c0_61, %c0_62], %106 {strides = array<i32>} : memref<1x12x128xf32, #tpu.memory_space<vmem>>, vector<1x8x128xf32>,
    %c0_63 = arith.constant 0 : index
    %c8_64 = arith.constant 8 : index
    %c0_65 = arith.constant 0 : index
    %107 = vector.load %arg10[%c0_63, %c8_64, %c0_65] : memref<1x12x128xf32, #tpu.memory_space<vmem>>, vector<1x4x128xf32>
    %108 = vector.shape_cast %107 : vector<1x4x128xf32> to vector<4x128xf32>
    %109 = vector.shape_cast %103 : vector<4x128xf32> to vector<1x4x128xf32>
    tpu.vector_store %arg10[%c0_63, %c8_64, %c0_65], %109 {strides = array<i32>} : memref<1x12x128xf32, #tpu.memory_space<vmem>>, vector<1x4x128xf32>,
    return
  }
  func.func @transform_0(%arg0: i32, %arg1: i32) -> (i32, i32, i32) {
    %c0_i32 = arith.constant 0 : i32
    %c0_i32_0 = arith.constant 0 : i32
    return %arg0, %c0_i32, %arg1 : i32, i32, i32
  }
  func.func @transform_1(%arg0: i32, %arg1: i32) -> (i32, i32, i32) {
    %c1_i32 = arith.constant 1 : i32
    %0 = arith.addi %arg1, %c1_i32 : i32
    %c0_i32 = arith.constant 0 : i32
    %c0_i32_0 = arith.constant 0 : i32
    return %arg0, %c0_i32, %0 : i32, i32, i32
  }
  func.func @transform_2(%arg0: i32, %arg1: i32) -> (i32, i32) {
    %c0_i32 = arith.constant 0 : i32
    %c0_i32_0 = arith.constant 0 : i32
    %c0_i32_1 = arith.constant 0 : i32
    return %c0_i32, %c0_i32_0 : i32, i32
  }
  func.func @transform_3(%arg0: i32, %arg1: i32) -> (i32, i32) {
    %c0_i32 = arith.constant 0 : i32
    %c0_i32_0 = arith.constant 0 : i32
    %c0_i32_1 = arith.constant 0 : i32
    return %c0_i32, %c0_i32_0 : i32, i32
  }
  func.func @transform_4(%arg0: i32, %arg1: i32) -> (i32, i32) {
    %c0_i32 = arith.constant 0 : i32
    %c0_i32_0 = arith.constant 0 : i32
    %c0_i32_1 = arith.constant 0 : i32
    return %c0_i32, %c0_i32_0 : i32, i32
  }
  func.func @transform_5(%arg0: i32, %arg1: i32) -> (i32, i32) {
    %c0_i32 = arith.constant 0 : i32
    %c0_i32_0 = arith.constant 0 : i32
    %c0_i32_1 = arith.constant 0 : i32
    return %c0_i32, %c0_i32_0 : i32, i32
  }
  func.func @transform_6(%arg0: i32, %arg1: i32) -> (i32, i32) {
    %c0_i32 = arith.constant 0 : i32
    %c0_i32_0 = arith.constant 0 : i32
    %c0_i32_1 = arith.constant 0 : i32
    return %c0_i32, %c0_i32_0 : i32, i32
  }
  func.func @transform_7(%arg0: i32, %arg1: i32) -> (i32, i32) {
    %c0_i32 = arith.constant 0 : i32
    %c0_i32_0 = arith.constant 0 : i32
    %c0_i32_1 = arith.constant 0 : i32
    return %c0_i32, %c0_i32_0 : i32, i32
  }
  func.func @transform_8(%arg0: i32, %arg1: i32) -> (i32, i32, i32) {
    %c0_i32 = arith.constant 0 : i32
    %c0_i32_0 = arith.constant 0 : i32
    return %arg0, %c0_i32, %arg1 : i32, i32, i32
  }
}

</mosaic_0001>

<llo_original>
// kernel: imsf_block_forward.3
$region0: #{imsf_block_forward.3}
  #allocation0 [shape = 'u32[]', space=smem, size = 0x4, offset = 0x4, fixed_abs, tag = 'smem constant byte address 0x4 - core index']
  #allocation1 [shape = 'u32[144,128]{1,0:T(1,128)}', space=vmem, size = 0x12000, scoped, tag = 'internal scratch']
  #allocation2 [shape = 'bf16[44,136]{1,0:T(8,128)(2,1)}', space=vmem, size = 0x6000, scoped, tag = 'scratch operand']
  %s0 = inlined_call_operand.vmem [shape: bf16[2,4,256], index: 0, kind: input, shape index: {}, may-alias: {0,1}]
  %s1 = inlined_call_operand.vmem [shape: bf16[2,4,256], index: 1, kind: input, shape index: {}, may-alias: {0,1}]
  %s2 = inlined_call_operand.vmem [shape: bf16[32,44], index: 2, kind: input, shape index: {}]
  %s3 = inlined_call_operand.vmem [shape: f32[2,1,32,2], index: 3, kind: output, shape index: {}]
  %s4 = sld [smem:[#allocation0]]
  $region45: #{imsf_block_forward.3} parent=0
    _
  %s6 = ssub.s32 1, %s4
  %s7 = scalar_select 0, %s6, %s4
  loop: start=0, step=1, limit=4
  $region2: #{imsf_block_forward.3} parent=0 // loop_pre_header
    _
  $region3: #{imsf_block_forward.3} parent=0 // loop_header
    %s9 = sphi 0, %s13
    %p10 = scmp.ge.s32.totalorder %s9, 4
    %s16 = sphi 0, %s28
    %s17 = sphi 0, %s24
    %s18 = sphi 0, %s16
    %s19 = sphi 0, %s17
    %s20 = sphi 0, %s18
    %s21 = sphi 0, %s19
    %s33 = sphi 0, %s35
    %s36 = sphi 0, %s33
    %s37 = sphi 0, %s36
    %s53 = sphi 0, %s37
    %s63 = sphi 0, %s65
    %s66 = sphi 0, %s63
    %s67 = sphi 0, %s66
    %s83 = sphi 0, %s67
    %s87 = sphi 0, %s87
    %s89 = sphi 0, %s87
    %s90 = sphi 0, %s89
    %s104 = sphi 0, %s90
    %s112 = sphi 0, %s114
    %s115 = sphi 0, %s112
    %s116 = sphi 0, %s115
    %s132 = sphi 0, %s116
  $region4: #{imsf_block_forward.3} parent=0 // loop_header_branch
    %12 = sbr.rel (%p10) target = $region8
  $region5: #{imsf_block_forward.3} parent=0 // loop_body
    %s14 = ssub.s32 %s9, 1
    %s15 = ssub.s32 %s9, 2
    %s22 = sadd.s32 1, %s17
    %p23 = scmp.ge.s32.totalorder %s22, 1
    %s24 = scalar_select %p23, 0, %s22
    %s25 = sadd.s32 1, %s16
    %s26 = scalar_select %p23, %s25, %s16
    %p27 = scmp.ge.s32.totalorder %s26, 2
    %s28 = scalar_select %p27, 0, %s26
    %s29 = ssub.s32 %s16, %s28
    %s30 = ssub.s32 %s17, %s24
    %s31 = sor.u32 %s29, %s30
    %p32 = scmp.eq.s32.totalorder %s31, 0
    %s34 = sadd.s32 %s33, 1
    %s35 = scalar_select %p32, %s33, %s34
    %p38 = pneg %p32
    %p39 = scmp.eq.s32.totalorder %s9, 1
    %p40 = por %p38, %p39
    %p41 = scmp.ne.s32.totalorder %s33, %s36
    %p42 = scmp.eq.s32.totalorder %s9, 0
    %p43 = por %p41, %p42
    %p44 = scmp.ne.s32.totalorder %s33, %s36
    %p45 = scmp.eq.s32.totalorder %s14, 1
    %p46 = por %p44, %p45
    %p47 = scmp.ne.s32.totalorder %s36, %s37
    %p48 = scmp.eq.s32.totalorder %s14, 0
    %p49 = por %p47, %p48
    %p50 = scmp.ne.s32.totalorder %s36, %s37
    %p51 = scmp.eq.s32.totalorder %s15, 1
    %p52 = por %p50, %p51
    %p54 = scmp.ne.s32.totalorder %s37, %s53
    %p55 = scmp.eq.s32.totalorder %s15, 0
    %p56 = por %p54, %p55
    %s57 = sadd.s32 %s17, 1
    %s58 = sadd.s32 %s24, 1
    %s59 = ssub.s32 %s16, %s28
    %s60 = ssub.s32 %s57, %s58
    %s61 = sor.u32 %s59, %s60
    %p62 = scmp.eq.s32.totalorder %s61, 0
    %s64 = sadd.s32 %s63, 1
    %s65 = scalar_select %p62, %s63, %s64
    %p68 = pneg %p62
    %p69 = scmp.eq.s32.totalorder %s9, 1
    %p70 = por %p68, %p69
    %p71 = scmp.ne.s32.totalorder %s63, %s66
    %p72 = scmp.eq.s32.totalorder %s9, 0
    %p73 = por %p71, %p72
    %p74 = scmp.ne.s32.totalorder %s63, %s66
    %p75 = scmp.eq.s32.totalorder %s14, 1
    %p76 = por %p74, %p75
    %p77 = scmp.ne.s32.totalorder %s66, %s67
    %p78 = scmp.eq.s32.totalorder %s14, 0
    %p79 = por %p77, %p78
    %p80 = scmp.ne.s32.totalorder %s66, %s67
    %p81 = scmp.eq.s32.totalorder %s15, 1
    %p82 = por %p80, %p81
    %p84 = scmp.ne.s32.totalorder %s67, %s83
    %p85 = scmp.eq.s32.totalorder %s15, 0
    %p86 = por %p84, %p85
    %s88 = sadd.s32 %s87, 1
    %p91 = scmp.eq.s32.totalorder %s9, 1
    %p92 = scmp.ne.s32.totalorder %s87, %s89
    %p93 = scmp.eq.s32.totalorder %s9, 0
    %p94 = por %p92, %p93
    %p95 = scmp.ne.s32.totalorder %s87, %s89
    %p96 = scmp.eq.s32.totalorder %s14, 1
    %p97 = por %p95, %p96
    %p98 = scmp.ne.s32.totalorder %s89, %s90
    %p99 = scmp.eq.s32.totalorder %s14, 0
    %p100 = por %p98, %p99
    %p101 = scmp.ne.s32.totalorder %s89, %s90
    %p102 = scmp.eq.s32.totalorder %s15, 1
    %p103 = por %p101, %p102
    %p105 = scmp.ne.s32.totalorder %s90, %s104
    %p106 = scmp.eq.s32.totalorder %s15, 0
    %p107 = por %p105, %p106
    %s108 = ssub.s32 %s16, %s28
    %s109 = ssub.s32 %s17, %s24
    %s110 = sor.u32 %s108, %s109
    %p111 = scmp.eq.s32.totalorder %s110, 0
    %s113 = sadd.s32 %s112, 1
    %s114 = scalar_select %p111, %s112, %s113
    %p117 = pneg %p111
    %p118 = scmp.eq.s32.totalorder %s9, 1
    %p119 = por %p117, %p118
    %p120 = scmp.ne.s32.totalorder %s112, %s115
    %p121 = scmp.eq.s32.totalorder %s9, 0
    %p122 = por %p120, %p121
    %p123 = scmp.ne.s32.totalorder %s112, %s115
    %p124 = scmp.eq.s32.totalorder %s14, 1
    %p125 = por %p123, %p124
    %p126 = scmp.ne.s32.totalorder %s115, %s116
    %p127 = scmp.eq.s32.totalorder %s14, 0
    %p128 = por %p126, %p127
    %p129 = scmp.ne.s32.totalorder %s115, %s116
    %p130 = scmp.eq.s32.totalorder %s15, 1
    %p131 = por %p129, %p130
    %p133 = scmp.ne.s32.totalorder %s116, %s132
    %p134 = scmp.eq.s32.totalorder %s15, 0
    %p135 = por %p133, %p134
    %p136 = scmp.le.s32.totalorder 1, %s9
    %p137 = scmp.lt.s32.totalorder %s9, 3
    %p138 = pnand %p136, %p137
    %p139 = pneg %p138
    // Predicated region
    $region9: #{imsf_block_forward.3} parent=5 // pred_check
      _
    $region10: #{imsf_block_forward.3} parent=5 // pred_check_branch
      %141 = sbr.rel (%p138) target = $region12
    $region11: #{imsf_block_forward.3} parent=5 // pred_region
      %s142 = ssub.s32 %s9, 1
      // Predicated region
      $region13: #{imsf_block_forward.3} parent=11 // pred_check
        %p143 = pneg %p100
      $region14: #{imsf_block_forward.3} parent=11 // pred_check_branch
        %145 = sbr.rel (%p143) target = $region16
      $region15: #{imsf_block_forward.3} parent=11 // pred_region
        _
      $region16: #{imsf_block_forward.3} parent=11 // pred_fallthru
        _
    $region12: #{imsf_block_forward.3} parent=5 // pred_fallthru
      _
    %p146 = scmp.lt.s32.totalorder %s9, 2
    // Predicated region
    $region17: #{imsf_block_forward.3} parent=5 // pred_check
      %p147 = pneg %p146
    $region18: #{imsf_block_forward.3} parent=5 // pred_check_branch
      %149 = sbr.rel (%p147) target = $region20
    $region19: #{imsf_block_forward.3} parent=5 // pred_region
      // Predicated region
      $region21: #{imsf_block_forward.3} parent=19 // pred_check
        %p150 = pneg %p43
      $region22: #{imsf_block_forward.3} parent=19 // pred_check_branch
        %152 = sbr.rel (%p150) target = $region24
      $region23: #{imsf_block_forward.3} parent=19 // pred_region
        %p153 = scmp.lt.s32.totalorder %s16, 1
        %s154 = scalar_select %p153, %s16, 1
        %p155 = scmp.lt.s32.totalorder %s17, 1
        %s156 = scalar_select %p155, %s17, 1
        %s157 = smul.addr %s154, 2
        %s158 = sadd.s32 %s156, %s157
        %s159 = smul.addr %s158, 2
        %s160 = scalar_lea.vmem %s0, %s159
      $region24: #{imsf_block_forward.3} parent=19 // pred_fallthru
        _
      // Predicated region
      $region25: #{imsf_block_forward.3} parent=19 // pred_check
        %p161 = pneg %p73
      $region26: #{imsf_block_forward.3} parent=19 // pred_check_branch
        %163 = sbr.rel (%p161) target = $region28
      $region27: #{imsf_block_forward.3} parent=19 // pred_region
        %s164 = sadd.s32 %s17, 1
        %p165 = scmp.lt.s32.totalorder %s16, 1
        %s166 = scalar_select %p165, %s16, 1
        %p167 = scmp.lt.s32.totalorder %s164, 1
        %s168 = scalar_select %p167, %s164, 1
        %s169 = smul.addr %s166, 2
        %s170 = sadd.s32 %s168, %s169
        %s171 = smul.addr %s170, 2
        %s172 = scalar_lea.vmem %s1, %s171
        %s173 = sadd.s32 %s17, 1
      $region28: #{imsf_block_forward.3} parent=19 // pred_fallthru
        _
    $region20: #{imsf_block_forward.3} parent=5 // pred_fallthru
      _
    %p174 = scmp.le.s32.totalorder 1, %s9
    %p175 = scmp.lt.s32.totalorder %s9, 3
    %p176 = pnand %p174, %p175
    %p177 = pneg %p176
    // Predicated region
    $region29: #{imsf_block_forward.3} parent=5 // pred_check
      _
    $region30: #{imsf_block_forward.3} parent=5 // pred_check_branch
      %179 = sbr.rel (%p176) target = $region32
    $region31: #{imsf_block_forward.3} parent=5 // pred_region
      %s180 = ssub.s32 %s9, 1
      %p181 = scmp.lt.s32.totalorder %s18, 1
      %s182 = scalar_select %p181, %s18, 1
      %p183 = scmp.lt.s32.totalorder %s19, 1
      %s184 = scalar_select %p183, %s19, 1
      %s185 = smul.addr %s182, 2
      %s186 = sadd.s32 %s184, %s185
      %s187 = smul.addr %s186, 2
      %s188 = scalar_lea.vmem %s0, %s187
      %p189 = pneg %p49
      %p190 = pneg %p46
      %s191 = sadd.s32 %s19, 1
      %p192 = scmp.lt.s32.totalorder %s18, 1
      %s193 = scalar_select %p192, %s18, 1
      %p194 = scmp.lt.s32.totalorder %s191, 1
      %s195 = scalar_select %p194, %s191, 1
      %s196 = smul.addr %s193, 2
      %s197 = sadd.s32 %s195, %s196
      %s198 = smul.addr %s197, 2
      %s199 = scalar_lea.vmem %s1, %s198
      %p200 = pneg %p79
      %p201 = pneg %p76
      %p202 = pneg %p100
      %p203 = pneg %p97
      %p204 = pneg %p128
      %p205 = pneg %p125
      %p206 = scmp.lt.s32.totalorder %s18, 1
      %s207 = scalar_select %p206, %s18, 1
      %p208 = scmp.lt.s32.totalorder %s19, 0
      %s209 = scalar_select %p208, %s19, 0
      %s210 = smul.addr %s209, 4
      %s211 = smul.addr %s207, 4
      %s212 = sadd.s32 %s210, %s211
      %s213 = smul.addr %s212, 8
      %s214 = scalar_lea.vmem %s3, %s213
      %p215 = scmp.lt.s32.totalorder %s18, 1
      %s216 = scalar_select %p215, %s18, 1
      %p217 = scmp.lt.s32.totalorder %s19, 1
      %s218 = scalar_select %p217, %s19, 1
      %s219 = smul.addr %s216, 2
      %s220 = sadd.s32 %s218, %s219
      %s221 = smul.addr %s220, 2
      %s222 = scalar_lea.vmem %s0, %s221
      %s223 = sadd.s32 %s19, 1
      %p224 = scmp.lt.s32.totalorder %s18, 1
      %s225 = scalar_select %p224, %s18, 1
      %p226 = scmp.lt.s32.totalorder %s223, 1
      %s227 = scalar_select %p226, %s223, 1
      %s228 = smul.addr %s225, 2
      %s229 = sadd.s32 %s227, %s228
      %s230 = smul.addr %s229, 2
      %s231 = scalar_lea.vmem %s1, %s230
      %s232 = sadd.s32 %s19, 1
      %p233 = scmp.lt.s32.totalorder %s18, 1
      %s234 = scalar_select %p233, %s18, 1
      %p235 = scmp.lt.s32.totalorder %s19, 0
      %s236 = scalar_select %p235, %s19, 0
      %s237 = smul.addr %s236, 4
      %s238 = smul.addr %s234, 4
      %s239 = sadd.s32 %s237, %s238
      %s240 = smul.addr %s239, 8
      %s241 = scalar_lea.vmem %s3, %s240
      %v243 = vld [vmem:[%s222] sm:$0x3]
      %v244 = vld [vmem:[%s231] sm:$0x3]
      %245 = vst [vmem:[#allocation2] sm:$0x3] %v243
      %vm246 = vcmask 58368
      %247 = vst.msk [vmem:[#allocation2 + $0x4] sm:$0x3] %vm246, %v244
      %v249 = vcombine.low %v243, %v243
      %v251 = vunpack.c.l.s4 1983009808
      %v252 = vunpack.c.0.s8 %v251
      %v253 = vlaneseq
      %v254 = vshrl.u32 %v253, 7
      %v255 = vsub.s32 %v252, %v254
      %v256 = vrot.slane %v249, %v255
      %257 = vrot.lane.b32.xlu0 %v256, 127
      %v258 = vpop.permute.xlu0 %257
      %vm260 = vcmask 1035266
      %261 = vst.msk [vmem:[#allocation2] sm:$0xc] %vm260, %v258
      %v263 = vcombine.low %v244, %v244
      %v265 = vunpack.c.l.s4 1983009808
      %v266 = vunpack.c.0.s8 %v265
      %v267 = vlaneseq
      %v268 = vshrl.u32 %v267, 7
      %v269 = vsub.s32 %v266, %v268
      %v270 = vrot.slane %v263, %v269
      %271 = vrot.lane.b32.xlu0 %v270, 127
      %v272 = vpop.permute.xlu0 %271
      %v273 = vrot.slane %v272, 4
      %vm274 = vcmask 1039360
      %v275 = vsel %vm274, %v273, %v272
      %vm277 = vcmask 1044474
      %vm278 = vcmask 64518
      %vm279 = vmor %vm278, %vm277
      %280 = vst.msk [vmem:[#allocation2] sm:$0xcc] %vm279, %v275
      %v282 = vunpack.c.l.s4 1983009808
      %v283 = vunpack.c.0.s8 %v282
      %v284 = vlaneseq
      %v285 = vshrl.u32 %v284, 7
      %v286 = vsub.s32 %v283, %v285
      %v287 = vrot.slane %v243, %v286
      %288 = vrot.lane.b32.xlu0 %v287, 126
      %v289 = vpop.permute.xlu0 %288
      %vm291 = vcmask 1025024
      %292 = vst.msk [vmem:[#allocation2 + $0x8] sm:$0x3] %vm291, %v289
      %v294 = vunpack.c.l.s4 1983009808
      %v295 = vunpack.c.0.s8 %v294
      %v296 = vlaneseq
      %v297 = vshrl.u32 %v296, 7
      %v298 = vsub.s32 %v295, %v297
      %v299 = vrot.slane %v244, %v298
      %300 = vrot.lane.b32.xlu0 %v299, 126
      %v301 = vpop.permute.xlu0 %300
      %v302 = vrot.slane %v301, 4
      %vm303 = vcmask 1031168
      %v304 = vsel %vm303, %v302, %v301
      %vm306 = vcmask 1042416
      %vm307 = vcmask 62468
      %vm308 = vmor %vm307, %vm306
      %309 = vst.msk [vmem:[#allocation2 + $0x8] sm:$0x33] %vm308, %v304
      %310 = vrot.lane.b32.xlu0 %v256, 125
      %v311 = vpop.permute.xlu0 %310
      %vm313 = vcmask 1018882
      %314 = vst.msk [vmem:[#allocation2 + $0x8] sm:$0xc] %vm313, %v311
      %315 = vrot.lane.b32.xlu0 %v270, 125
      %v316 = vpop.permute.xlu0 %315
      %v317 = vrot.slane %v316, 4
      %vm318 = vcmask 1022976
      %v319 = vsel %vm318, %v317, %v316
      %vm321 = vcmask 1044458
      %vm322 = vmor %vm278, %vm321
      %323 = vst.msk [vmem:[#allocation2 + $0x8] sm:$0xcc] %vm322, %v319
      %324 = vrot.lane.b32.xlu0 %v287, 124
      %v325 = vpop.permute.xlu0 %324
      %vm327 = vcmask 1008640
      %328 = vst.msk [vmem:[#allocation2 + $0x10] sm:$0x3] %vm327, %v325
      %329 = vrot.lane.b32.xlu0 %v299, 124
      %v330 = vpop.permute.xlu0 %329
      %v331 = vrot.slane %v330, 4
      %vm332 = vcmask 1014784
      %v333 = vsel %vm332, %v331, %v330
      %vm335 = vcmask 1042400
      %vm336 = vmor %vm307, %vm335
      %337 = vst.msk [vmem:[#allocation2 + $0x10] sm:$0x33] %vm336, %v333
      %338 = vrot.lane.b32.xlu0 %v256, 123
      %v339 = vpop.permute.xlu0 %338
      %vm341 = vcmask 1002498
      %342 = vst.msk [vmem:[#allocation2 + $0x10] sm:$0xc] %vm341, %v339
      %343 = vrot.lane.b32.xlu0 %v270, 123
      %v344 = vpop.permute.xlu0 %343
      %v345 = vrot.slane %v344, 4
      %vm346 = vcmask 1006592
      %v347 = vsel %vm346, %v345, %v344
      %vm349 = vcmask 1044442
      %vm350 = vmor %vm278, %vm349
      %351 = vst.msk [vmem:[#allocation2 + $0x10] sm:$0xcc] %vm350, %v347
      %352 = vrot.lane.b32.xlu0 %v287, 122
      %v353 = vpop.permute.xlu0 %352
      %vm355 = vcmask 992256
      %356 = vst.msk [vmem:[#allocation2 + $0x18] sm:$0x3] %vm355, %v353
      %357 = vrot.lane.b32.xlu0 %v299, 122
      %v358 = vpop.permute.xlu0 %357
      %v359 = vrot.slane %v358, 4
      %vm360 = vcmask 998400
      %v361 = vsel %vm360, %v359, %v358
      %vm363 = vcmask 1042384
      %vm364 = vmor %vm307, %vm363
      %365 = vst.msk [vmem:[#allocation2 + $0x18] sm:$0x33] %vm364, %v361
      %366 = vrot.lane.b32.xlu0 %v256, 121
      %v367 = vpop.permute.xlu0 %366
      %vm369 = vcmask 986114
      %370 = vst.msk [vmem:[#allocation2 + $0x18] sm:$0xc] %vm369, %v367
      %371 = vrot.lane.b32.xlu0 %v270, 121
      %v372 = vpop.permute.xlu0 %371
      %v373 = vrot.slane %v372, 4
      %vm374 = vcmask 990208
      %v375 = vsel %vm374, %v373, %v372
      %vm377 = vcmask 1044426
      %vm378 = vmor %vm278, %vm377
      %379 = vst.msk [vmem:[#allocation2 + $0x18] sm:$0xcc] %vm378, %v375
      %380 = vrot.lane.b32.xlu0 %v287, 120
      %v381 = vpop.permute.xlu0 %380
      %vm383 = vcmask 975872
      %384 = vst.msk [vmem:[#allocation2 + $0x20] sm:$0x3] %vm383, %v381
      %385 = vrot.lane.b32.xlu0 %v299, 120
      %v386 = vpop.permute.xlu0 %385
      %v387 = vrot.slane %v386, 4
      %vm388 = vcmask 982016
      %v389 = vsel %vm388, %v387, %v386
      %vm391 = vcmask 1042368
      %vm392 = vmor %vm307, %vm391
      %393 = vst.msk [vmem:[#allocation2 + $0x20] sm:$0x33] %vm392, %v389
      %394 = vrot.lane.b32.xlu0 %v256, 119
      %v395 = vpop.permute.xlu0 %394
      %vm397 = vcmask 969730
      %398 = vst.msk [vmem:[#allocation2 + $0x20] sm:$0xc] %vm397, %v395
      %399 = vrot.lane.b32.xlu0 %v270, 119
      %v400 = vpop.permute.xlu0 %399
      %v401 = vrot.slane %v400, 4
      %vm402 = vcmask 973824
      %v403 = vsel %vm402, %v401, %v400
      %vm405 = vcmask 1044410
      %vm406 = vmor %vm278, %vm405
      %407 = vst.msk [vmem:[#allocation2 + $0x20] sm:$0xcc] %vm406, %v403
      %408 = vrot.lane.b32.xlu0 %v287, 118
      %v409 = vpop.permute.xlu0 %408
      %vm411 = vcmask 959488
      %412 = vst.msk [vmem:[#allocation2 + $0x28] sm:$0x3] %vm411, %v409
      %413 = vrot.lane.b32.xlu0 %v299, 118
      %v414 = vpop.permute.xlu0 %413
      %v415 = vrot.slane %v414, 4
      %vm416 = vcmask 965632
      %v417 = vsel %vm416, %v415, %v414
      %vm419 = vcmask 1042352
      %vm420 = vmor %vm307, %vm419
      %421 = vst.msk [vmem:[#allocation2 + $0x28] sm:$0x33] %vm420, %v417
      %v422 = vld [vmem:[%s2] sm:$0xf]
      %v423 = vld [vmem:[%s2 + $0x4] sm:$0xf]
      %v424 = vld [vmem:[%s2 + $0x8] sm:$0xf]
      %v425 = vld [vmem:[%s2 + $0xc] sm:$0xf]
      %v426 = vld [vmem:[#allocation2] sm:$0xff]
      %v427 = vld [vmem:[#allocation2 + $0x8] sm:$0xff]
      %v428 = vld [vmem:[#allocation2 + $0x10] sm:$0xff]
      %v429 = vld [vmem:[#allocation2 + $0x18] sm:$0xff]
      %v430 = vld [vmem:[#allocation2 + $0x20] sm:$0xff]
      %v431 = vld [vmem:[#allocation2 + $0x28] sm:$0x33]
      %v436 = vunpack.c.l.b16 %v422
      %v437 = vunpack.c.l.b16 %v423
      %v438 = vunpack.c.l.b16 %v424
      %v439 = vunpack.c.l.b16 %v425
      %v440 = vpack.c.b16 %v437, %v436
      %v441 = vpack.c.b16 %v439, %v438
      %v448 = vunpack.c.l.b16 %v426
      %v449 = vunpack.c.h.b16 %v426
      %v450 = vunpack.c.l.b16 %v427
      %v451 = vunpack.c.h.b16 %v427
      %v452 = vunpack.c.l.b16 %v428
      %v453 = vunpack.c.h.b16 %v428
      %v454 = vunpack.c.l.b16 %v429
      %v455 = vunpack.c.h.b16 %v429
      %v456 = vunpack.c.l.b16 %v430
      %v457 = vunpack.c.h.b16 %v430
      %v458 = vunpack.c.l.b16 %v431
      %v459 = vunpack.c.h.b16 %v431
      %v460 = vpack.c.b16 %v450, %v448
      %v461 = vpack.c.b16 %v451, %v449
      %v462 = vpack.c.b16 %v454, %v452
      %v463 = vpack.c.b16 %v455, %v453
      %v464 = vpack.c.b16 %v458, %v456
      %v465 = vpack.c.b16 %v459, %v457
      %vm470 = vcmask 359424
      %v472 = vsel %vm470, %v440, 0
      %v475 = vsel %vm470, %v441, 0
      %vm477 = vcmask 1045504
      %v479 = vsel %vm477, %v464, 0
      %v482 = vsel %vm477, %v465, 0
      %484 = vmatprep.subr.bf16.mxu0 0
      %485 = vmatpush1.bf16.msra.mxu0 0
      %486 = vmatprep.subr.bf16.mxu0 0
      %487 = vmatpush1.bf16.msra.mxu0 0
      %488 = vmatprep.subr.bf16.mxu0 0
      %489 = vmatpush1.bf16.msra.mxu0 0
      %490 = vmatprep.subr.bf16.mxu0 0
      %491 = vmatpush1.bf16.msra.mxu0 0
      %492 = vmatprep.subr.bf16.mxu0 0
      %493 = vmatpush1.bf16.msra.mxu0 0
      %494 = vmatprep.subr.bf16.mxu0 %v482
      %495 = vmatpush1.bf16.msra.mxu0 %v479
      %496 = vmatprep.subr.bf16.mxu0 %v463
      %497 = vmatpush1.bf16.msra.mxu0 %v462
      %498 = vmatprep.subr.bf16.mxu0 %v461
      %499 = vmatpush1.bf16.msra.mxu0 %v460
      %500 = vmatprep.subr.bf16.mxu0 0
      %501 = vmatpush2.bf16.msra.mxu0 0
      %502 = vmatprep.subr.bf16.mxu0 0
      %503 = vmatpush2.bf16.msra.mxu0 0
      %504 = vmatprep.subr.bf16.mxu0 0
      %505 = vmatpush2.bf16.msra.mxu0 0
      %506 = vmatprep.subr.bf16.mxu0 0
      %507 = vmatpush2.bf16.msra.mxu0 0
      %508 = vmatprep.subr.bf16.mxu0 0
      %509 = vmatpush2.bf16.msra.mxu0 0
      %510 = vmatprep.subr.bf16.mxu0 0
      %511 = vmatpush2.bf16.msra.mxu0 0
      %512 = vmatprep.subr.bf16.mxu0 0
      %513 = vmatpush2.bf16.msra.mxu0 0
      %514 = vmatprep.subr.bf16.mxu0 0
      %515 = vmatpush2.bf16.msra.mxu0 0
      %516 = vmatprep.mubr.bf16.mxu0 0
      %517 = vmatmul.mubr.bf16.gmra.mxu0 %v472
      %v518 = vpop.f32.mrf.mxu0
      %v519 = vadd.f32 0.0, %v518
      %v520 = vpop.f32.mrf.mxu0
      %v521 = vadd.f32 0.0, %v520
      %v522 = vpop.f32.mrf.mxu0
      %v523 = vadd.f32 0.0, %v522
      %v524 = vpop.f32.mrf.mxu0
      %v525 = vadd.f32 0.0, %v524
      %526 = vmatprep.mubr.bf16.mxu0 0
      %527 = vmatmul.mubr.bf16.gmra.mxu0 %v475
      %v528 = vpop.f32.mrf.mxu0
      %v529 = vadd.f32 0.0, %v528
      %v530 = vpop.f32.mrf.mxu0
      %v531 = vadd.f32 0.0, %v530
      %v532 = vpop.f32.mrf.mxu0
      %v533 = vadd.f32 0.0, %v532
      %v534 = vpop.f32.mrf.mxu0
      %v535 = vadd.f32 0.0, %v534
      %536 = vdwg.mxu0
      %s537 = smul.u32 %s19, 128
      %v538 = vlaneseq
      %v539 = vand.u32 %v538, 127
      %v540 = vstv %s537
      %v541 = vadd.s32 %v540, %v539
      %vm542 = vcmp.lt.s32.totalorder %v541, 16
      %v543 = vsel %vm542, 1, 0
      %vm544 = vcmp.eq.s32.totalorder %v543, 1
      %553 = vrot.lane.b32.xlu0 %v519, 124
      %v554 = vpop.permute.xlu0 %553
      %555 = vrot.lane.b32.xlu0 %v521, 124
      %v556 = vpop.permute.xlu0 %555
      %557 = vrot.lane.b32.xlu0 %v523, 124
      %v558 = vpop.permute.xlu0 %557
      %559 = vrot.lane.b32.xlu0 %v525, 124
      %v560 = vpop.permute.xlu0 %559
      %561 = vrot.lane.b32.xlu0 %v529, 124
      %v562 = vpop.permute.xlu0 %561
      %563 = vrot.lane.b32.xlu0 %v531, 124
      %v564 = vpop.permute.xlu0 %563
      %565 = vrot.lane.b32.xlu0 %v533, 124
      %v566 = vpop.permute.xlu0 %565
      %567 = vrot.lane.b32.xlu0 %v535, 124
      %v568 = vpop.permute.xlu0 %567
      %vm569 = vcmask 1014784
      %v570 = vsel %vm569, %v554, %v556
      %v571 = vsel %vm569, %v558, %v560
      %v572 = vsel %vm569, %v562, %v564
      %v573 = vsel %vm569, %v566, %v568
      %v578 = vsel %vm544, %v570, 0.0
      %v579 = vsel %vm544, %v571, 0.0
      %v580 = vsel %vm544, %v572, 0.0
      %v581 = vsel %vm544, %v573, 0.0
      %582 = vadd.xlane.f32.xlu0 %v578
      %v583 = vpop.xlane.xlu0 %582
      %584 = vadd.xlane.f32.xlu0 %v579
      %v585 = vpop.xlane.xlu0 %584
      %586 = vadd.xlane.f32.xlu0 %v580
      %v587 = vpop.xlane.xlu0 %586
      %588 = vadd.xlane.f32.xlu0 %v581
      %v589 = vpop.xlane.xlu0 %588
      %v590 = vmul.f32 %v578, %v578
      %v591 = vmul.f32 %v579, %v579
      %v592 = vmul.f32 %v580, %v580
      %v593 = vmul.f32 %v581, %v581
      %594 = vadd.xlane.f32.xlu0 %v590
      %v595 = vpop.xlane.xlu0 %594
      %596 = vadd.xlane.f32.xlu0 %v591
      %v597 = vpop.xlane.xlu0 %596
      %598 = vadd.xlane.f32.xlu0 %v592
      %v599 = vpop.xlane.xlu0 %598
      %600 = vadd.xlane.f32.xlu0 %v593
      %v601 = vpop.xlane.xlu0 %600
      %vm602 = vcmask 7168
      %v603 = vsel %vm602, %v583, %v595
      %v604 = vsel %vm602, %v585, %v597
      %v605 = vsel %vm602, %v587, %v599
      %v606 = vsel %vm602, %v589, %v601
      %vm607 = vcmask 15360
      %608 = vst.msk [vmem:[%s241] sm:$0xff] %vm607, %v603
      %609 = vst.msk [vmem:[%s241 + $0x8] sm:$0xff] %vm607, %v604
      %610 = vst.msk [vmem:[%s241 + $0x10] sm:$0xff] %vm607, %v605
      %611 = vst.msk [vmem:[%s241 + $0x18] sm:$0xff] %vm607, %v606
      %p612 = scmp.lt.s32.totalorder %s18, 1
      %s613 = scalar_select %p612, %s18, 1
      %p614 = scmp.lt.s32.totalorder %s19, 0
      %s615 = scalar_select %p614, %s19, 0
      %s616 = smul.addr %s615, 4
      %s617 = smul.addr %s613, 4
      %s618 = sadd.s32 %s616, %s617
      %s619 = smul.addr %s618, 8
      %s620 = scalar_lea.vmem %s3, %s619
      // Predicated region
      $region33: #{imsf_block_forward.3} parent=31 // pred_check
        %p621 = pneg %p125
      $region34: #{imsf_block_forward.3} parent=31 // pred_check_branch
        %623 = sbr.rel (%p621) target = $region36
      $region35: #{imsf_block_forward.3} parent=31 // pred_region
        _
      $region36: #{imsf_block_forward.3} parent=31 // pred_fallthru
        _
    $region32: #{imsf_block_forward.3} parent=5 // pred_fallthru
      _
    %p624 = scmp.le.s32.totalorder 2, %s9
    // Predicated region
    $region37: #{imsf_block_forward.3} parent=5 // pred_check
      %p625 = pneg %p624
    $region38: #{imsf_block_forward.3} parent=5 // pred_check_branch
      %627 = sbr.rel (%p625) target = $region40
    $region39: #{imsf_block_forward.3} parent=5 // pred_region
      %s628 = ssub.s32 %s9, 2
      // Predicated region
      $region41: #{imsf_block_forward.3} parent=39 // pred_check
        %p629 = pneg %p131
      $region42: #{imsf_block_forward.3} parent=39 // pred_check_branch
        %631 = sbr.rel (%p629) target = $region44
      $region43: #{imsf_block_forward.3} parent=39 // pred_region
        %p632 = scmp.lt.s32.totalorder %s20, 1
        %s633 = scalar_select %p632, %s20, 1
        %p634 = scmp.lt.s32.totalorder %s21, 0
        %s635 = scalar_select %p634, %s21, 0
        %s636 = smul.addr %s635, 4
        %s637 = smul.addr %s633, 4
        %s638 = sadd.s32 %s636, %s637
        %s639 = smul.addr %s638, 8
        %s640 = scalar_lea.vmem %s3, %s639
      $region44: #{imsf_block_forward.3} parent=39 // pred_fallthru
        _
    $region40: #{imsf_block_forward.3} parent=5 // pred_fallthru
      _
  $region6: #{imsf_block_forward.3} parent=0 // loop_footer
    %s13 = sadd.s32 1, %s9
  $region7: #{imsf_block_forward.3} parent=0 // loop_footer_branch
    %8 = sbr.rel target = $region3
  $region8: #{imsf_block_forward.3} parent=0 // loop_exit
    _

// kernel: imsf_block_forward.4
$region0: #{imsf_block_forward.4}
  #allocation0 [shape = 'u32[]', space=smem, size = 0x4, offset = 0x4, fixed_abs, tag = 'smem constant byte address 0x4 - core index']
  #allocation1 [shape = 'u32[144,128]{1,0:T(1,128)}', space=vmem, size = 0x12000, scoped, tag = 'internal scratch']
  #allocation2 [shape = 'bf16[44,136]{1,0:T(8,128)(2,1)}', space=vmem, size = 0x6000, scoped, tag = 'scratch operand']
  #allocation3 [shape = 'bf16[216,128]{1,0:T(8,128)(2,1)}', space=vmem, size = 0xd800, scoped, tag = 'scratch operand']
  %s0 = inlined_call_operand.vmem [shape: bf16[2,4,256], index: 0, kind: input, shape index: {}, may-alias: {0,1}]
  %s1 = inlined_call_operand.vmem [shape: bf16[2,4,256], index: 1, kind: input, shape index: {}, may-alias: {0,1}]
  %s2 = inlined_call_operand.vmem [shape: bf16[32,44], index: 2, kind: input, shape index: {}]
  %s3 = inlined_call_operand.vmem [shape: f32[32,1], index: 3, kind: input, shape index: {}]
  %s4 = inlined_call_operand.vmem [shape: f32[32,1], index: 4, kind: input, shape index: {}]
  %s5 = inlined_call_operand.vmem [shape: bf16[8,216], index: 5, kind: input, shape index: {}]
  %s6 = inlined_call_operand.vmem [shape: f32[2,1,8,2], index: 6, kind: output, shape index: {}]
  %s7 = sld [smem:[#allocation0]]
  $region57: #{imsf_block_forward.4} parent=0
    _
  %s9 = ssub.s32 1, %s7
  %s10 = scalar_select 0, %s9, %s7
  loop: start=0, step=1, limit=4
  $region2: #{imsf_block_forward.4} parent=0 // loop_pre_header
    _
  $region3: #{imsf_block_forward.4} parent=0 // loop_header
    %s12 = sphi 0, %s16
    %p13 = scmp.ge.s32.totalorder %s12, 4
    %s19 = sphi 0, %s31
    %s20 = sphi 0, %s27
    %s21 = sphi 0, %s19
    %s22 = sphi 0, %s20
    %s23 = sphi 0, %s21
    %s24 = sphi 0, %s22
    %s36 = sphi 0, %s38
    %s39 = sphi 0, %s36
    %s40 = sphi 0, %s39
    %s56 = sphi 0, %s40
    %s66 = sphi 0, %s68
    %s69 = sphi 0, %s66
    %s70 = sphi 0, %s69
    %s86 = sphi 0, %s70
    %s90 = sphi 0, %s90
    %s92 = sphi 0, %s90
    %s93 = sphi 0, %s92
    %s107 = sphi 0, %s93
    %s111 = sphi 0, %s111
    %s113 = sphi 0, %s111
    %s114 = sphi 0, %s113
    %s128 = sphi 0, %s114
    %s132 = sphi 0, %s132
    %s134 = sphi 0, %s132
    %s135 = sphi 0, %s134
    %s149 = sphi 0, %s135
    %s153 = sphi 0, %s153
    %s155 = sphi 0, %s153
    %s156 = sphi 0, %s155
    %s170 = sphi 0, %s156
    %s178 = sphi 0, %s180
    %s181 = sphi 0, %s178
    %s182 = sphi 0, %s181
    %s198 = sphi 0, %s182
  $region4: #{imsf_block_forward.4} parent=0 // loop_header_branch
    %15 = sbr.rel (%p13) target = $region8
  $region5: #{imsf_block_forward.4} parent=0 // loop_body
    %s17 = ssub.s32 %s12, 1
    %s18 = ssub.s32 %s12, 2
    %s25 = sadd.s32 1, %s20
    %p26 = scmp.ge.s32.totalorder %s25, 1
    %s27 = scalar_select %p26, 0, %s25
    %s28 = sadd.s32 1, %s19
    %s29 = scalar_select %p26, %s28, %s19
    %p30 = scmp.ge.s32.totalorder %s29, 2
    %s31 = scalar_select %p30, 0, %s29
    %s32 = ssub.s32 %s19, %s31
    %s33 = ssub.s32 %s20, %s27
    %s34 = sor.u32 %s32, %s33
    %p35 = scmp.eq.s32.totalorder %s34, 0
    %s37 = sadd.s32 %s36, 1
    %s38 = scalar_select %p35, %s36, %s37
    %p41 = pneg %p35
    %p42 = scmp.eq.s32.totalorder %s12, 1
    %p43 = por %p41, %p42
    %p44 = scmp.ne.s32.totalorder %s36, %s39
    %p45 = scmp.eq.s32.totalorder %s12, 0
    %p46 = por %p44, %p45
    %p47 = scmp.ne.s32.totalorder %s36, %s39
    %p48 = scmp.eq.s32.totalorder %s17, 1
    %p49 = por %p47, %p48
    %p50 = scmp.ne.s32.totalorder %s39, %s40
    %p51 = scmp.eq.s32.totalorder %s17, 0
    %p52 = por %p50, %p51
    %p53 = scmp.ne.s32.totalorder %s39, %s40
    %p54 = scmp.eq.s32.totalorder %s18, 1
    %p55 = por %p53, %p54
    %p57 = scmp.ne.s32.totalorder %s40, %s56
    %p58 = scmp.eq.s32.totalorder %s18, 0
    %p59 = por %p57, %p58
    %s60 = sadd.s32 %s20, 1
    %s61 = sadd.s32 %s27, 1
    %s62 = ssub.s32 %s19, %s31
    %s63 = ssub.s32 %s60, %s61
    %s64 = sor.u32 %s62, %s63
    %p65 = scmp.eq.s32.totalorder %s64, 0
    %s67 = sadd.s32 %s66, 1
    %s68 = scalar_select %p65, %s66, %s67
    %p71 = pneg %p65
    %p72 = scmp.eq.s32.totalorder %s12, 1
    %p73 = por %p71, %p72
    %p74 = scmp.ne.s32.totalorder %s66, %s69
    %p75 = scmp.eq.s32.totalorder %s12, 0
    %p76 = por %p74, %p75
    %p77 = scmp.ne.s32.totalorder %s66, %s69
    %p78 = scmp.eq.s32.totalorder %s17, 1
    %p79 = por %p77, %p78
    %p80 = scmp.ne.s32.totalorder %s69, %s70
    %p81 = scmp.eq.s32.totalorder %s17, 0
    %p82 = por %p80, %p81
    %p83 = scmp.ne.s32.totalorder %s69, %s70
    %p84 = scmp.eq.s32.totalorder %s18, 1
    %p85 = por %p83, %p84
    %p87 = scmp.ne.s32.totalorder %s70, %s86
    %p88 = scmp.eq.s32.totalorder %s18, 0
    %p89 = por %p87, %p88
    %s91 = sadd.s32 %s90, 1
    %p94 = scmp.eq.s32.totalorder %s12, 1
    %p95 = scmp.ne.s32.totalorder %s90, %s92
    %p96 = scmp.eq.s32.totalorder %s12, 0
    %p97 = por %p95, %p96
    %p98 = scmp.ne.s32.totalorder %s90, %s92
    %p99 = scmp.eq.s32.totalorder %s17, 1
    %p100 = por %p98, %p99
    %p101 = scmp.ne.s32.totalorder %s92, %s93
    %p102 = scmp.eq.s32.totalorder %s17, 0
    %p103 = por %p101, %p102
    %p104 = scmp.ne.s32.totalorder %s92, %s93
    %p105 = scmp.eq.s32.totalorder %s18, 1
    %p106 = por %p104, %p105
    %p108 = scmp.ne.s32.totalorder %s93, %s107
    %p109 = scmp.eq.s32.totalorder %s18, 0
    %p110 = por %p108, %p109
    %s112 = sadd.s32 %s111, 1
    %p115 = scmp.eq.s32.totalorder %s12, 1
    %p116 = scmp.ne.s32.totalorder %s111, %s113
    %p117 = scmp.eq.s32.totalorder %s12, 0
    %p118 = por %p116, %p117
    %p119 = scmp.ne.s32.totalorder %s111, %s113
    %p120 = scmp.eq.s32.totalorder %s17, 1
    %p121 = por %p119, %p120
    %p122 = scmp.ne.s32.totalorder %s113, %s114
    %p123 = scmp.eq.s32.totalorder %s17, 0
    %p124 = por %p122, %p123
    %p125 = scmp.ne.s32.totalorder %s113, %s114
    %p126 = scmp.eq.s32.totalorder %s18, 1
    %p127 = por %p125, %p126
    %p129 = scmp.ne.s32.totalorder %s114, %s128
    %p130 = scmp.eq.s32.totalorder %s18, 0
    %p131 = por %p129, %p130
    %s133 = sadd.s32 %s132, 1
    %p136 = scmp.eq.s32.totalorder %s12, 1
    %p137 = scmp.ne.s32.totalorder %s132, %s134
    %p138 = scmp.eq.s32.totalorder %s12, 0
    %p139 = por %p137, %p138
    %p140 = scmp.ne.s32.totalorder %s132, %s134
    %p141 = scmp.eq.s32.totalorder %s17, 1
    %p142 = por %p140, %p141
    %p143 = scmp.ne.s32.totalorder %s134, %s135
    %p144 = scmp.eq.s32.totalorder %s17, 0
    %p145 = por %p143, %p144
    %p146 = scmp.ne.s32.totalorder %s134, %s135
    %p147 = scmp.eq.s32.totalorder %s18, 1
    %p148 = por %p146, %p147
    %p150 = scmp.ne.s32.totalorder %s135, %s149
    %p151 = scmp.eq.s32.totalorder %s18, 0
    %p152 = por %p150, %p151
    %s154 = sadd.s32 %s153, 1
    %p157 = scmp.eq.s32.totalorder %s12, 1
    %p158 = scmp.ne.s32.totalorder %s153, %s155
    %p159 = scmp.eq.s32.totalorder %s12, 0
    %p160 = por %p158, %p159
    %p161 = scmp.ne.s32.totalorder %s153, %s155
    %p162 = scmp.eq.s32.totalorder %s17, 1
    %p163 = por %p161, %p162
    %p164 = scmp.ne.s32.totalorder %s155, %s156
    %p165 = scmp.eq.s32.totalorder %s17, 0
    %p166 = por %p164, %p165
    %p167 = scmp.ne.s32.totalorder %s155, %s156
    %p168 = scmp.eq.s32.totalorder %s18, 1
    %p169 = por %p167, %p168
    %p171 = scmp.ne.s32.totalorder %s156, %s170
    %p172 = scmp.eq.s32.totalorder %s18, 0
    %p173 = por %p171, %p172
    %s174 = ssub.s32 %s19, %s31
    %s175 = ssub.s32 %s20, %s27
    %s176 = sor.u32 %s174, %s175
    %p177 = scmp.eq.s32.totalorder %s176, 0
    %s179 = sadd.s32 %s178, 1
    %s180 = scalar_select %p177, %s178, %s179
    %p183 = pneg %p177
    %p184 = scmp.eq.s32.totalorder %s12, 1
    %p185 = por %p183, %p184
    %p186 = scmp.ne.s32.totalorder %s178, %s181
    %p187 = scmp.eq.s32.totalorder %s12, 0
    %p188 = por %p186, %p187
    %p189 = scmp.ne.s32.totalorder %s178, %s181
    %p190 = scmp.eq.s32.totalorder %s17, 1
    %p191 = por %p189, %p190
    %p192 = scmp.ne.s32.totalorder %s181, %s182
    %p193 = scmp.eq.s32.totalorder %s17, 0
    %p194 = por %p192, %p193
    %p195 = scmp.ne.s32.totalorder %s181, %s182
    %p196 = scmp.eq.s32.totalorder %s18, 1
    %p197 = por %p195, %p196
    %p199 = scmp.ne.s32.totalorder %s182, %s198
    %p200 = scmp.eq.s32.totalorder %s18, 0
    %p201 = por %p199, %p200
    %p202 = scmp.le.s32.totalorder 1, %s12
    %p203 = scmp.lt.s32.totalorder %s12, 3
    %p204 = pnand %p202, %p203
    %p205 = pneg %p204
    // Predicated region
    $region9: #{imsf_block_forward.4} parent=5 // pred_check
      _
    $region10: #{imsf_block_forward.4} parent=5 // pred_check_branch
      %207 = sbr.rel (%p204) target = $region12
    $region11: #{imsf_block_forward.4} parent=5 // pred_region
      %s208 = ssub.s32 %s12, 1
      // Predicated region
      $region13: #{imsf_block_forward.4} parent=11 // pred_check
        %p209 = pneg %p103
      $region14: #{imsf_block_forward.4} parent=11 // pred_check_branch
        %211 = sbr.rel (%p209) target = $region16
      $region15: #{imsf_block_forward.4} parent=11 // pred_region
        _
      $region16: #{imsf_block_forward.4} parent=11 // pred_fallthru
        _
      // Predicated region
      $region17: #{imsf_block_forward.4} parent=11 // pred_check
        %p212 = pneg %p124
      $region18: #{imsf_block_forward.4} parent=11 // pred_check_branch
        %214 = sbr.rel (%p212) target = $region20
      $region19: #{imsf_block_forward.4} parent=11 // pred_region
        _
      $region20: #{imsf_block_forward.4} parent=11 // pred_fallthru
        _
      // Predicated region
      $region21: #{imsf_block_forward.4} parent=11 // pred_check
        %p215 = pneg %p145
      $region22: #{imsf_block_forward.4} parent=11 // pred_check_branch
        %217 = sbr.rel (%p215) target = $region24
      $region23: #{imsf_block_forward.4} parent=11 // pred_region
        _
      $region24: #{imsf_block_forward.4} parent=11 // pred_fallthru
        _
      // Predicated region
      $region25: #{imsf_block_forward.4} parent=11 // pred_check
        %p218 = pneg %p166
      $region26: #{imsf_block_forward.4} parent=11 // pred_check_branch
        %220 = sbr.rel (%p218) target = $region28
      $region27: #{imsf_block_forward.4} parent=11 // pred_region
        _
      $region28: #{imsf_block_forward.4} parent=11 // pred_fallthru
        _
    $region12: #{imsf_block_forward.4} parent=5 // pred_fallthru
      _
    %p221 = scmp.lt.s32.totalorder %s12, 2
    // Predicated region
    $region29: #{imsf_block_forward.4} parent=5 // pred_check
      %p222 = pneg %p221
    $region30: #{imsf_block_forward.4} parent=5 // pred_check_branch
      %224 = sbr.rel (%p222) target = $region32
    $region31: #{imsf_block_forward.4} parent=5 // pred_region
      // Predicated region
      $region33: #{imsf_block_forward.4} parent=31 // pred_check
        %p225 = pneg %p46
      $region34: #{imsf_block_forward.4} parent=31 // pred_check_branch
        %227 = sbr.rel (%p225) target = $region36
      $region35: #{imsf_block_forward.4} parent=31 // pred_region
        %p228 = scmp.lt.s32.totalorder %s19, 1
        %s229 = scalar_select %p228, %s19, 1
        %p230 = scmp.lt.s32.totalorder %s20, 1
        %s231 = scalar_select %p230, %s20, 1
        %s232 = smul.addr %s229, 2
        %s233 = sadd.s32 %s231, %s232
        %s234 = smul.addr %s233, 2
        %s235 = scalar_lea.vmem %s0, %s234
      $region36: #{imsf_block_forward.4} parent=31 // pred_fallthru
        _
      // Predicated region
      $region37: #{imsf_block_forward.4} parent=31 // pred_check
        %p236 = pneg %p76
      $region38: #{imsf_block_forward.4} parent=31 // pred_check_branch
        %238 = sbr.rel (%p236) target = $region40
      $region39: #{imsf_block_forward.4} parent=31 // pred_region
        %s239 = sadd.s32 %s20, 1
        %p240 = scmp.lt.s32.totalorder %s19, 1
        %s241 = scalar_select %p240, %s19, 1
        %p242 = scmp.lt.s32.totalorder %s239, 1
        %s243 = scalar_select %p242, %s239, 1
        %s244 = smul.addr %s241, 2
        %s245 = sadd.s32 %s243, %s244
        %s246 = smul.addr %s245, 2
        %s247 = scalar_lea.vmem %s1, %s246
        %s248 = sadd.s32 %s20, 1
      $region40: #{imsf_block_forward.4} parent=31 // pred_fallthru
        _
    $region32: #{imsf_block_forward.4} parent=5 // pred_fallthru
      _
    %p249 = scmp.le.s32.totalorder 1, %s12
    %p250 = scmp.lt.s32.totalorder %s12, 3
    %p251 = pnand %p249, %p250
    %p252 = pneg %p251
    // Predicated region
    $region41: #{imsf_block_forward.4} parent=5 // pred_check
      _
    $region42: #{imsf_block_forward.4} parent=5 // pred_check_branch
      %254 = sbr.rel (%p251) target = $region44
    $region43: #{imsf_block_forward.4} parent=5 // pred_region
      %s255 = ssub.s32 %s12, 1
      %p256 = scmp.lt.s32.totalorder %s21, 1
      %s257 = scalar_select %p256, %s21, 1
      %p258 = scmp.lt.s32.totalorder %s22, 1
      %s259 = scalar_select %p258, %s22, 1
      %s260 = smul.addr %s257, 2
      %s261 = sadd.s32 %s259, %s260
      %s262 = smul.addr %s261, 2
      %s263 = scalar_lea.vmem %s0, %s262
      %p264 = pneg %p52
      %p265 = pneg %p49
      %s266 = sadd.s32 %s22, 1
      %p267 = scmp.lt.s32.totalorder %s21, 1
      %s268 = scalar_select %p267, %s21, 1
      %p269 = scmp.lt.s32.totalorder %s266, 1
      %s270 = scalar_select %p269, %s266, 1
      %s271 = smul.addr %s268, 2
      %s272 = sadd.s32 %s270, %s271
      %s273 = smul.addr %s272, 2
      %s274 = scalar_lea.vmem %s1, %s273
      %p275 = pneg %p82
      %p276 = pneg %p79
      %p277 = pneg %p103
      %p278 = pneg %p100
      %p279 = pneg %p124
      %p280 = pneg %p121
      %p281 = pneg %p145
      %p282 = pneg %p142
      %p283 = pneg %p166
      %p284 = pneg %p163
      %p285 = pneg %p194
      %p286 = pneg %p191
      %p287 = scmp.lt.s32.totalorder %s21, 1
      %s288 = scalar_select %p287, %s21, 1
      %p289 = scmp.lt.s32.totalorder %s22, 0
      %s290 = scalar_select %p289, %s22, 0
      %s291 = sadd.s32 %s290, %s288
      %s292 = smul.addr %s291, 8
      %s293 = scalar_lea.vmem %s6, %s292
      %p294 = scmp.lt.s32.totalorder %s21, 1
      %s295 = scalar_select %p294, %s21, 1
      %p296 = scmp.lt.s32.totalorder %s22, 1
      %s297 = scalar_select %p296, %s22, 1
      %s298 = smul.addr %s295, 2
      %s299 = sadd.s32 %s297, %s298
      %s300 = smul.addr %s299, 2
      %s301 = scalar_lea.vmem %s0, %s300
      %s302 = sadd.s32 %s22, 1
      %p303 = scmp.lt.s32.totalorder %s21, 1
      %s304 = scalar_select %p303, %s21, 1
      %p305 = scmp.lt.s32.totalorder %s302, 1
      %s306 = scalar_select %p305, %s302, 1
      %s307 = smul.addr %s304, 2
      %s308 = sadd.s32 %s306, %s307
      %s309 = smul.addr %s308, 2
      %s310 = scalar_lea.vmem %s1, %s309
      %s311 = sadd.s32 %s22, 1
      %p312 = scmp.lt.s32.totalorder %s21, 1
      %s313 = scalar_select %p312, %s21, 1
      %p314 = scmp.lt.s32.totalorder %s22, 0
      %s315 = scalar_select %p314, %s22, 0
      %s316 = sadd.s32 %s315, %s313
      %s317 = smul.addr %s316, 8
      %s318 = scalar_lea.vmem %s6, %s317
      %v320 = vld [vmem:[%s301] sm:$0x3]
      %v321 = vld [vmem:[%s310] sm:$0x3]
      %322 = vst [vmem:[#allocation2] sm:$0x3] %v320
      %vm323 = vcmask 58368
      %324 = vst.msk [vmem:[#allocation2 + $0x4] sm:$0x3] %vm323, %v321
      %v326 = vcombine.low %v320, %v320
      %v328 = vunpack.c.l.s4 1983009808
      %v329 = vunpack.c.0.s8 %v328
      %v330 = vlaneseq
      %v331 = vshrl.u32 %v330, 7
      %v332 = vsub.s32 %v329, %v331
      %v333 = vrot.slane %v326, %v332
      %334 = vrot.lane.b32.xlu0 %v333, 127
      %v335 = vpop.permute.xlu0 %334
      %vm337 = vcmask 1035266
      %338 = vst.msk [vmem:[#allocation2] sm:$0xc] %vm337, %v335
      %v340 = vcombine.low %v321, %v321
      %v342 = vunpack.c.l.s4 1983009808
      %v343 = vunpack.c.0.s8 %v342
      %v344 = vlaneseq
      %v345 = vshrl.u32 %v344, 7
      %v346 = vsub.s32 %v343, %v345
      %v347 = vrot.slane %v340, %v346
      %348 = vrot.lane.b32.xlu0 %v347, 127
      %v349 = vpop.permute.xlu0 %348
      %v350 = vrot.slane %v349, 4
      %vm351 = vcmask 1039360
      %v352 = vsel %vm351, %v350, %v349
      %vm354 = vcmask 1044474
      %vm355 = vcmask 64518
      %vm356 = vmor %vm355, %vm354
      %357 = vst.msk [vmem:[#allocation2] sm:$0xcc] %vm356, %v352
      %v359 = vunpack.c.l.s4 1983009808
      %v360 = vunpack.c.0.s8 %v359
      %v361 = vlaneseq
      %v362 = vshrl.u32 %v361, 7
      %v363 = vsub.s32 %v360, %v362
      %v364 = vrot.slane %v320, %v363
      %365 = vrot.lane.b32.xlu0 %v364, 126
      %v366 = vpop.permute.xlu0 %365
      %vm368 = vcmask 1025024
      %369 = vst.msk [vmem:[#allocation2 + $0x8] sm:$0x3] %vm368, %v366
      %v371 = vunpack.c.l.s4 1983009808
      %v372 = vunpack.c.0.s8 %v371
      %v373 = vlaneseq
      %v374 = vshrl.u32 %v373, 7
      %v375 = vsub.s32 %v372, %v374
      %v376 = vrot.slane %v321, %v375
      %377 = vrot.lane.b32.xlu0 %v376, 126
      %v378 = vpop.permute.xlu0 %377
      %v379 = vrot.slane %v378, 4
      %vm380 = vcmask 1031168
      %v381 = vsel %vm380, %v379, %v378
      %vm383 = vcmask 1042416
      %vm384 = vcmask 62468
      %vm385 = vmor %vm384, %vm383
      %386 = vst.msk [vmem:[#allocation2 + $0x8] sm:$0x33] %vm385, %v381
      %387 = vrot.lane.b32.xlu0 %v333, 125
      %v388 = vpop.permute.xlu0 %387
      %vm390 = vcmask 1018882
      %391 = vst.msk [vmem:[#allocation2 + $0x8] sm:$0xc] %vm390, %v388
      %392 = vrot.lane.b32.xlu0 %v347, 125
      %v393 = vpop.permute.xlu0 %392
      %v394 = vrot.slane %v393, 4
      %vm395 = vcmask 1022976
      %v396 = vsel %vm395, %v394, %v393
      %vm398 = vcmask 1044458
      %vm399 = vmor %vm355, %vm398
      %400 = vst.msk [vmem:[#allocation2 + $0x8] sm:$0xcc] %vm399, %v396
      %401 = vrot.lane.b32.xlu0 %v364, 124
      %v402 = vpop.permute.xlu0 %401
      %vm404 = vcmask 1008640
      %405 = vst.msk [vmem:[#allocation2 + $0x10] sm:$0x3] %vm404, %v402
      %406 = vrot.lane.b32.xlu0 %v376, 124
      %v407 = vpop.permute.xlu0 %406
      %v408 = vrot.slane %v407, 4
      %vm409 = vcmask 1014784
      %v410 = vsel %vm409, %v408, %v407
      %vm412 = vcmask 1042400
      %vm413 = vmor %vm384, %vm412
      %414 = vst.msk [vmem:[#allocation2 + $0x10] sm:$0x33] %vm413, %v410
      %415 = vrot.lane.b32.xlu0 %v333, 123
      %v416 = vpop.permute.xlu0 %415
      %vm418 = vcmask 1002498
      %419 = vst.msk [vmem:[#allocation2 + $0x10] sm:$0xc] %vm418, %v416
      %420 = vrot.lane.b32.xlu0 %v347, 123
      %v421 = vpop.permute.xlu0 %420
      %v422 = vrot.slane %v421, 4
      %vm423 = vcmask 1006592
      %v424 = vsel %vm423, %v422, %v421
      %vm426 = vcmask 1044442
      %vm427 = vmor %vm355, %vm426
      %428 = vst.msk [vmem:[#allocation2 + $0x10] sm:$0xcc] %vm427, %v424
      %429 = vrot.lane.b32.xlu0 %v364, 122
      %v430 = vpop.permute.xlu0 %429
      %vm432 = vcmask 992256
      %433 = vst.msk [vmem:[#allocation2 + $0x18] sm:$0x3] %vm432, %v430
      %434 = vrot.lane.b32.xlu0 %v376, 122
      %v435 = vpop.permute.xlu0 %434
      %v436 = vrot.slane %v435, 4
      %vm437 = vcmask 998400
      %v438 = vsel %vm437, %v436, %v435
      %vm440 = vcmask 1042384
      %vm441 = vmor %vm384, %vm440
      %442 = vst.msk [vmem:[#allocation2 + $0x18] sm:$0x33] %vm441, %v438
      %443 = vrot.lane.b32.xlu0 %v333, 121
      %v444 = vpop.permute.xlu0 %443
      %vm446 = vcmask 986114
      %447 = vst.msk [vmem:[#allocation2 + $0x18] sm:$0xc] %vm446, %v444
      %448 = vrot.lane.b32.xlu0 %v347, 121
      %v449 = vpop.permute.xlu0 %448
      %v450 = vrot.slane %v449, 4
      %vm451 = vcmask 990208
      %v452 = vsel %vm451, %v450, %v449
      %vm454 = vcmask 1044426
      %vm455 = vmor %vm355, %vm454
      %456 = vst.msk [vmem:[#allocation2 + $0x18] sm:$0xcc] %vm455, %v452
      %457 = vrot.lane.b32.xlu0 %v364, 120
      %v458 = vpop.permute.xlu0 %457
      %vm460 = vcmask 975872
      %461 = vst.msk [vmem:[#allocation2 + $0x20] sm:$0x3] %vm460, %v458
      %462 = vrot.lane.b32.xlu0 %v376, 120
      %v463 = vpop.permute.xlu0 %462
      %v464 = vrot.slane %v463, 4
      %vm465 = vcmask 982016
      %v466 = vsel %vm465, %v464, %v463
      %vm468 = vcmask 1042368
      %vm469 = vmor %vm384, %vm468
      %470 = vst.msk [vmem:[#allocation2 + $0x20] sm:$0x33] %vm469, %v466
      %471 = vrot.lane.b32.xlu0 %v333, 119
      %v472 = vpop.permute.xlu0 %471
      %vm474 = vcmask 969730
      %475 = vst.msk [vmem:[#allocation2 + $0x20] sm:$0xc] %vm474, %v472
      %476 = vrot.lane.b32.xlu0 %v347, 119
      %v477 = vpop.permute.xlu0 %476
      %v478 = vrot.slane %v477, 4
      %vm479 = vcmask 973824
      %v480 = vsel %vm479, %v478, %v477
      %vm482 = vcmask 1044410
      %vm483 = vmor %vm355, %vm482
      %484 = vst.msk [vmem:[#allocation2 + $0x20] sm:$0xcc] %vm483, %v480
      %485 = vrot.lane.b32.xlu0 %v364, 118
      %v486 = vpop.permute.xlu0 %485
      %vm488 = vcmask 959488
      %489 = vst.msk [vmem:[#allocation2 + $0x28] sm:$0x3] %vm488, %v486
      %490 = vrot.lane.b32.xlu0 %v376, 118
      %v491 = vpop.permute.xlu0 %490
      %v492 = vrot.slane %v491, 4
      %vm493 = vcmask 965632
      %v494 = vsel %vm493, %v492, %v491
      %vm496 = vcmask 1042352
      %vm497 = vmor %vm384, %vm496
      %498 = vst.msk [vmem:[#allocation2 + $0x28] sm:$0x33] %vm497, %v494
      %v499 = vld [vmem:[%s2] sm:$0xf]
      %v500 = vld [vmem:[%s2 + $0x4] sm:$0xf]
      %v501 = vld [vmem:[%s2 + $0x8] sm:$0xf]
      %v502 = vld [vmem:[%s2 + $0xc] sm:$0xf]
      %v503 = vld [vmem:[#allocation2] sm:$0xff]
      %v504 = vld [vmem:[#allocation2 + $0x8] sm:$0xff]
      %v505 = vld [vmem:[#allocation2 + $0x10] sm:$0xff]
      %v506 = vld [vmem:[#allocation2 + $0x18] sm:$0xff]
      %v507 = vld [vmem:[#allocation2 + $0x20] sm:$0xff]
      %v508 = vld [vmem:[#allocation2 + $0x28] sm:$0x33]
      %v513 = vunpack.c.l.b16 %v499
      %v514 = vunpack.c.l.b16 %v500
      %v515 = vunpack.c.l.b16 %v501
      %v516 = vunpack.c.l.b16 %v502
      %v517 = vpack.c.b16 %v514, %v513
      %v518 = vpack.c.b16 %v516, %v515
      %v525 = vunpack.c.l.b16 %v503
      %v526 = vunpack.c.h.b16 %v503
      %v527 = vunpack.c.l.b16 %v504
      %v528 = vunpack.c.h.b16 %v504
      %v529 = vunpack.c.l.b16 %v505
      %v530 = vunpack.c.h.b16 %v505
      %v531 = vunpack.c.l.b16 %v506
      %v532 = vunpack.c.h.b16 %v506
      %v533 = vunpack.c.l.b16 %v507
      %v534 = vunpack.c.h.b16 %v507
      %v535 = vunpack.c.l.b16 %v508
      %v536 = vunpack.c.h.b16 %v508
      %v537 = vpack.c.b16 %v527, %v525
      %v538 = vpack.c.b16 %v528, %v526
      %v539 = vpack.c.b16 %v531, %v529
      %v540 = vpack.c.b16 %v532, %v530
      %v541 = vpack.c.b16 %v535, %v533
      %v542 = vpack.c.b16 %v536, %v534
      %vm547 = vcmask 359424
      %v549 = vsel %vm547, %v517, 0
      %v552 = vsel %vm547, %v518, 0
      %vm554 = vcmask 1045504
      %v556 = vsel %vm554, %v541, 0
      %v559 = vsel %vm554, %v542, 0
      %561 = vmatprep.subr.bf16.mxu0 0
      %562 = vmatpush1.bf16.msra.mxu0 0
      %563 = vmatprep.subr.bf16.mxu0 0
      %564 = vmatpush1.bf16.msra.mxu0 0
      %565 = vmatprep.subr.bf16.mxu0 0
      %566 = vmatpush1.bf16.msra.mxu0 0
      %567 = vmatprep.subr.bf16.mxu0 0
      %568 = vmatpush1.bf16.msra.mxu0 0
      %569 = vmatprep.subr.bf16.mxu0 0
      %570 = vmatpush1.bf16.msra.mxu0 0
      %571 = vmatprep.subr.bf16.mxu0 %v559
      %572 = vmatpush1.bf16.msra.mxu0 %v556
      %573 = vmatprep.subr.bf16.mxu0 %v540
      %574 = vmatpush1.bf16.msra.mxu0 %v539
      %575 = vmatprep.subr.bf16.mxu0 %v538
      %576 = vmatpush1.bf16.msra.mxu0 %v537
      %577 = vmatprep.subr.bf16.mxu0 0
      %578 = vmatpush2.bf16.msra.mxu0 0
      %579 = vmatprep.subr.bf16.mxu0 0
      %580 = vmatpush2.bf16.msra.mxu0 0
      %581 = vmatprep.subr.bf16.mxu0 0
      %582 = vmatpush2.bf16.msra.mxu0 0
      %583 = vmatprep.subr.bf16.mxu0 0
      %584 = vmatpush2.bf16.msra.mxu0 0
      %585 = vmatprep.subr.bf16.mxu0 0
      %586 = vmatpush2.bf16.msra.mxu0 0
      %587 = vmatprep.subr.bf16.mxu0 0
      %588 = vmatpush2.bf16.msra.mxu0 0
      %589 = vmatprep.subr.bf16.mxu0 0
      %590 = vmatpush2.bf16.msra.mxu0 0
      %591 = vmatprep.subr.bf16.mxu0 0
      %592 = vmatpush2.bf16.msra.mxu0 0
      %593 = vmatprep.mubr.bf16.mxu0 0
      %594 = vmatmul.mubr.bf16.gmra.mxu0 %v549
      %v595 = vpop.f32.mrf.mxu0
      %v596 = vadd.f32 0.0, %v595
      %v597 = vpop.f32.mrf.mxu0
      %v598 = vadd.f32 0.0, %v597
      %v599 = vpop.f32.mrf.mxu0
      %v600 = vadd.f32 0.0, %v599
      %v601 = vpop.f32.mrf.mxu0
      %v602 = vadd.f32 0.0, %v601
      %603 = vmatprep.mubr.bf16.mxu0 0
      %604 = vmatmul.mubr.bf16.gmra.mxu0 %v552
      %v605 = vpop.f32.mrf.mxu0
      %v606 = vadd.f32 0.0, %v605
      %v607 = vpop.f32.mrf.mxu0
      %v608 = vadd.f32 0.0, %v607
      %v609 = vpop.f32.mrf.mxu0
      %v610 = vpop.f32.mrf.mxu0
      %611 = vdwg.mxu0
      %v612 = vld [vmem:[%s3] sm:$0xff]
      %v613 = vld [vmem:[%s3 + $0x8] sm:$0xff]
      %v614 = vld [vmem:[%s3 + $0x10] sm:$0xff]
      %616 = vset.pattern.permute.xlu0 0
      %617 = vperm.xlu0 %616, %v612
      %v618 = vpop.permute.xlu0 %617
      %621 = vset.pattern.permute.xlu0 0
      %622 = vperm.xlu0 %621, %v613
      %v623 = vpop.permute.xlu0 %622
      %626 = vset.pattern.permute.xlu0 0
      %627 = vperm.xlu0 %626, %v614
      %v628 = vpop.permute.xlu0 %627
      %v630 = vmul.f32 %v596, %v618
      %v631 = vmul.f32 %v598, %v618
      %v632 = vmul.f32 %v600, %v623
      %v633 = vmul.f32 %v602, %v623
      %v634 = vmul.f32 %v606, %v628
      %v635 = vmul.f32 %v608, %v628
      %v636 = vld [vmem:[%s4] sm:$0xff]
      %v637 = vld [vmem:[%s4 + $0x8] sm:$0xff]
      %v638 = vld [vmem:[%s4 + $0x10] sm:$0xff]
      %640 = vset.pattern.permute.xlu0 0
      %641 = vperm.xlu0 %640, %v636
      %v642 = vpop.permute.xlu0 %641
      %645 = vset.pattern.permute.xlu0 0
      %646 = vperm.xlu0 %645, %v637
      %v647 = vpop.permute.xlu0 %646
      %650 = vset.pattern.permute.xlu0 0
      %651 = vperm.xlu0 %650, %v638
      %v652 = vpop.permute.xlu0 %651
      %v654 = vadd.f32 %v630, %v642
      %v655 = vadd.f32 %v631, %v642
      %v656 = vadd.f32 %v632, %v647
      %v657 = vadd.f32 %v633, %v647
      %v658 = vadd.f32 %v634, %v652
      %v659 = vadd.f32 %v635, %v652
      %v660 = vmax.f32 %v654, 0.0
      %v661 = vmax.f32 %v655, 0.0
      %v662 = vmax.f32 %v656, 0.0
      %v663 = vmax.f32 %v657, 0.0
      %v664 = vmax.f32 %v658, 0.0
      %v665 = vmax.f32 %v659, 0.0
      %s666 = smul.u32 %s22, 128
      %s667 = ssub.s32 %s666, 4
      %v668 = vlaneseq
      %v669 = vand.u32 %v668, 127
      %v670 = vadd.s32 %v669, 128
      %v671 = vstv %s667
      %v672 = vadd.s32 %v671, %v669
      %v673 = vadd.s32 %v671, %v670
      %vm674 = vcmp.ge.s32.totalorder %v672, 0
      %vm675 = vcmp.ge.s32.totalorder %v673, 0
      %vm676 = vcmp.lt.s32.totalorder %v672, 16
      %vm677 = vcmp.lt.s32.totalorder %v673, 16
      %vm678 = vmand %vm674, %vm676
      %vm679 = vmand %vm675, %vm677
      %v680 = vsel %vm678, 1, 0
      %v681 = vsel %vm679, 1, 0
      %vm682 = vcmp.eq.s32.totalorder %v680, 1
      %vm683 = vcmp.eq.s32.totalorder %v681, 1
      %v684 = vsel %vm682, %v660, 0.0
      %v685 = vsel %vm683, %v661, 0.0
      %v686 = vsel %vm682, %v662, 0.0
      %v687 = vsel %vm683, %v663, 0.0
      %v688 = vsel %vm682, %v664, 0.0
      %v689 = vsel %vm683, %v665, 0.0
      %v690 = vpack.c.bf16 %v686, %v684
      %v691 = vpack.c.bf16 %v687, %v685
      %v692 = vpack.c.bf16 %v688, %v688
      %v693 = vpack.c.bf16 %v689, %v689
      %v696 = vunpack.c.l.b16 %v690
      %v697 = vunpack.c.h.b16 %v690
      %v698 = vunpack.c.l.b16 %v692
      %v699 = vpack.c.b16 %v696, %v696
      %v700 = vpack.c.b16 %v697, %v697
      %v701 = vpack.c.b16 %v698, %v698
      %705 = vst [vmem:[#allocation3] sm:$0xf] %v699
      %706 = vst [vmem:[#allocation3 + $0x4] sm:$0xf] %v700
      %707 = vst [vmem:[#allocation3 + $0x8] sm:$0xf] %v701
      %v710 = vunpack.c.l.b16 %v691
      %v711 = vunpack.c.h.b16 %v691
      %v712 = vunpack.c.l.b16 %v693
      %v713 = vpack.c.b16 %v710, %v696
      %v714 = vpack.c.b16 %v711, %v697
      %v715 = vpack.c.b16 %v712, %v698
      %716 = vrot.lane.b32.xlu0 %v713, 127
      %v717 = vpop.permute.xlu0 %716
      %718 = vrot.lane.b32.xlu0 %v714, 127
      %v719 = vpop.permute.xlu0 %718
      %720 = vrot.lane.b32.xlu0 %v715, 127
      %v721 = vpop.permute.xlu0 %720
      %v722 = vrot.slane %v717, 4
      %v723 = vrot.slane %v719, 4
      %v724 = vrot.slane %v721, 4
      %v725 = vsel %vm351, %v717, %v722
      %v726 = vsel %vm351, %v719, %v723
      %v727 = vsel %vm351, %v721, %v724
      %731 = vst [vmem:[#allocation3 + $0xc] sm:$0xf] %v725
      %732 = vst [vmem:[#allocation3 + $0x10] sm:$0xf] %v726
      %733 = vst [vmem:[#allocation3 + $0x14] sm:$0xf] %v727
      %734 = vrot.lane.b32.xlu0 %v713, 126
      %v735 = vpop.permute.xlu0 %734
      %736 = vrot.lane.b32.xlu0 %v714, 126
      %v737 = vpop.permute.xlu0 %736
      %738 = vrot.lane.b32.xlu0 %v715, 126
      %v739 = vpop.permute.xlu0 %738
      %v740 = vrot.slane %v735, 4
      %v741 = vrot.slane %v737, 4
      %v742 = vrot.slane %v739, 4
      %v743 = vsel %vm380, %v735, %v740
      %v744 = vsel %vm380, %v737, %v741
      %v745 = vsel %vm380, %v739, %v742
      %749 = vst [vmem:[#allocation3 + $0x18] sm:$0xf] %v743
      %750 = vst [vmem:[#allocation3 + $0x1c] sm:$0xf] %v744
      %751 = vst [vmem:[#allocation3 + $0x20] sm:$0xf] %v745
      %752 = vrot.lane.b32.xlu0 %v713, 125
      %v753 = vpop.permute.xlu0 %752
      %754 = vrot.lane.b32.xlu0 %v714, 125
      %v755 = vpop.permute.xlu0 %754
      %756 = vrot.lane.b32.xlu0 %v715, 125
      %v757 = vpop.permute.xlu0 %756
      %v758 = vrot.slane %v753, 4
      %v759 = vrot.slane %v755, 4
      %v760 = vrot.slane %v757, 4
      %v761 = vsel %vm395, %v753, %v758
      %v762 = vsel %vm395, %v755, %v759
      %v763 = vsel %vm395, %v757, %v760
      %767 = vst [vmem:[#allocation3 + $0x24] sm:$0xf] %v761
      %768 = vst [vmem:[#allocation3 + $0x28] sm:$0xf] %v762
      %769 = vst [vmem:[#allocation3 + $0x2c] sm:$0xf] %v763
      %770 = vrot.lane.b32.xlu0 %v713, 124
      %v771 = vpop.permute.xlu0 %770
      %772 = vrot.lane.b32.xlu0 %v714, 124
      %v773 = vpop.permute.xlu0 %772
      %774 = vrot.lane.b32.xlu0 %v715, 124
      %v775 = vpop.permute.xlu0 %774
      %v776 = vrot.slane %v771, 4
      %v777 = vrot.slane %v773, 4
      %v778 = vrot.slane %v775, 4
      %v779 = vsel %vm409, %v771, %v776
      %v780 = vsel %vm409, %v773, %v777
      %v781 = vsel %vm409, %v775, %v778
      %785 = vst [vmem:[#allocation3 + $0x30] sm:$0xf] %v779
      %786 = vst [vmem:[#allocation3 + $0x34] sm:$0xf] %v780
      %787 = vst [vmem:[#allocation3 + $0x38] sm:$0xf] %v781
      %788 = vrot.lane.b32.xlu0 %v713, 123
      %v789 = vpop.permute.xlu0 %788
      %790 = vrot.lane.b32.xlu0 %v714, 123
      %v791 = vpop.permute.xlu0 %790
      %792 = vrot.lane.b32.xlu0 %v715, 123
      %v793 = vpop.permute.xlu0 %792
      %v794 = vrot.slane %v789, 4
      %v795 = vrot.slane %v791, 4
      %v796 = vrot.slane %v793, 4
      %v797 = vsel %vm423, %v789, %v794
      %v798 = vsel %vm423, %v791, %v795
      %v799 = vsel %vm423, %v793, %v796
      %803 = vst [vmem:[#allocation3 + $0x3c] sm:$0xf] %v797
      %804 = vst [vmem:[#allocation3 + $0x40] sm:$0xf] %v798
      %805 = vst [vmem:[#allocation3 + $0x44] sm:$0xf] %v799
      %806 = vrot.lane.b32.xlu0 %v713, 122
      %v807 = vpop.permute.xlu0 %806
      %808 = vrot.lane.b32.xlu0 %v714, 122
      %v809 = vpop.permute.xlu0 %808
      %810 = vrot.lane.b32.xlu0 %v715, 122
      %v811 = vpop.permute.xlu0 %810
      %v812 = vrot.slane %v807, 4
      %v813 = vrot.slane %v809, 4
      %v814 = vrot.slane %v811, 4
      %v815 = vsel %vm437, %v807, %v812
      %v816 = vsel %vm437, %v809, %v813
      %v817 = vsel %vm437, %v811, %v814
      %821 = vst [vmem:[#allocation3 + $0x48] sm:$0xf] %v815
      %822 = vst [vmem:[#allocation3 + $0x4c] sm:$0xf] %v816
      %823 = vst [vmem:[#allocation3 + $0x50] sm:$0xf] %v817
      %824 = vrot.lane.b32.xlu0 %v713, 121
      %v825 = vpop.permute.xlu0 %824
      %826 = vrot.lane.b32.xlu0 %v714, 121
      %v827 = vpop.permute.xlu0 %826
      %828 = vrot.lane.b32.xlu0 %v715, 121
      %v829 = vpop.permute.xlu0 %828
      %v830 = vrot.slane %v825, 4
      %v831 = vrot.slane %v827, 4
      %v832 = vrot.slane %v829, 4
      %v833 = vsel %vm451, %v825, %v830
      %v834 = vsel %vm451, %v827, %v831
      %v835 = vsel %vm451, %v829, %v832
      %839 = vst [vmem:[#allocation3 + $0x54] sm:$0xf] %v833
      %840 = vst [vmem:[#allocation3 + $0x58] sm:$0xf] %v834
      %841 = vst [vmem:[#allocation3 + $0x5c] sm:$0xf] %v835
      %842 = vrot.lane.b32.xlu0 %v713, 120
      %v843 = vpop.permute.xlu0 %842
      %844 = vrot.lane.b32.xlu0 %v714, 120
      %v845 = vpop.permute.xlu0 %844
      %846 = vrot.lane.b32.xlu0 %v715, 120
      %v847 = vpop.permute.xlu0 %846
      %v848 = vrot.slane %v843, 4
      %v849 = vrot.slane %v845, 4
      %v850 = vrot.slane %v847, 4
      %v851 = vsel %vm465, %v843, %v848
      %v852 = vsel %vm465, %v845, %v849
      %v853 = vsel %vm465, %v847, %v850
      %857 = vst [vmem:[#allocation3 + $0x60] sm:$0xf] %v851
      %858 = vst [vmem:[#allocation3 + $0x64] sm:$0xf] %v852
      %859 = vst [vmem:[#allocation3 + $0x68] sm:$0xf] %v853
      %v860 = vld [vmem:[%s5] sm:$0xff]
      %v861 = vld [vmem:[#allocation3] sm:$0xf]
      %v862 = vld [vmem:[#allocation3 + $0x4] sm:$0xf]
      %v863 = vld [vmem:[#allocation3 + $0x8] sm:$0xf]
      %v864 = vld [vmem:[#allocation3 + $0xc] sm:$0xf]
      %v865 = vld [vmem:[#allocation3 + $0x10] sm:$0xf]
      %v866 = vld [vmem:[#allocation3 + $0x14] sm:$0xf]
      %v867 = vld [vmem:[#allocation3 + $0x18] sm:$0xf]
      %v868 = vld [vmem:[#allocation3 + $0x1c] sm:$0xf]
      %v869 = vld [vmem:[#allocation3 + $0x20] sm:$0xf]
      %v870 = vld [vmem:[#allocation3 + $0x24] sm:$0xf]
      %v871 = vld [vmem:[#allocation3 + $0x28] sm:$0xf]
      %v872 = vld [vmem:[#allocation3 + $0x2c] sm:$0xf]
      %v873 = vld [vmem:[#allocation3 + $0x30] sm:$0xf]
      %v874 = vld [vmem:[#allocation3 + $0x34] sm:$0xf]
      %v875 = vld [vmem:[#allocation3 + $0x38] sm:$0xf]
      %v876 = vld [vmem:[#allocation3 + $0x3c] sm:$0xf]
      %v877 = vld [vmem:[#allocation3 + $0x40] sm:$0xf]
      %v878 = vld [vmem:[#allocation3 + $0x44] sm:$0xf]
      %v879 = vld [vmem:[#allocation3 + $0x48] sm:$0xf]
      %v880 = vld [vmem:[#allocation3 + $0x4c] sm:$0xf]
      %v881 = vld [vmem:[#allocation3 + $0x50] sm:$0xf]
      %v882 = vld [vmem:[#allocation3 + $0x54] sm:$0xf]
      %v883 = vld [vmem:[#allocation3 + $0x58] sm:$0xf]
      %v884 = vld [vmem:[#allocation3 + $0x5c] sm:$0xf]
      %v885 = vld [vmem:[#allocation3 + $0x60] sm:$0xf]
      %v886 = vld [vmem:[#allocation3 + $0x64] sm:$0xf]
      %v887 = vld [vmem:[#allocation3 + $0x68] sm:$0xf]
      %v889 = vunpack.c.l.b16 %v860
      %v890 = vunpack.c.h.b16 %v860
      %v891 = vpack.c.b16 %v889, %v889
      %v892 = vpack.c.b16 %v890, %v890
      %v921 = vunpack.c.l.b16 %v861
      %v922 = vunpack.c.l.b16 %v862
      %v923 = vunpack.c.l.b16 %v863
      %v924 = vunpack.c.l.b16 %v864
      %v925 = vunpack.c.l.b16 %v865
      %v926 = vunpack.c.l.b16 %v866
      %v927 = vunpack.c.l.b16 %v867
      %v928 = vunpack.c.l.b16 %v868
      %v929 = vunpack.c.l.b16 %v869
      %v930 = vunpack.c.l.b16 %v870
      %v931 = vunpack.c.l.b16 %v871
      %v932 = vunpack.c.l.b16 %v872
      %v933 = vunpack.c.l.b16 %v873
      %v934 = vunpack.c.l.b16 %v874
      %v935 = vunpack.c.l.b16 %v875
      %v936 = vunpack.c.l.b16 %v876
      %v937 = vunpack.c.l.b16 %v877
      %v938 = vunpack.c.l.b16 %v878
      %v939 = vunpack.c.l.b16 %v879
      %v940 = vunpack.c.l.b16 %v880
      %v941 = vunpack.c.l.b16 %v881
      %v942 = vunpack.c.l.b16 %v882
      %v943 = vunpack.c.l.b16 %v883
      %v944 = vunpack.c.l.b16 %v884
      %v945 = vunpack.c.l.b16 %v885
      %v946 = vunpack.c.l.b16 %v886
      %v947 = vunpack.c.l.b16 %v887
      %v948 = vpack.c.b16 %v922, %v921
      %v949 = vpack.c.b16 %v924, %v923
      %v950 = vpack.c.b16 %v926, %v925
      %v951 = vpack.c.b16 %v928, %v927
      %v952 = vpack.c.b16 %v930, %v929
      %v953 = vpack.c.b16 %v932, %v931
      %v954 = vpack.c.b16 %v934, %v933
      %v955 = vpack.c.b16 %v936, %v935
      %v956 = vpack.c.b16 %v938, %v937
      %v957 = vpack.c.b16 %v940, %v939
      %v958 = vpack.c.b16 %v942, %v941
      %v959 = vpack.c.b16 %v944, %v943
      %v960 = vpack.c.b16 %v946, %v945
      %v961 = vpack.c.b16 %v947, %v947
      %vm975 = vcmask 719872
      %v977 = vsel %vm975, %v892, 0
      %vm979 = vcmask 1043456
      %v981 = vsel %vm979, %v961, 0
      %983 = vmatprep.subr.bf16.mxu0 0
      %984 = vmatpush1.bf16.msra.mxu0 %v955
      %985 = vmatprep.subr.bf16.mxu0 0
      %986 = vmatpush1.bf16.msra.mxu0 %v954
      %987 = vmatprep.subr.bf16.mxu0 0
      %988 = vmatpush1.bf16.msra.mxu0 %v953
      %989 = vmatprep.subr.bf16.mxu0 0
      %990 = vmatpush1.bf16.msra.mxu0 %v952
      %991 = vmatprep.subr.bf16.mxu0 0
      %992 = vmatpush1.bf16.msra.mxu0 %v951
      %993 = vmatprep.subr.bf16.mxu0 0
      %994 = vmatpush1.bf16.msra.mxu0 %v950
      %995 = vmatprep.subr.bf16.mxu0 0
      %996 = vmatpush1.bf16.msra.mxu0 %v949
      %997 = vmatprep.subr.bf16.mxu0 0
      %998 = vmatpush1.bf16.msra.mxu0 %v948
      %999 = vmatprep.subr.bf16.mxu0 0
      %1000 = vmatpush2.bf16.msra.mxu0 0
      %1001 = vmatprep.subr.bf16.mxu0 0
      %1002 = vmatpush2.bf16.msra.mxu0 0
      %1003 = vmatprep.subr.bf16.mxu0 0
      %1004 = vmatpush2.bf16.msra.mxu0 %v981
      %1005 = vmatprep.subr.bf16.mxu0 0
      %1006 = vmatpush2.bf16.msra.mxu0 %v960
      %1007 = vmatprep.subr.bf16.mxu0 0
      %1008 = vmatpush2.bf16.msra.mxu0 %v959
      %1009 = vmatprep.subr.bf16.mxu0 0
      %1010 = vmatpush2.bf16.msra.mxu0 %v958
      %1011 = vmatprep.subr.bf16.mxu0 0
      %1012 = vmatpush2.bf16.msra.mxu0 %v957
      %1013 = vmatprep.subr.bf16.mxu0 0
      %1014 = vmatpush2.bf16.msra.mxu0 %v956
      %1015 = vmatprep.mubr.bf16.mxu0 %v977
      %1016 = vmatmul.mubr.bf16.gmra.mxu0 %v891
      %v1017 = vpop.f32.mrf.mxu0
      %v1018 = vadd.f32 0.0, %v1017
      %v1019 = vpop.f32.mrf.mxu0
      %v1020 = vpop.f32.mrf.mxu0
      %v1021 = vpop.f32.mrf.mxu0
      %1022 = vdwg.mxu0
      %v1023 = vstv %s666
      %v1024 = vadd.s32 %v1023, %v669
      %vm1025 = vcmp.lt.s32.totalorder %v1024, 16
      %v1026 = vsel %vm1025, 1, 0
      %vm1027 = vcmp.eq.s32.totalorder %v1026, 1
      %v1028 = vsel %vm1027, %v1018, 0.0
      %1029 = vadd.xlane.f32.xlu0 %v1028
      %v1030 = vpop.xlane.xlu0 %1029
      %v1031 = vmul.f32 %v1028, %v1028
      %1032 = vadd.xlane.f32.xlu0 %v1031
      %v1033 = vpop.xlane.xlu0 %1032
      %vm1034 = vcmask 7168
      %v1035 = vsel %vm1034, %v1030, %v1033
      %vm1036 = vcmask 15360
      %1037 = vst.msk [vmem:[%s318] sm:$0xff] %vm1036, %v1035
      %p1038 = scmp.lt.s32.totalorder %s21, 1
      %s1039 = scalar_select %p1038, %s21, 1
      %p1040 = scmp.lt.s32.totalorder %s22, 0
      %s1041 = scalar_select %p1040, %s22, 0
      %s1042 = sadd.s32 %s1041, %s1039
      %s1043 = smul.addr %s1042, 8
      %s1044 = scalar_lea.vmem %s6, %s1043
      // Predicated region
      $region45: #{imsf_block_forward.4} parent=43 // pred_check
        %p1045 = pneg %p191
      $region46: #{imsf_block_forward.4} parent=43 // pred_check_branch
        %1047 = sbr.rel (%p1045) target = $region48
      $region47: #{imsf_block_forward.4} parent=43 // pred_region
        _
      $region48: #{imsf_block_forward.4} parent=43 // pred_fallthru
        _
    $region44: #{imsf_block_forward.4} parent=5 // pred_fallthru
      _
    %p1048 = scmp.le.s32.totalorder 2, %s12
    // Predicated region
    $region49: #{imsf_block_forward.4} parent=5 // pred_check
      %p1049 = pneg %p1048
    $region50: #{imsf_block_forward.4} parent=5 // pred_check_branch
      %1051 = sbr.rel (%p1049) target = $region52
    $region51: #{imsf_block_forward.4} parent=5 // pred_region
      %s1052 = ssub.s32 %s12, 2
      // Predicated region
      $region53: #{imsf_block_forward.4} parent=51 // pred_check
        %p1053 = pneg %p197
      $region54: #{imsf_block_forward.4} parent=51 // pred_check_branch
        %1055 = sbr.rel (%p1053) target = $region56
      $region55: #{imsf_block_forward.4} parent=51 // pred_region
        %p1056 = scmp.lt.s32.totalorder %s23, 1
        %s1057 = scalar_select %p1056, %s23, 1
        %p1058 = scmp.lt.s32.totalorder %s24, 0
        %s1059 = scalar_select %p1058, %s24, 0
        %s1060 = sadd.s32 %s1059, %s1057
        %s1061 = smul.addr %s1060, 8
        %s1062 = scalar_lea.vmem %s6, %s1061
      $region56: #{imsf_block_forward.4} parent=51 // pred_fallthru
        _
    $region52: #{imsf_block_forward.4} parent=5 // pred_fallthru
      _
  $region6: #{imsf_block_forward.4} parent=0 // loop_footer
    %s16 = sadd.s32 1, %s12
  $region7: #{imsf_block_forward.4} parent=0 // loop_footer_branch
    %11 = sbr.rel target = $region3
  $region8: #{imsf_block_forward.4} parent=0 // loop_exit
    _

// kernel: imsf_block_forward.5
$region0: #{imsf_block_forward.5}
  #allocation0 [shape = 'u32[]', space=smem, size = 0x4, offset = 0x4, fixed_abs, tag = 'smem constant byte address 0x4 - core index']
  #allocation1 [shape = 'u32[144,128]{1,0:T(1,128)}', space=vmem, size = 0x12000, scoped, tag = 'internal scratch']
  #allocation2 [shape = 'bf16[44,136]{1,0:T(8,128)(2,1)}', space=vmem, size = 0x6000, scoped, tag = 'scratch operand']
  #allocation3 [shape = 'bf16[216,128]{1,0:T(8,128)(2,1)}', space=vmem, size = 0xd800, scoped, tag = 'scratch operand']
  %s0 = inlined_call_operand.vmem [shape: bf16[2,4,256], index: 0, kind: input, shape index: {}, may-alias: {0,1}]
  %s1 = inlined_call_operand.vmem [shape: bf16[2,4,256], index: 1, kind: input, shape index: {}, may-alias: {0,1}]
  %s2 = inlined_call_operand.vmem [shape: bf16[32,44], index: 2, kind: input, shape index: {}]
  %s3 = inlined_call_operand.vmem [shape: f32[32,1], index: 3, kind: input, shape index: {}]
  %s4 = inlined_call_operand.vmem [shape: f32[32,1], index: 4, kind: input, shape index: {}]
  %s5 = inlined_call_operand.vmem [shape: bf16[8,216], index: 5, kind: input, shape index: {}]
  %s6 = inlined_call_operand.vmem [shape: f32[8,1], index: 6, kind: input, shape index: {}]
  %s7 = inlined_call_operand.vmem [shape: f32[8,1], index: 7, kind: input, shape index: {}]
  %s8 = inlined_call_operand.vmem [shape: f32[2,12,128], index: 8, kind: output, shape index: {}]
  %s9 = sld [smem:[#allocation0]]
  $region65: #{imsf_block_forward.5} parent=0
    _
  %s11 = ssub.s32 1, %s9
  %s12 = scalar_select 0, %s11, %s9
  loop: start=0, step=1, limit=4
  $region2: #{imsf_block_forward.5} parent=0 // loop_pre_header
    _
  $region3: #{imsf_block_forward.5} parent=0 // loop_header
    %s14 = sphi 0, %s18
    %p15 = scmp.ge.s32.totalorder %s14, 4
    %s21 = sphi 0, %s33
    %s22 = sphi 0, %s29
    %s23 = sphi 0, %s21
    %s24 = sphi 0, %s22
    %s25 = sphi 0, %s23
    %s26 = sphi 0, %s24
    %s38 = sphi 0, %s40
    %s41 = sphi 0, %s38
    %s42 = sphi 0, %s41
    %s58 = sphi 0, %s42
    %s68 = sphi 0, %s70
    %s71 = sphi 0, %s68
    %s72 = sphi 0, %s71
    %s88 = sphi 0, %s72
    %s92 = sphi 0, %s92
    %s94 = sphi 0, %s92
    %s95 = sphi 0, %s94
    %s109 = sphi 0, %s95
    %s113 = sphi 0, %s113
    %s115 = sphi 0, %s113
    %s116 = sphi 0, %s115
    %s130 = sphi 0, %s116
    %s134 = sphi 0, %s134
    %s136 = sphi 0, %s134
    %s137 = sphi 0, %s136
    %s151 = sphi 0, %s137
    %s155 = sphi 0, %s155
    %s157 = sphi 0, %s155
    %s158 = sphi 0, %s157
    %s172 = sphi 0, %s158
    %s176 = sphi 0, %s176
    %s178 = sphi 0, %s176
    %s179 = sphi 0, %s178
    %s193 = sphi 0, %s179
    %s197 = sphi 0, %s197
    %s199 = sphi 0, %s197
    %s200 = sphi 0, %s199
    %s214 = sphi 0, %s200
    %s222 = sphi 0, %s224
    %s225 = sphi 0, %s222
    %s226 = sphi 0, %s225
    %s242 = sphi 0, %s226
  $region4: #{imsf_block_forward.5} parent=0 // loop_header_branch
    %17 = sbr.rel (%p15) target = $region8
  $region5: #{imsf_block_forward.5} parent=0 // loop_body
    %s19 = ssub.s32 %s14, 1
    %s20 = ssub.s32 %s14, 2
    %s27 = sadd.s32 1, %s22
    %p28 = scmp.ge.s32.totalorder %s27, 1
    %s29 = scalar_select %p28, 0, %s27
    %s30 = sadd.s32 1, %s21
    %s31 = scalar_select %p28, %s30, %s21
    %p32 = scmp.ge.s32.totalorder %s31, 2
    %s33 = scalar_select %p32, 0, %s31
    %s34 = ssub.s32 %s21, %s33
    %s35 = ssub.s32 %s22, %s29
    %s36 = sor.u32 %s34, %s35
    %p37 = scmp.eq.s32.totalorder %s36, 0
    %s39 = sadd.s32 %s38, 1
    %s40 = scalar_select %p37, %s38, %s39
    %p43 = pneg %p37
    %p44 = scmp.eq.s32.totalorder %s14, 1
    %p45 = por %p43, %p44
    %p46 = scmp.ne.s32.totalorder %s38, %s41
    %p47 = scmp.eq.s32.totalorder %s14, 0
    %p48 = por %p46, %p47
    %p49 = scmp.ne.s32.totalorder %s38, %s41
    %p50 = scmp.eq.s32.totalorder %s19, 1
    %p51 = por %p49, %p50
    %p52 = scmp.ne.s32.totalorder %s41, %s42
    %p53 = scmp.eq.s32.totalorder %s19, 0
    %p54 = por %p52, %p53
    %p55 = scmp.ne.s32.totalorder %s41, %s42
    %p56 = scmp.eq.s32.totalorder %s20, 1
    %p57 = por %p55, %p56
    %p59 = scmp.ne.s32.totalorder %s42, %s58
    %p60 = scmp.eq.s32.totalorder %s20, 0
    %p61 = por %p59, %p60
    %s62 = sadd.s32 %s22, 1
    %s63 = sadd.s32 %s29, 1
    %s64 = ssub.s32 %s21, %s33
    %s65 = ssub.s32 %s62, %s63
    %s66 = sor.u32 %s64, %s65
    %p67 = scmp.eq.s32.totalorder %s66, 0
    %s69 = sadd.s32 %s68, 1
    %s70 = scalar_select %p67, %s68, %s69
    %p73 = pneg %p67
    %p74 = scmp.eq.s32.totalorder %s14, 1
    %p75 = por %p73, %p74
    %p76 = scmp.ne.s32.totalorder %s68, %s71
    %p77 = scmp.eq.s32.totalorder %s14, 0
    %p78 = por %p76, %p77
    %p79 = scmp.ne.s32.totalorder %s68, %s71
    %p80 = scmp.eq.s32.totalorder %s19, 1
    %p81 = por %p79, %p80
    %p82 = scmp.ne.s32.totalorder %s71, %s72
    %p83 = scmp.eq.s32.totalorder %s19, 0
    %p84 = por %p82, %p83
    %p85 = scmp.ne.s32.totalorder %s71, %s72
    %p86 = scmp.eq.s32.totalorder %s20, 1
    %p87 = por %p85, %p86
    %p89 = scmp.ne.s32.totalorder %s72, %s88
    %p90 = scmp.eq.s32.totalorder %s20, 0
    %p91 = por %p89, %p90
    %s93 = sadd.s32 %s92, 1
    %p96 = scmp.eq.s32.totalorder %s14, 1
    %p97 = scmp.ne.s32.totalorder %s92, %s94
    %p98 = scmp.eq.s32.totalorder %s14, 0
    %p99 = por %p97, %p98
    %p100 = scmp.ne.s32.totalorder %s92, %s94
    %p101 = scmp.eq.s32.totalorder %s19, 1
    %p102 = por %p100, %p101
    %p103 = scmp.ne.s32.totalorder %s94, %s95
    %p104 = scmp.eq.s32.totalorder %s19, 0
    %p105 = por %p103, %p104
    %p106 = scmp.ne.s32.totalorder %s94, %s95
    %p107 = scmp.eq.s32.totalorder %s20, 1
    %p108 = por %p106, %p107
    %p110 = scmp.ne.s32.totalorder %s95, %s109
    %p111 = scmp.eq.s32.totalorder %s20, 0
    %p112 = por %p110, %p111
    %s114 = sadd.s32 %s113, 1
    %p117 = scmp.eq.s32.totalorder %s14, 1
    %p118 = scmp.ne.s32.totalorder %s113, %s115
    %p119 = scmp.eq.s32.totalorder %s14, 0
    %p120 = por %p118, %p119
    %p121 = scmp.ne.s32.totalorder %s113, %s115
    %p122 = scmp.eq.s32.totalorder %s19, 1
    %p123 = por %p121, %p122
    %p124 = scmp.ne.s32.totalorder %s115, %s116
    %p125 = scmp.eq.s32.totalorder %s19, 0
    %p126 = por %p124, %p125
    %p127 = scmp.ne.s32.totalorder %s115, %s116
    %p128 = scmp.eq.s32.totalorder %s20, 1
    %p129 = por %p127, %p128
    %p131 = scmp.ne.s32.totalorder %s116, %s130
    %p132 = scmp.eq.s32.totalorder %s20, 0
    %p133 = por %p131, %p132
    %s135 = sadd.s32 %s134, 1
    %p138 = scmp.eq.s32.totalorder %s14, 1
    %p139 = scmp.ne.s32.totalorder %s134, %s136
    %p140 = scmp.eq.s32.totalorder %s14, 0
    %p141 = por %p139, %p140
    %p142 = scmp.ne.s32.totalorder %s134, %s136
    %p143 = scmp.eq.s32.totalorder %s19, 1
    %p144 = por %p142, %p143
    %p145 = scmp.ne.s32.totalorder %s136, %s137
    %p146 = scmp.eq.s32.totalorder %s19, 0
    %p147 = por %p145, %p146
    %p148 = scmp.ne.s32.totalorder %s136, %s137
    %p149 = scmp.eq.s32.totalorder %s20, 1
    %p150 = por %p148, %p149
    %p152 = scmp.ne.s32.totalorder %s137, %s151
    %p153 = scmp.eq.s32.totalorder %s20, 0
    %p154 = por %p152, %p153
    %s156 = sadd.s32 %s155, 1
    %p159 = scmp.eq.s32.totalorder %s14, 1
    %p160 = scmp.ne.s32.totalorder %s155, %s157
    %p161 = scmp.eq.s32.totalorder %s14, 0
    %p162 = por %p160, %p161
    %p163 = scmp.ne.s32.totalorder %s155, %s157
    %p164 = scmp.eq.s32.totalorder %s19, 1
    %p165 = por %p163, %p164
    %p166 = scmp.ne.s32.totalorder %s157, %s158
    %p167 = scmp.eq.s32.totalorder %s19, 0
    %p168 = por %p166, %p167
    %p169 = scmp.ne.s32.totalorder %s157, %s158
    %p170 = scmp.eq.s32.totalorder %s20, 1
    %p171 = por %p169, %p170
    %p173 = scmp.ne.s32.totalorder %s158, %s172
    %p174 = scmp.eq.s32.totalorder %s20, 0
    %p175 = por %p173, %p174
    %s177 = sadd.s32 %s176, 1
    %p180 = scmp.eq.s32.totalorder %s14, 1
    %p181 = scmp.ne.s32.totalorder %s176, %s178
    %p182 = scmp.eq.s32.totalorder %s14, 0
    %p183 = por %p181, %p182
    %p184 = scmp.ne.s32.totalorder %s176, %s178
    %p185 = scmp.eq.s32.totalorder %s19, 1
    %p186 = por %p184, %p185
    %p187 = scmp.ne.s32.totalorder %s178, %s179
    %p188 = scmp.eq.s32.totalorder %s19, 0
    %p189 = por %p187, %p188
    %p190 = scmp.ne.s32.totalorder %s178, %s179
    %p191 = scmp.eq.s32.totalorder %s20, 1
    %p192 = por %p190, %p191
    %p194 = scmp.ne.s32.totalorder %s179, %s193
    %p195 = scmp.eq.s32.totalorder %s20, 0
    %p196 = por %p194, %p195
    %s198 = sadd.s32 %s197, 1
    %p201 = scmp.eq.s32.totalorder %s14, 1
    %p202 = scmp.ne.s32.totalorder %s197, %s199
    %p203 = scmp.eq.s32.totalorder %s14, 0
    %p204 = por %p202, %p203
    %p205 = scmp.ne.s32.totalorder %s197, %s199
    %p206 = scmp.eq.s32.totalorder %s19, 1
    %p207 = por %p205, %p206
    %p208 = scmp.ne.s32.totalorder %s199, %s200
    %p209 = scmp.eq.s32.totalorder %s19, 0
    %p210 = por %p208, %p209
    %p211 = scmp.ne.s32.totalorder %s199, %s200
    %p212 = scmp.eq.s32.totalorder %s20, 1
    %p213 = por %p211, %p212
    %p215 = scmp.ne.s32.totalorder %s200, %s214
    %p216 = scmp.eq.s32.totalorder %s20, 0
    %p217 = por %p215, %p216
    %s218 = ssub.s32 %s21, %s33
    %s219 = ssub.s32 %s22, %s29
    %s220 = sor.u32 %s218, %s219
    %p221 = scmp.eq.s32.totalorder %s220, 0
    %s223 = sadd.s32 %s222, 1
    %s224 = scalar_select %p221, %s222, %s223
    %p227 = pneg %p221
    %p228 = scmp.eq.s32.totalorder %s14, 1
    %p229 = por %p227, %p228
    %p230 = scmp.ne.s32.totalorder %s222, %s225
    %p231 = scmp.eq.s32.totalorder %s14, 0
    %p232 = por %p230, %p231
    %p233 = scmp.ne.s32.totalorder %s222, %s225
    %p234 = scmp.eq.s32.totalorder %s19, 1
    %p235 = por %p233, %p234
    %p236 = scmp.ne.s32.totalorder %s225, %s226
    %p237 = scmp.eq.s32.totalorder %s19, 0
    %p238 = por %p236, %p237
    %p239 = scmp.ne.s32.totalorder %s225, %s226
    %p240 = scmp.eq.s32.totalorder %s20, 1
    %p241 = por %p239, %p240
    %p243 = scmp.ne.s32.totalorder %s226, %s242
    %p244 = scmp.eq.s32.totalorder %s20, 0
    %p245 = por %p243, %p244
    %p246 = scmp.le.s32.totalorder 1, %s14
    %p247 = scmp.lt.s32.totalorder %s14, 3
    %p248 = pnand %p246, %p247
    %p249 = pneg %p248
    // Predicated region
    $region9: #{imsf_block_forward.5} parent=5 // pred_check
      _
    $region10: #{imsf_block_forward.5} parent=5 // pred_check_branch
      %251 = sbr.rel (%p248) target = $region12
    $region11: #{imsf_block_forward.5} parent=5 // pred_region
      %s252 = ssub.s32 %s14, 1
      // Predicated region
      $region13: #{imsf_block_forward.5} parent=11 // pred_check
        %p253 = pneg %p105
      $region14: #{imsf_block_forward.5} parent=11 // pred_check_branch
        %255 = sbr.rel (%p253) target = $region16
      $region15: #{imsf_block_forward.5} parent=11 // pred_region
        _
      $region16: #{imsf_block_forward.5} parent=11 // pred_fallthru
        _
      // Predicated region
      $region17: #{imsf_block_forward.5} parent=11 // pred_check
        %p256 = pneg %p126
      $region18: #{imsf_block_forward.5} parent=11 // pred_check_branch
        %258 = sbr.rel (%p256) target = $region20
      $region19: #{imsf_block_forward.5} parent=11 // pred_region
        _
      $region20: #{imsf_block_forward.5} parent=11 // pred_fallthru
        _
      // Predicated region
      $region21: #{imsf_block_forward.5} parent=11 // pred_check
        %p259 = pneg %p147
      $region22: #{imsf_block_forward.5} parent=11 // pred_check_branch
        %261 = sbr.rel (%p259) target = $region24
      $region23: #{imsf_block_forward.5} parent=11 // pred_region
        _
      $region24: #{imsf_block_forward.5} parent=11 // pred_fallthru
        _
      // Predicated region
      $region25: #{imsf_block_forward.5} parent=11 // pred_check
        %p262 = pneg %p168
      $region26: #{imsf_block_forward.5} parent=11 // pred_check_branch
        %264 = sbr.rel (%p262) target = $region28
      $region27: #{imsf_block_forward.5} parent=11 // pred_region
        _
      $region28: #{imsf_block_forward.5} parent=11 // pred_fallthru
        _
      // Predicated region
      $region29: #{imsf_block_forward.5} parent=11 // pred_check
        %p265 = pneg %p189
      $region30: #{imsf_block_forward.5} parent=11 // pred_check_branch
        %267 = sbr.rel (%p265) target = $region32
      $region31: #{imsf_block_forward.5} parent=11 // pred_region
        _
      $region32: #{imsf_block_forward.5} parent=11 // pred_fallthru
        _
      // Predicated region
      $region33: #{imsf_block_forward.5} parent=11 // pred_check
        %p268 = pneg %p210
      $region34: #{imsf_block_forward.5} parent=11 // pred_check_branch
        %270 = sbr.rel (%p268) target = $region36
      $region35: #{imsf_block_forward.5} parent=11 // pred_region
        _
      $region36: #{imsf_block_forward.5} parent=11 // pred_fallthru
        _
    $region12: #{imsf_block_forward.5} parent=5 // pred_fallthru
      _
    %p271 = scmp.lt.s32.totalorder %s14, 2
    // Predicated region
    $region37: #{imsf_block_forward.5} parent=5 // pred_check
      %p272 = pneg %p271
    $region38: #{imsf_block_forward.5} parent=5 // pred_check_branch
      %274 = sbr.rel (%p272) target = $region40
    $region39: #{imsf_block_forward.5} parent=5 // pred_region
      // Predicated region
      $region41: #{imsf_block_forward.5} parent=39 // pred_check
        %p275 = pneg %p48
      $region42: #{imsf_block_forward.5} parent=39 // pred_check_branch
        %277 = sbr.rel (%p275) target = $region44
      $region43: #{imsf_block_forward.5} parent=39 // pred_region
        %p278 = scmp.lt.s32.totalorder %s21, 1
        %s279 = scalar_select %p278, %s21, 1
        %p280 = scmp.lt.s32.totalorder %s22, 1
        %s281 = scalar_select %p280, %s22, 1
        %s282 = smul.addr %s279, 2
        %s283 = sadd.s32 %s281, %s282
        %s284 = smul.addr %s283, 2
        %s285 = scalar_lea.vmem %s0, %s284
      $region44: #{imsf_block_forward.5} parent=39 // pred_fallthru
        _
      // Predicated region
      $region45: #{imsf_block_forward.5} parent=39 // pred_check
        %p286 = pneg %p78
      $region46: #{imsf_block_forward.5} parent=39 // pred_check_branch
        %288 = sbr.rel (%p286) target = $region48
      $region47: #{imsf_block_forward.5} parent=39 // pred_region
        %s289 = sadd.s32 %s22, 1
        %p290 = scmp.lt.s32.totalorder %s21, 1
        %s291 = scalar_select %p290, %s21, 1
        %p292 = scmp.lt.s32.totalorder %s289, 1
        %s293 = scalar_select %p292, %s289, 1
        %s294 = smul.addr %s291, 2
        %s295 = sadd.s32 %s293, %s294
        %s296 = smul.addr %s295, 2
        %s297 = scalar_lea.vmem %s1, %s296
        %s298 = sadd.s32 %s22, 1
      $region48: #{imsf_block_forward.5} parent=39 // pred_fallthru
        _
    $region40: #{imsf_block_forward.5} parent=5 // pred_fallthru
      _
    %p299 = scmp.le.s32.totalorder 1, %s14
    %p300 = scmp.lt.s32.totalorder %s14, 3
    %p301 = pnand %p299, %p300
    %p302 = pneg %p301
    // Predicated region
    $region49: #{imsf_block_forward.5} parent=5 // pred_check
      _
    $region50: #{imsf_block_forward.5} parent=5 // pred_check_branch
      %304 = sbr.rel (%p301) target = $region52
    $region51: #{imsf_block_forward.5} parent=5 // pred_region
      %s305 = ssub.s32 %s14, 1
      %p306 = scmp.lt.s32.totalorder %s23, 1
      %s307 = scalar_select %p306, %s23, 1
      %p308 = scmp.lt.s32.totalorder %s24, 1
      %s309 = scalar_select %p308, %s24, 1
      %s310 = smul.addr %s307, 2
      %s311 = sadd.s32 %s309, %s310
      %s312 = smul.addr %s311, 2
      %s313 = scalar_lea.vmem %s0, %s312
      %p314 = pneg %p54
      %p315 = pneg %p51
      %s316 = sadd.s32 %s24, 1
      %p317 = scmp.lt.s32.totalorder %s23, 1
      %s318 = scalar_select %p317, %s23, 1
      %p319 = scmp.lt.s32.totalorder %s316, 1
      %s320 = scalar_select %p319, %s316, 1
      %s321 = smul.addr %s318, 2
      %s322 = sadd.s32 %s320, %s321
      %s323 = smul.addr %s322, 2
      %s324 = scalar_lea.vmem %s1, %s323
      %p325 = pneg %p84
      %p326 = pneg %p81
      %p327 = pneg %p105
      %p328 = pneg %p102
      %p329 = pneg %p126
      %p330 = pneg %p123
      %p331 = pneg %p147
      %p332 = pneg %p144
      %p333 = pneg %p168
      %p334 = pneg %p165
      %p335 = pneg %p189
      %p336 = pneg %p186
      %p337 = pneg %p210
      %p338 = pneg %p207
      %p339 = pneg %p238
      %p340 = pneg %p235
      %p341 = scmp.lt.s32.totalorder %s23, 1
      %s342 = scalar_select %p341, %s23, 1
      %p343 = scmp.lt.s32.totalorder %s24, 0
      %s344 = scalar_select %p343, %s24, 0
      %s345 = smul.addr %s342, 2
      %s346 = sadd.s32 %s344, %s345
      %s347 = smul.addr %s346, 8
      %s348 = scalar_lea.vmem %s8, %s347
      %p349 = scmp.lt.s32.totalorder %s23, 1
      %s350 = scalar_select %p349, %s23, 1
      %p351 = scmp.lt.s32.totalorder %s24, 1
      %s352 = scalar_select %p351, %s24, 1
      %s353 = smul.addr %s350, 2
      %s354 = sadd.s32 %s352, %s353
      %s355 = smul.addr %s354, 2
      %s356 = scalar_lea.vmem %s0, %s355
      %s357 = sadd.s32 %s24, 1
      %p358 = scmp.lt.s32.totalorder %s23, 1
      %s359 = scalar_select %p358, %s23, 1
      %p360 = scmp.lt.s32.totalorder %s357, 1
      %s361 = scalar_select %p360, %s357, 1
      %s362 = smul.addr %s359, 2
      %s363 = sadd.s32 %s361, %s362
      %s364 = smul.addr %s363, 2
      %s365 = scalar_lea.vmem %s1, %s364
      %s366 = sadd.s32 %s24, 1
      %p367 = scmp.lt.s32.totalorder %s23, 1
      %s368 = scalar_select %p367, %s23, 1
      %p369 = scmp.lt.s32.totalorder %s24, 0
      %s370 = scalar_select %p369, %s24, 0
      %s371 = smul.addr %s368, 2
      %s372 = sadd.s32 %s370, %s371
      %s373 = smul.addr %s372, 8
      %s374 = scalar_lea.vmem %s8, %s373
      %v376 = vld [vmem:[%s356] sm:$0x3]
      %v377 = vld [vmem:[%s365] sm:$0x3]
      %378 = vst [vmem:[#allocation2] sm:$0x3] %v376
      %vm379 = vcmask 58368
      %380 = vst.msk [vmem:[#allocation2 + $0x4] sm:$0x3] %vm379, %v377
      %v382 = vcombine.low %v376, %v376
      %v384 = vunpack.c.l.s4 1983009808
      %v385 = vunpack.c.0.s8 %v384
      %v386 = vlaneseq
      %v387 = vshrl.u32 %v386, 7
      %v388 = vsub.s32 %v385, %v387
      %v389 = vrot.slane %v382, %v388
      %390 = vrot.lane.b32.xlu0 %v389, 127
      %v391 = vpop.permute.xlu0 %390
      %vm393 = vcmask 1035266
      %394 = vst.msk [vmem:[#allocation2] sm:$0xc] %vm393, %v391
      %v396 = vcombine.low %v377, %v377
      %v398 = vunpack.c.l.s4 1983009808
      %v399 = vunpack.c.0.s8 %v398
      %v400 = vlaneseq
      %v401 = vshrl.u32 %v400, 7
      %v402 = vsub.s32 %v399, %v401
      %v403 = vrot.slane %v396, %v402
      %404 = vrot.lane.b32.xlu0 %v403, 127
      %v405 = vpop.permute.xlu0 %404
      %v406 = vrot.slane %v405, 4
      %vm407 = vcmask 1039360
      %v408 = vsel %vm407, %v406, %v405
      %vm410 = vcmask 1044474
      %vm411 = vcmask 64518
      %vm412 = vmor %vm411, %vm410
      %413 = vst.msk [vmem:[#allocation2] sm:$0xcc] %vm412, %v408
      %v415 = vunpack.c.l.s4 1983009808
      %v416 = vunpack.c.0.s8 %v415
      %v417 = vlaneseq
      %v418 = vshrl.u32 %v417, 7
      %v419 = vsub.s32 %v416, %v418
      %v420 = vrot.slane %v376, %v419
      %421 = vrot.lane.b32.xlu0 %v420, 126
      %v422 = vpop.permute.xlu0 %421
      %vm424 = vcmask 1025024
      %425 = vst.msk [vmem:[#allocation2 + $0x8] sm:$0x3] %vm424, %v422
      %v427 = vunpack.c.l.s4 1983009808
      %v428 = vunpack.c.0.s8 %v427
      %v429 = vlaneseq
      %v430 = vshrl.u32 %v429, 7
      %v431 = vsub.s32 %v428, %v430
      %v432 = vrot.slane %v377, %v431
      %433 = vrot.lane.b32.xlu0 %v432, 126
      %v434 = vpop.permute.xlu0 %433
      %v435 = vrot.slane %v434, 4
      %vm436 = vcmask 1031168
      %v437 = vsel %vm436, %v435, %v434
      %vm439 = vcmask 1042416
      %vm440 = vcmask 62468
      %vm441 = vmor %vm440, %vm439
      %442 = vst.msk [vmem:[#allocation2 + $0x8] sm:$0x33] %vm441, %v437
      %443 = vrot.lane.b32.xlu0 %v389, 125
      %v444 = vpop.permute.xlu0 %443
      %vm446 = vcmask 1018882
      %447 = vst.msk [vmem:[#allocation2 + $0x8] sm:$0xc] %vm446, %v444
      %448 = vrot.lane.b32.xlu0 %v403, 125
      %v449 = vpop.permute.xlu0 %448
      %v450 = vrot.slane %v449, 4
      %vm451 = vcmask 1022976
      %v452 = vsel %vm451, %v450, %v449
      %vm454 = vcmask 1044458
      %vm455 = vmor %vm411, %vm454
      %456 = vst.msk [vmem:[#allocation2 + $0x8] sm:$0xcc] %vm455, %v452
      %457 = vrot.lane.b32.xlu0 %v420, 124
      %v458 = vpop.permute.xlu0 %457
      %vm460 = vcmask 1008640
      %461 = vst.msk [vmem:[#allocation2 + $0x10] sm:$0x3] %vm460, %v458
      %462 = vrot.lane.b32.xlu0 %v432, 124
      %v463 = vpop.permute.xlu0 %462
      %v464 = vrot.slane %v463, 4
      %vm465 = vcmask 1014784
      %v466 = vsel %vm465, %v464, %v463
      %vm468 = vcmask 1042400
      %vm469 = vmor %vm440, %vm468
      %470 = vst.msk [vmem:[#allocation2 + $0x10] sm:$0x33] %vm469, %v466
      %471 = vrot.lane.b32.xlu0 %v389, 123
      %v472 = vpop.permute.xlu0 %471
      %vm474 = vcmask 1002498
      %475 = vst.msk [vmem:[#allocation2 + $0x10] sm:$0xc] %vm474, %v472
      %476 = vrot.lane.b32.xlu0 %v403, 123
      %v477 = vpop.permute.xlu0 %476
      %v478 = vrot.slane %v477, 4
      %vm479 = vcmask 1006592
      %v480 = vsel %vm479, %v478, %v477
      %vm482 = vcmask 1044442
      %vm483 = vmor %vm411, %vm482
      %484 = vst.msk [vmem:[#allocation2 + $0x10] sm:$0xcc] %vm483, %v480
      %485 = vrot.lane.b32.xlu0 %v420, 122
      %v486 = vpop.permute.xlu0 %485
      %vm488 = vcmask 992256
      %489 = vst.msk [vmem:[#allocation2 + $0x18] sm:$0x3] %vm488, %v486
      %490 = vrot.lane.b32.xlu0 %v432, 122
      %v491 = vpop.permute.xlu0 %490
      %v492 = vrot.slane %v491, 4
      %vm493 = vcmask 998400
      %v494 = vsel %vm493, %v492, %v491
      %vm496 = vcmask 1042384
      %vm497 = vmor %vm440, %vm496
      %498 = vst.msk [vmem:[#allocation2 + $0x18] sm:$0x33] %vm497, %v494
      %499 = vrot.lane.b32.xlu0 %v389, 121
      %v500 = vpop.permute.xlu0 %499
      %vm502 = vcmask 986114
      %503 = vst.msk [vmem:[#allocation2 + $0x18] sm:$0xc] %vm502, %v500
      %504 = vrot.lane.b32.xlu0 %v403, 121
      %v505 = vpop.permute.xlu0 %504
      %v506 = vrot.slane %v505, 4
      %vm507 = vcmask 990208
      %v508 = vsel %vm507, %v506, %v505
      %vm510 = vcmask 1044426
      %vm511 = vmor %vm411, %vm510
      %512 = vst.msk [vmem:[#allocation2 + $0x18] sm:$0xcc] %vm511, %v508
      %513 = vrot.lane.b32.xlu0 %v420, 120
      %v514 = vpop.permute.xlu0 %513
      %vm516 = vcmask 975872
      %517 = vst.msk [vmem:[#allocation2 + $0x20] sm:$0x3] %vm516, %v514
      %518 = vrot.lane.b32.xlu0 %v432, 120
      %v519 = vpop.permute.xlu0 %518
      %v520 = vrot.slane %v519, 4
      %vm521 = vcmask 982016
      %v522 = vsel %vm521, %v520, %v519
      %vm524 = vcmask 1042368
      %vm525 = vmor %vm440, %vm524
      %526 = vst.msk [vmem:[#allocation2 + $0x20] sm:$0x33] %vm525, %v522
      %527 = vrot.lane.b32.xlu0 %v389, 119
      %v528 = vpop.permute.xlu0 %527
      %vm530 = vcmask 969730
      %531 = vst.msk [vmem:[#allocation2 + $0x20] sm:$0xc] %vm530, %v528
      %532 = vrot.lane.b32.xlu0 %v403, 119
      %v533 = vpop.permute.xlu0 %532
      %v534 = vrot.slane %v533, 4
      %vm535 = vcmask 973824
      %v536 = vsel %vm535, %v534, %v533
      %vm538 = vcmask 1044410
      %vm539 = vmor %vm411, %vm538
      %540 = vst.msk [vmem:[#allocation2 + $0x20] sm:$0xcc] %vm539, %v536
      %541 = vrot.lane.b32.xlu0 %v420, 118
      %v542 = vpop.permute.xlu0 %541
      %vm544 = vcmask 959488
      %545 = vst.msk [vmem:[#allocation2 + $0x28] sm:$0x3] %vm544, %v542
      %546 = vrot.lane.b32.xlu0 %v432, 118
      %v547 = vpop.permute.xlu0 %546
      %v548 = vrot.slane %v547, 4
      %vm549 = vcmask 965632
      %v550 = vsel %vm549, %v548, %v547
      %vm552 = vcmask 1042352
      %vm553 = vmor %vm440, %vm552
      %554 = vst.msk [vmem:[#allocation2 + $0x28] sm:$0x33] %vm553, %v550
      %v555 = vld [vmem:[%s2] sm:$0xf]
      %v556 = vld [vmem:[%s2 + $0x4] sm:$0xf]
      %v557 = vld [vmem:[%s2 + $0x8] sm:$0xf]
      %v558 = vld [vmem:[%s2 + $0xc] sm:$0xf]
      %v559 = vld [vmem:[#allocation2] sm:$0xff]
      %v560 = vld [vmem:[#allocation2 + $0x8] sm:$0xff]
      %v561 = vld [vmem:[#allocation2 + $0x10] sm:$0xff]
      %v562 = vld [vmem:[#allocation2 + $0x18] sm:$0xff]
      %v563 = vld [vmem:[#allocation2 + $0x20] sm:$0xff]
      %v564 = vld [vmem:[#allocation2 + $0x28] sm:$0x33]
      %v569 = vunpack.c.l.b16 %v555
      %v570 = vunpack.c.l.b16 %v556
      %v571 = vunpack.c.l.b16 %v557
      %v572 = vunpack.c.l.b16 %v558
      %v573 = vpack.c.b16 %v570, %v569
      %v574 = vpack.c.b16 %v572, %v571
      %v581 = vunpack.c.l.b16 %v559
      %v582 = vunpack.c.h.b16 %v559
      %v583 = vunpack.c.l.b16 %v560
      %v584 = vunpack.c.h.b16 %v560
      %v585 = vunpack.c.l.b16 %v561
      %v586 = vunpack.c.h.b16 %v561
      %v587 = vunpack.c.l.b16 %v562
      %v588 = vunpack.c.h.b16 %v562
      %v589 = vunpack.c.l.b16 %v563
      %v590 = vunpack.c.h.b16 %v563
      %v591 = vunpack.c.l.b16 %v564
      %v592 = vunpack.c.h.b16 %v564
      %v593 = vpack.c.b16 %v583, %v581
      %v594 = vpack.c.b16 %v584, %v582
      %v595 = vpack.c.b16 %v587, %v585
      %v596 = vpack.c.b16 %v588, %v586
      %v597 = vpack.c.b16 %v591, %v589
      %v598 = vpack.c.b16 %v592, %v590
      %vm603 = vcmask 359424
      %v605 = vsel %vm603, %v573, 0
      %v608 = vsel %vm603, %v574, 0
      %vm610 = vcmask 1045504
      %v612 = vsel %vm610, %v597, 0
      %v615 = vsel %vm610, %v598, 0
      %617 = vmatprep.subr.bf16.mxu0 0
      %618 = vmatpush1.bf16.msra.mxu0 0
      %619 = vmatprep.subr.bf16.mxu0 0
      %620 = vmatpush1.bf16.msra.mxu0 0
      %621 = vmatprep.subr.bf16.mxu0 0
      %622 = vmatpush1.bf16.msra.mxu0 0
      %623 = vmatprep.subr.bf16.mxu0 0
      %624 = vmatpush1.bf16.msra.mxu0 0
      %625 = vmatprep.subr.bf16.mxu0 0
      %626 = vmatpush1.bf16.msra.mxu0 0
      %627 = vmatprep.subr.bf16.mxu0 %v615
      %628 = vmatpush1.bf16.msra.mxu0 %v612
      %629 = vmatprep.subr.bf16.mxu0 %v596
      %630 = vmatpush1.bf16.msra.mxu0 %v595
      %631 = vmatprep.subr.bf16.mxu0 %v594
      %632 = vmatpush1.bf16.msra.mxu0 %v593
      %633 = vmatprep.subr.bf16.mxu0 0
      %634 = vmatpush2.bf16.msra.mxu0 0
      %635 = vmatprep.subr.bf16.mxu0 0
      %636 = vmatpush2.bf16.msra.mxu0 0
      %637 = vmatprep.subr.bf16.mxu0 0
      %638 = vmatpush2.bf16.msra.mxu0 0
      %639 = vmatprep.subr.bf16.mxu0 0
      %640 = vmatpush2.bf16.msra.mxu0 0
      %641 = vmatprep.subr.bf16.mxu0 0
      %642 = vmatpush2.bf16.msra.mxu0 0
      %643 = vmatprep.subr.bf16.mxu0 0
      %644 = vmatpush2.bf16.msra.mxu0 0
      %645 = vmatprep.subr.bf16.mxu0 0
      %646 = vmatpush2.bf16.msra.mxu0 0
      %647 = vmatprep.subr.bf16.mxu0 0
      %648 = vmatpush2.bf16.msra.mxu0 0
      %649 = vmatprep.mubr.bf16.mxu0 0
      %650 = vmatmul.mubr.bf16.gmra.mxu0 %v605
      %v651 = vpop.f32.mrf.mxu0
      %v652 = vadd.f32 0.0, %v651
      %v653 = vpop.f32.mrf.mxu0
      %v654 = vadd.f32 0.0, %v653
      %v655 = vpop.f32.mrf.mxu0
      %v656 = vadd.f32 0.0, %v655
      %v657 = vpop.f32.mrf.mxu0
      %v658 = vadd.f32 0.0, %v657
      %659 = vmatprep.mubr.bf16.mxu0 0
      %660 = vmatmul.mubr.bf16.gmra.mxu0 %v608
      %v661 = vpop.f32.mrf.mxu0
      %v662 = vadd.f32 0.0, %v661
      %v663 = vpop.f32.mrf.mxu0
      %v664 = vadd.f32 0.0, %v663
      %v665 = vpop.f32.mrf.mxu0
      %v666 = vadd.f32 0.0, %v665
      %v667 = vpop.f32.mrf.mxu0
      %v668 = vadd.f32 0.0, %v667
      %669 = vdwg.mxu0
      %v670 = vld [vmem:[%s3] sm:$0xff]
      %v671 = vld [vmem:[%s3 + $0x8] sm:$0xff]
      %v672 = vld [vmem:[%s3 + $0x10] sm:$0xff]
      %v673 = vld [vmem:[%s3 + $0x18] sm:$0xff]
      %675 = vset.pattern.permute.xlu0 0
      %676 = vperm.xlu0 %675, %v670
      %v677 = vpop.permute.xlu0 %676
      %680 = vset.pattern.permute.xlu0 0
      %681 = vperm.xlu0 %680, %v671
      %v682 = vpop.permute.xlu0 %681
      %685 = vset.pattern.permute.xlu0 0
      %686 = vperm.xlu0 %685, %v672
      %v687 = vpop.permute.xlu0 %686
      %690 = vset.pattern.permute.xlu0 0
      %691 = vperm.xlu0 %690, %v673
      %v692 = vpop.permute.xlu0 %691
      %v694 = vmul.f32 %v652, %v677
      %v695 = vmul.f32 %v654, %v677
      %v696 = vmul.f32 %v656, %v682
      %v697 = vmul.f32 %v658, %v682
      %v698 = vmul.f32 %v662, %v687
      %v699 = vmul.f32 %v664, %v687
      %v700 = vmul.f32 %v666, %v692
      %v701 = vmul.f32 %v668, %v692
      %v702 = vld [vmem:[%s4] sm:$0xff]
      %v703 = vld [vmem:[%s4 + $0x8] sm:$0xff]
      %v704 = vld [vmem:[%s4 + $0x10] sm:$0xff]
      %v705 = vld [vmem:[%s4 + $0x18] sm:$0xff]
      %707 = vset.pattern.permute.xlu0 0
      %708 = vperm.xlu0 %707, %v702
      %v709 = vpop.permute.xlu0 %708
      %712 = vset.pattern.permute.xlu0 0
      %713 = vperm.xlu0 %712, %v703
      %v714 = vpop.permute.xlu0 %713
      %717 = vset.pattern.permute.xlu0 0
      %718 = vperm.xlu0 %717, %v704
      %v719 = vpop.permute.xlu0 %718
      %722 = vset.pattern.permute.xlu0 0
      %723 = vperm.xlu0 %722, %v705
      %v724 = vpop.permute.xlu0 %723
      %v726 = vadd.f32 %v694, %v709
      %v727 = vadd.f32 %v695, %v709
      %v728 = vadd.f32 %v696, %v714
      %v729 = vadd.f32 %v697, %v714
      %v730 = vadd.f32 %v698, %v719
      %v731 = vadd.f32 %v699, %v719
      %v732 = vadd.f32 %v700, %v724
      %v733 = vadd.f32 %v701, %v724
      %v734 = vmax.f32 %v726, 0.0
      %v735 = vmax.f32 %v727, 0.0
      %v736 = vmax.f32 %v728, 0.0
      %v737 = vmax.f32 %v729, 0.0
      %v738 = vmax.f32 %v730, 0.0
      %v739 = vmax.f32 %v731, 0.0
      %v740 = vmax.f32 %v732, 0.0
      %v741 = vmax.f32 %v733, 0.0
      %s742 = smul.u32 %s24, 128
      %s743 = ssub.s32 %s742, 4
      %v744 = vlaneseq
      %v745 = vand.u32 %v744, 127
      %v746 = vadd.s32 %v745, 128
      %v747 = vstv %s743
      %v748 = vadd.s32 %v747, %v745
      %v749 = vadd.s32 %v747, %v746
      %vm750 = vcmp.ge.s32.totalorder %v748, 0
      %vm751 = vcmp.ge.s32.totalorder %v749, 0
      %vm752 = vcmp.lt.s32.totalorder %v748, 16
      %vm753 = vcmp.lt.s32.totalorder %v749, 16
      %vm754 = vmand %vm750, %vm752
      %vm755 = vmand %vm751, %vm753
      %v756 = vsel %vm754, 1, 0
      %v757 = vsel %vm755, 1, 0
      %vm758 = vcmp.eq.s32.totalorder %v756, 1
      %vm759 = vcmp.eq.s32.totalorder %v757, 1
      %v760 = vsel %vm758, %v734, 0.0
      %v761 = vsel %vm759, %v735, 0.0
      %v762 = vsel %vm758, %v736, 0.0
      %v763 = vsel %vm759, %v737, 0.0
      %v764 = vsel %vm758, %v738, 0.0
      %v765 = vsel %vm759, %v739, 0.0
      %v766 = vpack.c.bf16 %v762, %v760
      %v767 = vpack.c.bf16 %v763, %v761
      %v768 = vpack.c.bf16 %v764, %v764
      %v769 = vpack.c.bf16 %v765, %v765
      %v772 = vunpack.c.l.b16 %v766
      %v773 = vunpack.c.h.b16 %v766
      %v774 = vunpack.c.l.b16 %v768
      %v775 = vpack.c.b16 %v772, %v772
      %v776 = vpack.c.b16 %v773, %v773
      %v777 = vpack.c.b16 %v774, %v774
      %781 = vst [vmem:[#allocation3] sm:$0xf] %v775
      %782 = vst [vmem:[#allocation3 + $0x4] sm:$0xf] %v776
      %783 = vst [vmem:[#allocation3 + $0x8] sm:$0xf] %v777
      %v786 = vunpack.c.l.b16 %v767
      %v787 = vunpack.c.h.b16 %v767
      %v788 = vunpack.c.l.b16 %v769
      %v789 = vpack.c.b16 %v786, %v772
      %v790 = vpack.c.b16 %v787, %v773
      %v791 = vpack.c.b16 %v788, %v774
      %792 = vrot.lane.b32.xlu0 %v789, 127
      %v793 = vpop.permute.xlu0 %792
      %794 = vrot.lane.b32.xlu0 %v790, 127
      %v795 = vpop.permute.xlu0 %794
      %796 = vrot.lane.b32.xlu0 %v791, 127
      %v797 = vpop.permute.xlu0 %796
      %v798 = vrot.slane %v793, 4
      %v799 = vrot.slane %v795, 4
      %v800 = vrot.slane %v797, 4
      %v801 = vsel %vm407, %v793, %v798
      %v802 = vsel %vm407, %v795, %v799
      %v803 = vsel %vm407, %v797, %v800
      %807 = vst [vmem:[#allocation3 + $0xc] sm:$0xf] %v801
      %808 = vst [vmem:[#allocation3 + $0x10] sm:$0xf] %v802
      %809 = vst [vmem:[#allocation3 + $0x14] sm:$0xf] %v803
      %810 = vrot.lane.b32.xlu0 %v789, 126
      %v811 = vpop.permute.xlu0 %810
      %812 = vrot.lane.b32.xlu0 %v790, 126
      %v813 = vpop.permute.xlu0 %812
      %814 = vrot.lane.b32.xlu0 %v791, 126
      %v815 = vpop.permute.xlu0 %814
      %v816 = vrot.slane %v811, 4
      %v817 = vrot.slane %v813, 4
      %v818 = vrot.slane %v815, 4
      %v819 = vsel %vm436, %v811, %v816
      %v820 = vsel %vm436, %v813, %v817
      %v821 = vsel %vm436, %v815, %v818
      %825 = vst [vmem:[#allocation3 + $0x18] sm:$0xf] %v819
      %826 = vst [vmem:[#allocation3 + $0x1c] sm:$0xf] %v820
      %827 = vst [vmem:[#allocation3 + $0x20] sm:$0xf] %v821
      %828 = vrot.lane.b32.xlu0 %v789, 125
      %v829 = vpop.permute.xlu0 %828
      %830 = vrot.lane.b32.xlu0 %v790, 125
      %v831 = vpop.permute.xlu0 %830
      %832 = vrot.lane.b32.xlu0 %v791, 125
      %v833 = vpop.permute.xlu0 %832
      %v834 = vrot.slane %v829, 4
      %v835 = vrot.slane %v831, 4
      %v836 = vrot.slane %v833, 4
      %v837 = vsel %vm451, %v829, %v834
      %v838 = vsel %vm451, %v831, %v835
      %v839 = vsel %vm451, %v833, %v836
      %843 = vst [vmem:[#allocation3 + $0x24] sm:$0xf] %v837
      %844 = vst [vmem:[#allocation3 + $0x28] sm:$0xf] %v838
      %845 = vst [vmem:[#allocation3 + $0x2c] sm:$0xf] %v839
      %846 = vrot.lane.b32.xlu0 %v789, 124
      %v847 = vpop.permute.xlu0 %846
      %848 = vrot.lane.b32.xlu0 %v790, 124
      %v849 = vpop.permute.xlu0 %848
      %850 = vrot.lane.b32.xlu0 %v791, 124
      %v851 = vpop.permute.xlu0 %850
      %v852 = vrot.slane %v847, 4
      %v853 = vrot.slane %v849, 4
      %v854 = vrot.slane %v851, 4
      %v855 = vsel %vm465, %v847, %v852
      %v856 = vsel %vm465, %v849, %v853
      %v857 = vsel %vm465, %v851, %v854
      %861 = vst [vmem:[#allocation3 + $0x30] sm:$0xf] %v855
      %862 = vst [vmem:[#allocation3 + $0x34] sm:$0xf] %v856
      %863 = vst [vmem:[#allocation3 + $0x38] sm:$0xf] %v857
      %864 = vrot.lane.b32.xlu0 %v789, 123
      %v865 = vpop.permute.xlu0 %864
      %866 = vrot.lane.b32.xlu0 %v790, 123
      %v867 = vpop.permute.xlu0 %866
      %868 = vrot.lane.b32.xlu0 %v791, 123
      %v869 = vpop.permute.xlu0 %868
      %v870 = vrot.slane %v865, 4
      %v871 = vrot.slane %v867, 4
      %v872 = vrot.slane %v869, 4
      %v873 = vsel %vm479, %v865, %v870
      %v874 = vsel %vm479, %v867, %v871
      %v875 = vsel %vm479, %v869, %v872
      %879 = vst [vmem:[#allocation3 + $0x3c] sm:$0xf] %v873
      %880 = vst [vmem:[#allocation3 + $0x40] sm:$0xf] %v874
      %881 = vst [vmem:[#allocation3 + $0x44] sm:$0xf] %v875
      %882 = vrot.lane.b32.xlu0 %v789, 122
      %v883 = vpop.permute.xlu0 %882
      %884 = vrot.lane.b32.xlu0 %v790, 122
      %v885 = vpop.permute.xlu0 %884
      %886 = vrot.lane.b32.xlu0 %v791, 122
      %v887 = vpop.permute.xlu0 %886
      %v888 = vrot.slane %v883, 4
      %v889 = vrot.slane %v885, 4
      %v890 = vrot.slane %v887, 4
      %v891 = vsel %vm493, %v883, %v888
      %v892 = vsel %vm493, %v885, %v889
      %v893 = vsel %vm493, %v887, %v890
      %897 = vst [vmem:[#allocation3 + $0x48] sm:$0xf] %v891
      %898 = vst [vmem:[#allocation3 + $0x4c] sm:$0xf] %v892
      %899 = vst [vmem:[#allocation3 + $0x50] sm:$0xf] %v893
      %900 = vrot.lane.b32.xlu0 %v789, 121
      %v901 = vpop.permute.xlu0 %900
      %902 = vrot.lane.b32.xlu0 %v790, 121
      %v903 = vpop.permute.xlu0 %902
      %904 = vrot.lane.b32.xlu0 %v791, 121
      %v905 = vpop.permute.xlu0 %904
      %v906 = vrot.slane %v901, 4
      %v907 = vrot.slane %v903, 4
      %v908 = vrot.slane %v905, 4
      %v909 = vsel %vm507, %v901, %v906
      %v910 = vsel %vm507, %v903, %v907
      %v911 = vsel %vm507, %v905, %v908
      %915 = vst [vmem:[#allocation3 + $0x54] sm:$0xf] %v909
      %916 = vst [vmem:[#allocation3 + $0x58] sm:$0xf] %v910
      %917 = vst [vmem:[#allocation3 + $0x5c] sm:$0xf] %v911
      %918 = vrot.lane.b32.xlu0 %v789, 120
      %v919 = vpop.permute.xlu0 %918
      %920 = vrot.lane.b32.xlu0 %v790, 120
      %v921 = vpop.permute.xlu0 %920
      %922 = vrot.lane.b32.xlu0 %v791, 120
      %v923 = vpop.permute.xlu0 %922
      %v924 = vrot.slane %v919, 4
      %v925 = vrot.slane %v921, 4
      %v926 = vrot.slane %v923, 4
      %v927 = vsel %vm521, %v919, %v924
      %v928 = vsel %vm521, %v921, %v925
      %v929 = vsel %vm521, %v923, %v926
      %933 = vst [vmem:[#allocation3 + $0x60] sm:$0xf] %v927
      %934 = vst [vmem:[#allocation3 + $0x64] sm:$0xf] %v928
      %935 = vst [vmem:[#allocation3 + $0x68] sm:$0xf] %v929
      %v936 = vld [vmem:[%s5] sm:$0xff]
      %v937 = vld [vmem:[#allocation3] sm:$0xf]
      %v938 = vld [vmem:[#allocation3 + $0x4] sm:$0xf]
      %v939 = vld [vmem:[#allocation3 + $0x8] sm:$0xf]
      %v940 = vld [vmem:[#allocation3 + $0xc] sm:$0xf]
      %v941 = vld [vmem:[#allocation3 + $0x10] sm:$0xf]
      %v942 = vld [vmem:[#allocation3 + $0x14] sm:$0xf]
      %v943 = vld [vmem:[#allocation3 + $0x18] sm:$0xf]
      %v944 = vld [vmem:[#allocation3 + $0x1c] sm:$0xf]
      %v945 = vld [vmem:[#allocation3 + $0x20] sm:$0xf]
      %v946 = vld [vmem:[#allocation3 + $0x24] sm:$0xf]
      %v947 = vld [vmem:[#allocation3 + $0x28] sm:$0xf]
      %v948 = vld [vmem:[#allocation3 + $0x2c] sm:$0xf]
      %v949 = vld [vmem:[#allocation3 + $0x30] sm:$0xf]
      %v950 = vld [vmem:[#allocation3 + $0x34] sm:$0xf]
      %v951 = vld [vmem:[#allocation3 + $0x38] sm:$0xf]
      %v952 = vld [vmem:[#allocation3 + $0x3c] sm:$0xf]
      %v953 = vld [vmem:[#allocation3 + $0x40] sm:$0xf]
      %v954 = vld [vmem:[#allocation3 + $0x44] sm:$0xf]
      %v955 = vld [vmem:[#allocation3 + $0x48] sm:$0xf]
      %v956 = vld [vmem:[#allocation3 + $0x4c] sm:$0xf]
      %v957 = vld [vmem:[#allocation3 + $0x50] sm:$0xf]
      %v958 = vld [vmem:[#allocation3 + $0x54] sm:$0xf]
      %v959 = vld [vmem:[#allocation3 + $0x58] sm:$0xf]
      %v960 = vld [vmem:[#allocation3 + $0x5c] sm:$0xf]
      %v961 = vld [vmem:[#allocation3 + $0x60] sm:$0xf]
      %v962 = vld [vmem:[#allocation3 + $0x64] sm:$0xf]
      %v963 = vld [vmem:[#allocation3 + $0x68] sm:$0xf]
      %v965 = vunpack.c.l.b16 %v936
      %v966 = vunpack.c.h.b16 %v936
      %v967 = vpack.c.b16 %v965, %v965
      %v968 = vpack.c.b16 %v966, %v966
      %v997 = vunpack.c.l.b16 %v937
      %v998 = vunpack.c.l.b16 %v938
      %v999 = vunpack.c.l.b16 %v939
      %v1000 = vunpack.c.l.b16 %v940
      %v1001 = vunpack.c.l.b16 %v941
      %v1002 = vunpack.c.l.b16 %v942
      %v1003 = vunpack.c.l.b16 %v943
      %v1004 = vunpack.c.l.b16 %v944
      %v1005 = vunpack.c.l.b16 %v945
      %v1006 = vunpack.c.l.b16 %v946
      %v1007 = vunpack.c.l.b16 %v947
      %v1008 = vunpack.c.l.b16 %v948
      %v1009 = vunpack.c.l.b16 %v949
      %v1010 = vunpack.c.l.b16 %v950
      %v1011 = vunpack.c.l.b16 %v951
      %v1012 = vunpack.c.l.b16 %v952
      %v1013 = vunpack.c.l.b16 %v953
      %v1014 = vunpack.c.l.b16 %v954
      %v1015 = vunpack.c.l.b16 %v955
      %v1016 = vunpack.c.l.b16 %v956
      %v1017 = vunpack.c.l.b16 %v957
      %v1018 = vunpack.c.l.b16 %v958
      %v1019 = vunpack.c.l.b16 %v959
      %v1020 = vunpack.c.l.b16 %v960
      %v1021 = vunpack.c.l.b16 %v961
      %v1022 = vunpack.c.l.b16 %v962
      %v1023 = vunpack.c.l.b16 %v963
      %v1024 = vpack.c.b16 %v998, %v997
      %v1025 = vpack.c.b16 %v1000, %v999
      %v1026 = vpack.c.b16 %v1002, %v1001
      %v1027 = vpack.c.b16 %v1004, %v1003
      %v1028 = vpack.c.b16 %v1006, %v1005
      %v1029 = vpack.c.b16 %v1008, %v1007
      %v1030 = vpack.c.b16 %v1010, %v1009
      %v1031 = vpack.c.b16 %v1012, %v1011
      %v1032 = vpack.c.b16 %v1014, %v1013
      %v1033 = vpack.c.b16 %v1016, %v1015
      %v1034 = vpack.c.b16 %v1018, %v1017
      %v1035 = vpack.c.b16 %v1020, %v1019
      %v1036 = vpack.c.b16 %v1022, %v1021
      %v1037 = vpack.c.b16 %v1023, %v1023
      %vm1051 = vcmask 719872
      %v1053 = vsel %vm1051, %v968, 0
      %vm1055 = vcmask 1043456
      %v1057 = vsel %vm1055, %v1037, 0
      %1059 = vmatprep.subr.bf16.mxu0 0
      %1060 = vmatpush1.bf16.msra.mxu0 %v1031
      %1061 = vmatprep.subr.bf16.mxu0 0
      %1062 = vmatpush1.bf16.msra.mxu0 %v1030
      %1063 = vmatprep.subr.bf16.mxu0 0
      %1064 = vmatpush1.bf16.msra.mxu0 %v1029
      %1065 = vmatprep.subr.bf16.mxu0 0
      %1066 = vmatpush1.bf16.msra.mxu0 %v1028
      %1067 = vmatprep.subr.bf16.mxu0 0
      %1068 = vmatpush1.bf16.msra.mxu0 %v1027
      %1069 = vmatprep.subr.bf16.mxu0 0
      %1070 = vmatpush1.bf16.msra.mxu0 %v1026
      %1071 = vmatprep.subr.bf16.mxu0 0
      %1072 = vmatpush1.bf16.msra.mxu0 %v1025
      %1073 = vmatprep.subr.bf16.mxu0 0
      %1074 = vmatpush1.bf16.msra.mxu0 %v1024
      %1075 = vmatprep.subr.bf16.mxu0 0
      %1076 = vmatpush2.bf16.msra.mxu0 0
      %1077 = vmatprep.subr.bf16.mxu0 0
      %1078 = vmatpush2.bf16.msra.mxu0 0
      %1079 = vmatprep.subr.bf16.mxu0 0
      %1080 = vmatpush2.bf16.msra.mxu0 %v1057
      %1081 = vmatprep.subr.bf16.mxu0 0
      %1082 = vmatpush2.bf16.msra.mxu0 %v1036
      %1083 = vmatprep.subr.bf16.mxu0 0
      %1084 = vmatpush2.bf16.msra.mxu0 %v1035
      %1085 = vmatprep.subr.bf16.mxu0 0
      %1086 = vmatpush2.bf16.msra.mxu0 %v1034
      %1087 = vmatprep.subr.bf16.mxu0 0
      %1088 = vmatpush2.bf16.msra.mxu0 %v1033
      %1089 = vmatprep.subr.bf16.mxu0 0
      %1090 = vmatpush2.bf16.msra.mxu0 %v1032
      %1091 = vmatprep.mubr.bf16.mxu0 %v1053
      %1092 = vmatmul.mubr.bf16.gmra.mxu0 %v967
      %v1093 = vpop.f32.mrf.mxu0
      %v1094 = vadd.f32 0.0, %v1093
      %v1095 = vpop.f32.mrf.mxu0
      %v1096 = vpop.f32.mrf.mxu0
      %v1097 = vpop.f32.mrf.mxu0
      %1098 = vdwg.mxu0
      %v1099 = vld [vmem:[%s6] sm:$0xff]
      %1101 = vset.pattern.permute.xlu0 0
      %1102 = vperm.xlu0 %1101, %v1099
      %v1103 = vpop.permute.xlu0 %1102
      %v1105 = vmul.f32 %v1094, %v1103
      %v1106 = vld [vmem:[%s7] sm:$0xff]
      %1108 = vset.pattern.permute.xlu0 0
      %1109 = vperm.xlu0 %1108, %v1106
      %v1110 = vpop.permute.xlu0 %1109
      %v1112 = vadd.f32 %v1105, %v1110
      %v1113 = vmax.f32 %v1112, 0.0
      %1114 = vst [vmem:[%s374] sm:$0xff] %v1113
      %1117 = vrot.lane.b32.xlu0 %v740, 124
      %v1118 = vpop.permute.xlu0 %1117
      %1119 = vrot.lane.b32.xlu0 %v741, 124
      %v1120 = vpop.permute.xlu0 %1119
      %vm1121 = vcmask 1014784
      %v1122 = vsel %vm1121, %v1118, %v1120
      %1124 = vst [vmem:[%s374 + $0x8] sm:$0xf] %v1122
      %p1125 = scmp.lt.s32.totalorder %s23, 1
      %s1126 = scalar_select %p1125, %s23, 1
      %p1127 = scmp.lt.s32.totalorder %s24, 0
      %s1128 = scalar_select %p1127, %s24, 0
      %s1129 = smul.addr %s1126, 2
      %s1130 = sadd.s32 %s1128, %s1129
      %s1131 = smul.addr %s1130, 8
      %s1132 = scalar_lea.vmem %s8, %s1131
      // Predicated region
      $region53: #{imsf_block_forward.5} parent=51 // pred_check
        %p1133 = pneg %p235
      $region54: #{imsf_block_forward.5} parent=51 // pred_check_branch
        %1135 = sbr.rel (%p1133) target = $region56
      $region55: #{imsf_block_forward.5} parent=51 // pred_region
        _
      $region56: #{imsf_block_forward.5} parent=51 // pred_fallthru
        _
    $region52: #{imsf_block_forward.5} parent=5 // pred_fallthru
      _
    %p1136 = scmp.le.s32.totalorder 2, %s14
    // Predicated region
    $region57: #{imsf_block_forward.5} parent=5 // pred_check
      %p1137 = pneg %p1136
    $region58: #{imsf_block_forward.5} parent=5 // pred_check_branch
      %1139 = sbr.rel (%p1137) target = $region60
    $region59: #{imsf_block_forward.5} parent=5 // pred_region
      %s1140 = ssub.s32 %s14, 2
      // Predicated region
      $region61: #{imsf_block_forward.5} parent=59 // pred_check
        %p1141 = pneg %p241
      $region62: #{imsf_block_forward.5} parent=59 // pred_check_branch
        %1143 = sbr.rel (%p1141) target = $region64
      $region63: #{imsf_block_forward.5} parent=59 // pred_region
        %p1144 = scmp.lt.s32.totalorder %s25, 1
        %s1145 = scalar_select %p1144, %s25, 1
        %p1146 = scmp.lt.s32.totalorder %s26, 0
        %s1147 = scalar_select %p1146, %s26, 0
        %s1148 = smul.addr %s1145, 2
        %s1149 = sadd.s32 %s1147, %s1148
        %s1150 = smul.addr %s1149, 8
        %s1151 = scalar_lea.vmem %s8, %s1150
      $region64: #{imsf_block_forward.5} parent=59 // pred_fallthru
        _
    $region60: #{imsf_block_forward.5} parent=5 // pred_fallthru
      _
  $region6: #{imsf_block_forward.5} parent=0 // loop_footer
    %s18 = sadd.s32 1, %s14
  $region7: #{imsf_block_forward.5} parent=0 // loop_footer_branch
    %13 = sbr.rel target = $region3
  $region8: #{imsf_block_forward.5} parent=0 // loop_exit
    _

</llo_original>
